<compile_context>
chip_gen: v7x
topology: tpu7x:2x2x1
jax: 0.10.0
libtpu: 0.0.40
codegen_flags: <defaults>
</compile_context>

<pallas_src>
import math
import numpy as np
import jax
import jax.numpy as jnp
from jax import lax
from jax.experimental import pallas as pl
from jax.experimental.pallas import tpu as pltpu

EPS = 1e-5


# ----------------------------------------------------------------------------
# Fused kernel builder: the whole NeatBlock for one batch element per grid step.
# ----------------------------------------------------------------------------
def _build_fused_call(N, H, W, C, n_grouped, dtype=jnp.float32):
    HP, WP = H + 2, W + 2
    couts = [C >> (i + 1) for i in range(n_grouped)]   # 64, 32, 16, 8, 4, 2
    cins = [C] + couts[:-1]                            # inputs of the grouped convs

    def kernel(x_ref, wp_ref, w8_ref, sh_ref, o_ref, buf_a, buf_b):
        bufs = (buf_a, buf_b)
        # Zero the two shared ping-pong padded scratches.  Only the 1-pixel
        # border really needs to be zero (interiors are fully overwritten),
        # but zeroing per step keeps correctness under megacore partitioning
        # of the "parallel" batch axis.  2 buffer zeroings/step (was 7).
        buf_a[...] = jnp.zeros_like(buf_a)
        buf_b[...] = jnp.zeros_like(buf_b)

        # Stage the (channel-permuted) input into buf_a's interior: lane-dense
        # 128-wide store.  Everything below stays VMEM-resident.
        buf_a[1:1 + H, 1:1 + W, :] = x_ref[0]

        a = None
        # ---- grouped 3x3 convs (conv2..conv7): pure VPU multiply-adds --------
        for l in range(n_grouped):
            cin, cout = cins[l], couts[l]
            src = bufs[l % 2]
            # Paired accumulation: lanes [0, cout) accumulate the first group
            # member, lanes [cout, cin) the second (weights are already
            # BN-scaled and laid out accordingly).  Init with the folded BN
            # shift in lanes [0, cout) and zeros above.
            acc = jnp.broadcast_to(sh_ref[l:l + 1, 0:cin], (H, W, cin))
            for dx in range(3):
                # One sublane-shifted load per dx (hoisted out of the dy loop);
                # dy row-slicing of the loaded value is a free outer-dim slice.
                x_dx = src[:, dx:dx + W, 0:cin]                  # (HP, W, cin)
                for dy in range(3):
                    t = dy * 3 + dx
                    acc = acc + x_dx[dy:dy + H] * wp_ref[l, t:t + 1, 0:cin]
            # Fold the two half-lane partial sums, then ReLU (BN scale/shift
            # already folded into wp_ref / the acc init).
            a = jnp.maximum(acc[:, :, 0:cout] + acc[:, :, cout:cin], 0.0)
            if l + 1 < n_grouped:
                # Write the next layer's input into the other padded scratch;
                # the border is never written so it stays zero.
                bufs[(l + 1) % 2][1:1 + H, 1:1 + W, 0:cout] = a

        # ---- conv8: dense 1x1, couts[-1](=2) -> C, as broadcast FMAs ----------
        y = jnp.broadcast_to(sh_ref[n_grouped:n_grouped + 1, :], (H, W, C))
        for c in range(couts[-1]):
            y = y + a[:, :, c:c + 1] * w8_ref[c:c + 1, :]
        o_ref[0] = jnp.maximum(y, 0.0).astype(o_ref.dtype)

    return pl.pallas_call(
        kernel,
        out_shape=jax.ShapeDtypeStruct((N, H, W, C), dtype),
        grid=(N,),
        in_specs=[
            pl.BlockSpec((1, H, W, C), lambda n: (n, 0, 0, 0)),
            pl.BlockSpec((n_grouped, 9, C), lambda n: (0, 0, 0)),   # paired conv w
            pl.BlockSpec((couts[-1], C), lambda n: (0, 0)),         # conv8 weight
            pl.BlockSpec((n_grouped + 1, C), lambda n: (0, 0)),     # BN shifts
        ],
        out_specs=pl.BlockSpec((1, H, W, C), lambda n: (n, 0, 0, 0)),
        scratch_shapes=[pltpu.VMEM((HP, WP, C), jnp.float32),
                        pltpu.VMEM((HP, WP, C), jnp.float32)],
        compiler_params=pltpu.CompilerParams(
            dimension_semantics=("parallel",)),
    )


# ----------------------------------------------------------------------------
# One-time parameter preparation: channel "deinterleave" permutation folded
# into every layer's weights, BN folded into weights (scale) and a per-layer
# shift vector, weights packed so that lanes [0,cout) hold the first group
# member's (scaled) weights and lanes [cout,2*cout) the second member's.
# ----------------------------------------------------------------------------
def prepare_neatblock_params(layers, eps=EPS):
    n_grouped = len(layers) - 1
    grouped, last = layers[:n_grouped], layers[-1]
    couts = [int(L["w"].shape[0]) for L in grouped]
    cpg = int(grouped[0]["w"].shape[1])
    assert cpg == 2, "kernel layout assumes group_size == 2 (2 inputs per group)"
    c0 = couts[0] * cpg                                  # full channel width

    # q[l][t] = canonical output channel held at lane t after grouped layer l.
    # Chosen (backwards) so every layer sees its group's 2 inputs split into
    # two aligned half-blocks: lane t and lane cout + t.
    q = [None] * n_grouped
    q[-1] = np.arange(couts[-1], dtype=np.int32)
    for l in range(n_grouped - 2, -1, -1):
        q[l] = np.concatenate([2 * q[l + 1], 2 * q[l + 1] + 1]).astype(np.int32)
        assert q[l].size == couts[l]
    q_in = np.concatenate([2 * q[0], 2 * q[0] + 1]).astype(np.int32)
    assert q_in.size == c0

    wp_all = np.zeros((n_grouped, 9, c0), np.float32)     # paired, BN-scaled
    shift_all = np.zeros((n_grouped + 1, c0), np.float32)

    for l, L in enumerate(grouped):
        cout = couts[l]
        cin = 2 * cout
        inv = 1.0 / np.sqrt(np.asarray(L["var"], np.float32) + eps)
        sc_full = np.asarray(L["gamma"], np.float32) * inv
        sh_full = np.asarray(L["beta"], np.float32) \
            - np.asarray(L["mean"], np.float32) * sc_full
        sc = sc_full[q[l]]                                 # per output slot
        sh = sh_full[q[l]]
        w = np.asarray(L["w"], np.float32)[q[l]]           # (cout, 2, 3, 3)
        # fold BN scale into the weights; [tap, lane] layout.
        wp_all[l, :, 0:cout] = (w[:, 0] * sc[:, None, None]).reshape(cout, 9).T
        wp_all[l, :, cout:cin] = (w[:, 1] * sc[:, None, None]).reshape(cout, 9).T
        shift_all[l, :cout] = sh

    # conv8 (1x1 dense): permute its input-channel axis by the last grouped
    # layer's output-slot ordering (identity here); output stays canonical.
    w8_can = np.asarray(last["w"], np.float32)[:, :, 0, 0]            # (c0, cin_last)
    inv = 1.0 / np.sqrt(np.asarray(last["var"], np.float32) + eps)
    sc8 = np.asarray(last["gamma"], np.float32) * inv
    sh8 = np.asarray(last["beta"], np.float32) - np.asarray(last["mean"], np.float32) * sc8
    w8 = (w8_can * sc8[:, None])[:, q[-1]].T                          # (cin_last, c0)
    shift_all[n_grouped] = sh8

    return dict(
        q_in=jnp.asarray(q_in),
        wp=jnp.asarray(wp_all), w8=jnp.asarray(w8),
        shift=jnp.asarray(shift_all),
    )


# ----------------------------------------------------------------------------
# NeatBlock forward (residual=False path): single fused Pallas call.
# ----------------------------------------------------------------------------
@jax.jit
def neat_block_forward(x_nchw, prep):
    # One-time channel deinterleave, fused by XLA with the NCHW->NHWC
    # transpose into a single copy pass (the permutation itself is folded into
    # every layer's weights at prep time).
    x = jnp.transpose(jnp.take(x_nchw, prep["q_in"], axis=1), (0, 2, 3, 1))
    N, H, W, C = x.shape
    n_grouped = prep["wp"].shape[0]
    out = _build_fused_call(N, H, W, C, n_grouped, x.dtype)(
        x, prep["wp"], prep["w8"], prep["shift"])
    # Module interface is NCHW; keep the output transpose.
    return jnp.transpose(out, (0, 3, 1, 2))


# ----------------------------------------------------------------------------
# Deterministic parameter initialization (shapes follow NeatBlock.__init__,
# residual=False, group_size=2).
# ----------------------------------------------------------------------------
def init_neatblock_params(key, inp_channel_size=128, group_size=2):
    layers = []
    cin = inp_channel_size
    keys = iter(jax.random.split(key, 7 * 5))

    # conv2 .. conv7 : grouped 3x3, groups = out_channels, in/groups = 2
    for _ in range(6):
        cout = cin // group_size
        groups = cout
        cpg = cin // groups
        bound = 1.0 / math.sqrt(cpg * 9)
        w = jax.random.uniform(next(keys), (cout, cpg, 3, 3), jnp.float32,
                               -bound, bound)
        gamma = jax.random.uniform(next(keys), (cout,), jnp.float32, 0.5, 1.5)
        beta = jax.random.uniform(next(keys), (cout,), jnp.float32, -0.2, 0.2)
        mean = 0.05 * jax.random.normal(next(keys), (cout,), jnp.float32)
        var = jax.random.uniform(next(keys), (cout,), jnp.float32, 0.5, 1.5)
        layers.append(dict(w=w, groups=groups, k=3,
                           gamma=gamma, beta=beta, mean=mean, var=var))
        cin = cout

    # conv8 : 1x1 dense conv back to inp_channel_size
    cout = inp_channel_size
    bound = 1.0 / math.sqrt(cin)
    w = jax.random.uniform(next(keys), (cout, cin, 1, 1), jnp.float32,
                           -bound, bound)
    gamma = jax.random.uniform(next(keys), (cout,), jnp.float32, 0.5, 1.5)
    beta = jax.random.uniform(next(keys), (cout,), jnp.float32, -0.2, 0.2)
    mean = 0.05 * jax.random.normal(next(keys), (cout,), jnp.float32)
    var = jax.random.uniform(next(keys), (cout,), jnp.float32, 0.5, 1.5)
    layers.append(dict(w=w, groups=1, k=1,
                       gamma=gamma, beta=beta, mean=mean, var=var))
    return layers


# ----------------------------------------------------------------------------
# Pure-JAX reference (lax grouped conv) for correctness checking only.
# ----------------------------------------------------------------------------
def neat_block_reference(x_nchw, layers):
    x = jnp.transpose(x_nchw, (0, 2, 3, 1))
    for L in layers:
        hwio = jnp.transpose(L["w"], (2, 3, 1, 0))
        pad = (L["k"] - 1) // 2
        y = lax.conv_general_dilated(
            x, hwio, (1, 1), [(pad, pad), (pad, pad)],
            dimension_numbers=("NHWC", "HWIO", "NHWC"),
            feature_group_count=L["groups"])
        scale = L["gamma"] / jnp.sqrt(L["var"] + EPS)
        shift = L["beta"] - L["mean"] * scale
        x = jnp.maximum(y * scale + shift, 0.0)
    return jnp.transpose(x, (0, 3, 1, 2))


if __name__ == "__main__":
    key = jax.random.PRNGKey(0)
    kx, kp = jax.random.split(key)

    # inp_channel_size must be divisible by group_size**6 = 64; use 128.
    N, C, H, W = 2, 128, 8, 8
    x = jax.random.normal(kx, (N, C, H, W), jnp.float32)
    layers = init_neatblock_params(kp, inp_channel_size=C, group_size=2)
    prep = prepare_neatblock_params(layers)          # one-time, outside the hot path

    out = jax.block_until_ready(neat_block_forward(x, prep))

    ref = jax.block_until_ready(neat_block_reference(x, layers))
    np.testing.assert_allclose(np.asarray(out), np.asarray(ref),
                               rtol=1e-4, atol=1e-4)
    assert out.shape == (N, C, H, W)
    print("KERNEL_OK")
</pallas_src>

<mosaic_0001>
module attributes {stable_mosaic.version = 11 : i64} {
  func.func @kernel(%arg0: i32, %arg1: memref<1x8x8x128xf32, #tpu.memory_space<vmem>>, %arg2: memref<6x9x128xf32, #tpu.memory_space<vmem>>, %arg3: memref<2x128xf32, #tpu.memory_space<vmem>>, %arg4: memref<7x128xf32, #tpu.memory_space<vmem>>, %arg5: memref<1x8x8x128xf32, #tpu.memory_space<vmem>>, %arg6: memref<10x10x128xf32, #tpu.memory_space<vmem>>, %arg7: memref<10x10x128xf32, #tpu.memory_space<vmem>>) attributes {dimension_semantics = [#tpu.dimension_semantics<parallel>], iteration_bounds = array<i64: 2>, scalar_prefetch = 0 : i64, scratch_operands = 2 : i64, tpu.core_type = #tpu.core_type<tc>, window_params = [{transform_indices = @transform_0, window_bounds = array<i64: 1, 8, 8, 128>}, {pipeline_mode = #tpu.pipeline_mode<synchronous>, transform_indices = @transform_1, window_bounds = array<i64: 6, 9, 128>}, {pipeline_mode = #tpu.pipeline_mode<synchronous>, transform_indices = @transform_2, window_bounds = array<i64: 2, 128>}, {pipeline_mode = #tpu.pipeline_mode<synchronous>, transform_indices = @transform_3, window_bounds = array<i64: 7, 128>}, {transform_indices = @transform_4, window_bounds = array<i64: 1, 8, 8, 128>}]} {
    %cst = arith.constant 0.000000e+00 : f32
    %0 = vector.broadcast %cst : f32 to vector<10x10x128xf32>
    %c0 = arith.constant 0 : index
    %c0_0 = arith.constant 0 : index
    %c0_1 = arith.constant 0 : index
    %1 = vector.load %arg6[%c0, %c0_0, %c0_1] : memref<10x10x128xf32, #tpu.memory_space<vmem>>, vector<10x10x128xf32>
    tpu.vector_store %arg6[%c0, %c0_0, %c0_1], %0 {strides = array<i32>} : memref<10x10x128xf32, #tpu.memory_space<vmem>>, vector<10x10x128xf32>,
    %cst_2 = arith.constant 0.000000e+00 : f32
    %2 = vector.broadcast %cst_2 : f32 to vector<10x10x128xf32>
    %c0_3 = arith.constant 0 : index
    %c0_4 = arith.constant 0 : index
    %c0_5 = arith.constant 0 : index
    %3 = vector.load %arg7[%c0_3, %c0_4, %c0_5] : memref<10x10x128xf32, #tpu.memory_space<vmem>>, vector<10x10x128xf32>
    tpu.vector_store %arg7[%c0_3, %c0_4, %c0_5], %2 {strides = array<i32>} : memref<10x10x128xf32, #tpu.memory_space<vmem>>, vector<10x10x128xf32>,
    %c0_6 = arith.constant 0 : index
    %c0_7 = arith.constant 0 : index
    %c0_8 = arith.constant 0 : index
    %c0_9 = arith.constant 0 : index
    %4 = vector.load %arg1[%c0_6, %c0_7, %c0_8, %c0_9] : memref<1x8x8x128xf32, #tpu.memory_space<vmem>>, vector<1x8x8x128xf32>
    %5 = vector.shape_cast %4 : vector<1x8x8x128xf32> to vector<8x8x128xf32>
    %c1 = arith.constant 1 : index
    %c1_10 = arith.constant 1 : index
    %c0_11 = arith.constant 0 : index
    %6 = vector.load %arg6[%c1, %c1_10, %c0_11] : memref<10x10x128xf32, #tpu.memory_space<vmem>>, vector<8x8x128xf32>
    tpu.vector_store %arg6[%c1, %c1_10, %c0_11], %5 {strides = array<i32>} : memref<10x10x128xf32, #tpu.memory_space<vmem>>, vector<8x8x128xf32>,
    %c0_12 = arith.constant 0 : index
    %c0_13 = arith.constant 0 : index
    %7 = vector.load %arg4[%c0_12, %c0_13] : memref<7x128xf32, #tpu.memory_space<vmem>>, vector<1x128xf32>
    %8 = vector.shape_cast %7 : vector<1x128xf32> to vector<1x1x128xf32>
    %9 = vector.broadcast %8 : vector<1x1x128xf32> to vector<8x8x128xf32>
    %c0_14 = arith.constant 0 : index
    %c0_15 = arith.constant 0 : index
    %c0_16 = arith.constant 0 : index
    %10 = vector.load %arg6[%c0_14, %c0_15, %c0_16] : memref<10x10x128xf32, #tpu.memory_space<vmem>>, vector<10x8x128xf32>
    %11 = vector.extract_strided_slice %10 {offsets = [0, 0, 0], sizes = [8, 8, 128], strides = [1, 1, 1]} : vector<10x8x128xf32> to vector<8x8x128xf32>
    %c0_17 = arith.constant 0 : index
    %c0_18 = arith.constant 0 : index
    %c0_19 = arith.constant 0 : index
    %12 = vector.load %arg2[%c0_17, %c0_18, %c0_19] : memref<6x9x128xf32, #tpu.memory_space<vmem>>, vector<1x1x128xf32>
    %13 = vector.shape_cast %12 : vector<1x1x128xf32> to vector<1x128xf32>
    %14 = vector.shape_cast %13 : vector<1x128xf32> to vector<1x1x128xf32>
    %15 = vector.broadcast %14 : vector<1x1x128xf32> to vector<8x8x128xf32>
    %16 = arith.mulf %11, %15 : vector<8x8x128xf32>
    %17 = arith.addf %9, %16 : vector<8x8x128xf32>
    %18 = vector.extract_strided_slice %10 {offsets = [1, 0, 0], sizes = [8, 8, 128], strides = [1, 1, 1]} : vector<10x8x128xf32> to vector<8x8x128xf32>
    %c0_20 = arith.constant 0 : index
    %c3 = arith.constant 3 : index
    %c0_21 = arith.constant 0 : index
    %19 = vector.load %arg2[%c0_20, %c3, %c0_21] : memref<6x9x128xf32, #tpu.memory_space<vmem>>, vector<1x1x128xf32>
    %20 = vector.shape_cast %19 : vector<1x1x128xf32> to vector<1x128xf32>
    %21 = vector.shape_cast %20 : vector<1x128xf32> to vector<1x1x128xf32>
    %22 = vector.broadcast %21 : vector<1x1x128xf32> to vector<8x8x128xf32>
    %23 = arith.mulf %18, %22 : vector<8x8x128xf32>
    %24 = arith.addf %17, %23 : vector<8x8x128xf32>
    %25 = vector.extract_strided_slice %10 {offsets = [2, 0, 0], sizes = [8, 8, 128], strides = [1, 1, 1]} : vector<10x8x128xf32> to vector<8x8x128xf32>
    %c0_22 = arith.constant 0 : index
    %c6 = arith.constant 6 : index
    %c0_23 = arith.constant 0 : index
    %26 = vector.load %arg2[%c0_22, %c6, %c0_23] : memref<6x9x128xf32, #tpu.memory_space<vmem>>, vector<1x1x128xf32>
    %27 = vector.shape_cast %26 : vector<1x1x128xf32> to vector<1x128xf32>
    %28 = vector.shape_cast %27 : vector<1x128xf32> to vector<1x1x128xf32>
    %29 = vector.broadcast %28 : vector<1x1x128xf32> to vector<8x8x128xf32>
    %30 = arith.mulf %25, %29 : vector<8x8x128xf32>
    %31 = arith.addf %24, %30 : vector<8x8x128xf32>
    %c0_24 = arith.constant 0 : index
    %c1_25 = arith.constant 1 : index
    %c0_26 = arith.constant 0 : index
    %32 = vector.load %arg6[%c0_24, %c1_25, %c0_26] : memref<10x10x128xf32, #tpu.memory_space<vmem>>, vector<10x8x128xf32>
    %33 = vector.extract_strided_slice %32 {offsets = [0, 0, 0], sizes = [8, 8, 128], strides = [1, 1, 1]} : vector<10x8x128xf32> to vector<8x8x128xf32>
    %c0_27 = arith.constant 0 : index
    %c1_28 = arith.constant 1 : index
    %c0_29 = arith.constant 0 : index
    %34 = vector.load %arg2[%c0_27, %c1_28, %c0_29] : memref<6x9x128xf32, #tpu.memory_space<vmem>>, vector<1x1x128xf32>
    %35 = vector.shape_cast %34 : vector<1x1x128xf32> to vector<1x128xf32>
    %36 = vector.shape_cast %35 : vector<1x128xf32> to vector<1x1x128xf32>
    %37 = vector.broadcast %36 : vector<1x1x128xf32> to vector<8x8x128xf32>
    %38 = arith.mulf %33, %37 : vector<8x8x128xf32>
    %39 = arith.addf %31, %38 : vector<8x8x128xf32>
    %40 = vector.extract_strided_slice %32 {offsets = [1, 0, 0], sizes = [8, 8, 128], strides = [1, 1, 1]} : vector<10x8x128xf32> to vector<8x8x128xf32>
    %c0_30 = arith.constant 0 : index
    %c4 = arith.constant 4 : index
    %c0_31 = arith.constant 0 : index
    %41 = vector.load %arg2[%c0_30, %c4, %c0_31] : memref<6x9x128xf32, #tpu.memory_space<vmem>>, vector<1x1x128xf32>
    %42 = vector.shape_cast %41 : vector<1x1x128xf32> to vector<1x128xf32>
    %43 = vector.shape_cast %42 : vector<1x128xf32> to vector<1x1x128xf32>
    %44 = vector.broadcast %43 : vector<1x1x128xf32> to vector<8x8x128xf32>
    %45 = arith.mulf %40, %44 : vector<8x8x128xf32>
    %46 = arith.addf %39, %45 : vector<8x8x128xf32>
    %47 = vector.extract_strided_slice %32 {offsets = [2, 0, 0], sizes = [8, 8, 128], strides = [1, 1, 1]} : vector<10x8x128xf32> to vector<8x8x128xf32>
    %c0_32 = arith.constant 0 : index
    %c7 = arith.constant 7 : index
    %c0_33 = arith.constant 0 : index
    %48 = vector.load %arg2[%c0_32, %c7, %c0_33] : memref<6x9x128xf32, #tpu.memory_space<vmem>>, vector<1x1x128xf32>
    %49 = vector.shape_cast %48 : vector<1x1x128xf32> to vector<1x128xf32>
    %50 = vector.shape_cast %49 : vector<1x128xf32> to vector<1x1x128xf32>
    %51 = vector.broadcast %50 : vector<1x1x128xf32> to vector<8x8x128xf32>
    %52 = arith.mulf %47, %51 : vector<8x8x128xf32>
    %53 = arith.addf %46, %52 : vector<8x8x128xf32>
    %c0_34 = arith.constant 0 : index
    %c2 = arith.constant 2 : index
    %c0_35 = arith.constant 0 : index
    %54 = vector.load %arg6[%c0_34, %c2, %c0_35] : memref<10x10x128xf32, #tpu.memory_space<vmem>>, vector<10x8x128xf32>
    %55 = vector.extract_strided_slice %54 {offsets = [0, 0, 0], sizes = [8, 8, 128], strides = [1, 1, 1]} : vector<10x8x128xf32> to vector<8x8x128xf32>
    %c0_36 = arith.constant 0 : index
    %c2_37 = arith.constant 2 : index
    %c0_38 = arith.constant 0 : index
    %56 = vector.load %arg2[%c0_36, %c2_37, %c0_38] : memref<6x9x128xf32, #tpu.memory_space<vmem>>, vector<1x1x128xf32>
    %57 = vector.shape_cast %56 : vector<1x1x128xf32> to vector<1x128xf32>
    %58 = vector.shape_cast %57 : vector<1x128xf32> to vector<1x1x128xf32>
    %59 = vector.broadcast %58 : vector<1x1x128xf32> to vector<8x8x128xf32>
    %60 = arith.mulf %55, %59 : vector<8x8x128xf32>
    %61 = arith.addf %53, %60 : vector<8x8x128xf32>
    %62 = vector.extract_strided_slice %54 {offsets = [1, 0, 0], sizes = [8, 8, 128], strides = [1, 1, 1]} : vector<10x8x128xf32> to vector<8x8x128xf32>
    %c0_39 = arith.constant 0 : index
    %c5 = arith.constant 5 : index
    %c0_40 = arith.constant 0 : index
    %63 = vector.load %arg2[%c0_39, %c5, %c0_40] : memref<6x9x128xf32, #tpu.memory_space<vmem>>, vector<1x1x128xf32>
    %64 = vector.shape_cast %63 : vector<1x1x128xf32> to vector<1x128xf32>
    %65 = vector.shape_cast %64 : vector<1x128xf32> to vector<1x1x128xf32>
    %66 = vector.broadcast %65 : vector<1x1x128xf32> to vector<8x8x128xf32>
    %67 = arith.mulf %62, %66 : vector<8x8x128xf32>
    %68 = arith.addf %61, %67 : vector<8x8x128xf32>
    %69 = vector.extract_strided_slice %54 {offsets = [2, 0, 0], sizes = [8, 8, 128], strides = [1, 1, 1]} : vector<10x8x128xf32> to vector<8x8x128xf32>
    %c0_41 = arith.constant 0 : index
    %c8 = arith.constant 8 : index
    %c0_42 = arith.constant 0 : index
    %70 = vector.load %arg2[%c0_41, %c8, %c0_42] : memref<6x9x128xf32, #tpu.memory_space<vmem>>, vector<1x1x128xf32>
    %71 = vector.shape_cast %70 : vector<1x1x128xf32> to vector<1x128xf32>
    %72 = vector.shape_cast %71 : vector<1x128xf32> to vector<1x1x128xf32>
    %73 = vector.broadcast %72 : vector<1x1x128xf32> to vector<8x8x128xf32>
    %74 = arith.mulf %69, %73 : vector<8x8x128xf32>
    %75 = arith.addf %68, %74 : vector<8x8x128xf32>
    %76 = vector.extract_strided_slice %75 {offsets = [0, 0, 0], sizes = [8, 8, 64], strides = [1, 1, 1]} : vector<8x8x128xf32> to vector<8x8x64xf32>
    %77 = vector.extract_strided_slice %75 {offsets = [0, 0, 64], sizes = [8, 8, 64], strides = [1, 1, 1]} : vector<8x8x128xf32> to vector<8x8x64xf32>
    %78 = arith.addf %76, %77 : vector<8x8x64xf32>
    %cst_43 = arith.constant 0.000000e+00 : f32
    %79 = vector.broadcast %cst_43 : f32 to vector<8x8x64xf32>
    %80 = arith.maximumf %78, %79 : vector<8x8x64xf32>
    %c1_44 = arith.constant 1 : index
    %c1_45 = arith.constant 1 : index
    %c0_46 = arith.constant 0 : index
    %81 = vector.load %arg7[%c1_44, %c1_45, %c0_46] : memref<10x10x128xf32, #tpu.memory_space<vmem>>, vector<8x8x64xf32>
    tpu.vector_store %arg7[%c1_44, %c1_45, %c0_46], %80 {strides = array<i32>} : memref<10x10x128xf32, #tpu.memory_space<vmem>>, vector<8x8x64xf32>,
    %c1_47 = arith.constant 1 : index
    %c0_48 = arith.constant 0 : index
    %82 = vector.load %arg4[%c1_47, %c0_48] : memref<7x128xf32, #tpu.memory_space<vmem>>, vector<1x64xf32>
    %83 = vector.shape_cast %82 : vector<1x64xf32> to vector<1x1x64xf32>
    %84 = vector.broadcast %83 : vector<1x1x64xf32> to vector<8x8x64xf32>
    %c0_49 = arith.constant 0 : index
    %c0_50 = arith.constant 0 : index
    %c0_51 = arith.constant 0 : index
    %85 = vector.load %arg7[%c0_49, %c0_50, %c0_51] : memref<10x10x128xf32, #tpu.memory_space<vmem>>, vector<10x8x64xf32>
    %86 = vector.extract_strided_slice %85 {offsets = [0, 0, 0], sizes = [8, 8, 64], strides = [1, 1, 1]} : vector<10x8x64xf32> to vector<8x8x64xf32>
    %c1_52 = arith.constant 1 : index
    %c0_53 = arith.constant 0 : index
    %c0_54 = arith.constant 0 : index
    %87 = vector.load %arg2[%c1_52, %c0_53, %c0_54] : memref<6x9x128xf32, #tpu.memory_space<vmem>>, vector<1x1x64xf32>
    %88 = vector.shape_cast %87 : vector<1x1x64xf32> to vector<1x64xf32>
    %89 = vector.shape_cast %88 : vector<1x64xf32> to vector<1x1x64xf32>
    %90 = vector.broadcast %89 : vector<1x1x64xf32> to vector<8x8x64xf32>
    %91 = arith.mulf %86, %90 : vector<8x8x64xf32>
    %92 = arith.addf %84, %91 : vector<8x8x64xf32>
    %93 = vector.extract_strided_slice %85 {offsets = [1, 0, 0], sizes = [8, 8, 64], strides = [1, 1, 1]} : vector<10x8x64xf32> to vector<8x8x64xf32>
    %c1_55 = arith.constant 1 : index
    %c3_56 = arith.constant 3 : index
    %c0_57 = arith.constant 0 : index
    %94 = vector.load %arg2[%c1_55, %c3_56, %c0_57] : memref<6x9x128xf32, #tpu.memory_space<vmem>>, vector<1x1x64xf32>
    %95 = vector.shape_cast %94 : vector<1x1x64xf32> to vector<1x64xf32>
    %96 = vector.shape_cast %95 : vector<1x64xf32> to vector<1x1x64xf32>
    %97 = vector.broadcast %96 : vector<1x1x64xf32> to vector<8x8x64xf32>
    %98 = arith.mulf %93, %97 : vector<8x8x64xf32>
    %99 = arith.addf %92, %98 : vector<8x8x64xf32>
    %100 = vector.extract_strided_slice %85 {offsets = [2, 0, 0], sizes = [8, 8, 64], strides = [1, 1, 1]} : vector<10x8x64xf32> to vector<8x8x64xf32>
    %c1_58 = arith.constant 1 : index
    %c6_59 = arith.constant 6 : index
    %c0_60 = arith.constant 0 : index
    %101 = vector.load %arg2[%c1_58, %c6_59, %c0_60] : memref<6x9x128xf32, #tpu.memory_space<vmem>>, vector<1x1x64xf32>
    %102 = vector.shape_cast %101 : vector<1x1x64xf32> to vector<1x64xf32>
    %103 = vector.shape_cast %102 : vector<1x64xf32> to vector<1x1x64xf32>
    %104 = vector.broadcast %103 : vector<1x1x64xf32> to vector<8x8x64xf32>
    %105 = arith.mulf %100, %104 : vector<8x8x64xf32>
    %106 = arith.addf %99, %105 : vector<8x8x64xf32>
    %c0_61 = arith.constant 0 : index
    %c1_62 = arith.constant 1 : index
    %c0_63 = arith.constant 0 : index
    %107 = vector.load %arg7[%c0_61, %c1_62, %c0_63] : memref<10x10x128xf32, #tpu.memory_space<vmem>>, vector<10x8x64xf32>
    %108 = vector.extract_strided_slice %107 {offsets = [0, 0, 0], sizes = [8, 8, 64], strides = [1, 1, 1]} : vector<10x8x64xf32> to vector<8x8x64xf32>
    %c1_64 = arith.constant 1 : index
    %c1_65 = arith.constant 1 : index
    %c0_66 = arith.constant 0 : index
    %109 = vector.load %arg2[%c1_64, %c1_65, %c0_66] : memref<6x9x128xf32, #tpu.memory_space<vmem>>, vector<1x1x64xf32>
    %110 = vector.shape_cast %109 : vector<1x1x64xf32> to vector<1x64xf32>
    %111 = vector.shape_cast %110 : vector<1x64xf32> to vector<1x1x64xf32>
    %112 = vector.broadcast %111 : vector<1x1x64xf32> to vector<8x8x64xf32>
    %113 = arith.mulf %108, %112 : vector<8x8x64xf32>
    %114 = arith.addf %106, %113 : vector<8x8x64xf32>
    %115 = vector.extract_strided_slice %107 {offsets = [1, 0, 0], sizes = [8, 8, 64], strides = [1, 1, 1]} : vector<10x8x64xf32> to vector<8x8x64xf32>
    %c1_67 = arith.constant 1 : index
    %c4_68 = arith.constant 4 : index
    %c0_69 = arith.constant 0 : index
    %116 = vector.load %arg2[%c1_67, %c4_68, %c0_69] : memref<6x9x128xf32, #tpu.memory_space<vmem>>, vector<1x1x64xf32>
    %117 = vector.shape_cast %116 : vector<1x1x64xf32> to vector<1x64xf32>
    %118 = vector.shape_cast %117 : vector<1x64xf32> to vector<1x1x64xf32>
    %119 = vector.broadcast %118 : vector<1x1x64xf32> to vector<8x8x64xf32>
    %120 = arith.mulf %115, %119 : vector<8x8x64xf32>
    %121 = arith.addf %114, %120 : vector<8x8x64xf32>
    %122 = vector.extract_strided_slice %107 {offsets = [2, 0, 0], sizes = [8, 8, 64], strides = [1, 1, 1]} : vector<10x8x64xf32> to vector<8x8x64xf32>
    %c1_70 = arith.constant 1 : index
    %c7_71 = arith.constant 7 : index
    %c0_72 = arith.constant 0 : index
    %123 = vector.load %arg2[%c1_70, %c7_71, %c0_72] : memref<6x9x128xf32, #tpu.memory_space<vmem>>, vector<1x1x64xf32>
    %124 = vector.shape_cast %123 : vector<1x1x64xf32> to vector<1x64xf32>
    %125 = vector.shape_cast %124 : vector<1x64xf32> to vector<1x1x64xf32>
    %126 = vector.broadcast %125 : vector<1x1x64xf32> to vector<8x8x64xf32>
    %127 = arith.mulf %122, %126 : vector<8x8x64xf32>
    %128 = arith.addf %121, %127 : vector<8x8x64xf32>
    %c0_73 = arith.constant 0 : index
    %c2_74 = arith.constant 2 : index
    %c0_75 = arith.constant 0 : index
    %129 = vector.load %arg7[%c0_73, %c2_74, %c0_75] : memref<10x10x128xf32, #tpu.memory_space<vmem>>, vector<10x8x64xf32>
    %130 = vector.extract_strided_slice %129 {offsets = [0, 0, 0], sizes = [8, 8, 64], strides = [1, 1, 1]} : vector<10x8x64xf32> to vector<8x8x64xf32>
    %c1_76 = arith.constant 1 : index
    %c2_77 = arith.constant 2 : index
    %c0_78 = arith.constant 0 : index
    %131 = vector.load %arg2[%c1_76, %c2_77, %c0_78] : memref<6x9x128xf32, #tpu.memory_space<vmem>>, vector<1x1x64xf32>
    %132 = vector.shape_cast %131 : vector<1x1x64xf32> to vector<1x64xf32>
    %133 = vector.shape_cast %132 : vector<1x64xf32> to vector<1x1x64xf32>
    %134 = vector.broadcast %133 : vector<1x1x64xf32> to vector<8x8x64xf32>
    %135 = arith.mulf %130, %134 : vector<8x8x64xf32>
    %136 = arith.addf %128, %135 : vector<8x8x64xf32>
    %137 = vector.extract_strided_slice %129 {offsets = [1, 0, 0], sizes = [8, 8, 64], strides = [1, 1, 1]} : vector<10x8x64xf32> to vector<8x8x64xf32>
    %c1_79 = arith.constant 1 : index
    %c5_80 = arith.constant 5 : index
    %c0_81 = arith.constant 0 : index
    %138 = vector.load %arg2[%c1_79, %c5_80, %c0_81] : memref<6x9x128xf32, #tpu.memory_space<vmem>>, vector<1x1x64xf32>
    %139 = vector.shape_cast %138 : vector<1x1x64xf32> to vector<1x64xf32>
    %140 = vector.shape_cast %139 : vector<1x64xf32> to vector<1x1x64xf32>
    %141 = vector.broadcast %140 : vector<1x1x64xf32> to vector<8x8x64xf32>
    %142 = arith.mulf %137, %141 : vector<8x8x64xf32>
    %143 = arith.addf %136, %142 : vector<8x8x64xf32>
    %144 = vector.extract_strided_slice %129 {offsets = [2, 0, 0], sizes = [8, 8, 64], strides = [1, 1, 1]} : vector<10x8x64xf32> to vector<8x8x64xf32>
    %c1_82 = arith.constant 1 : index
    %c8_83 = arith.constant 8 : index
    %c0_84 = arith.constant 0 : index
    %145 = vector.load %arg2[%c1_82, %c8_83, %c0_84] : memref<6x9x128xf32, #tpu.memory_space<vmem>>, vector<1x1x64xf32>
    %146 = vector.shape_cast %145 : vector<1x1x64xf32> to vector<1x64xf32>
    %147 = vector.shape_cast %146 : vector<1x64xf32> to vector<1x1x64xf32>
    %148 = vector.broadcast %147 : vector<1x1x64xf32> to vector<8x8x64xf32>
    %149 = arith.mulf %144, %148 : vector<8x8x64xf32>
    %150 = arith.addf %143, %149 : vector<8x8x64xf32>
    %151 = vector.extract_strided_slice %150 {offsets = [0, 0, 0], sizes = [8, 8, 32], strides = [1, 1, 1]} : vector<8x8x64xf32> to vector<8x8x32xf32>
    %152 = vector.extract_strided_slice %150 {offsets = [0, 0, 32], sizes = [8, 8, 32], strides = [1, 1, 1]} : vector<8x8x64xf32> to vector<8x8x32xf32>
    %153 = arith.addf %151, %152 : vector<8x8x32xf32>
    %cst_85 = arith.constant 0.000000e+00 : f32
    %154 = vector.broadcast %cst_85 : f32 to vector<8x8x32xf32>
    %155 = arith.maximumf %153, %154 : vector<8x8x32xf32>
    %c1_86 = arith.constant 1 : index
    %c1_87 = arith.constant 1 : index
    %c0_88 = arith.constant 0 : index
    %156 = vector.load %arg6[%c1_86, %c1_87, %c0_88] : memref<10x10x128xf32, #tpu.memory_space<vmem>>, vector<8x8x32xf32>
    tpu.vector_store %arg6[%c1_86, %c1_87, %c0_88], %155 {strides = array<i32>} : memref<10x10x128xf32, #tpu.memory_space<vmem>>, vector<8x8x32xf32>,
    %c2_89 = arith.constant 2 : index
    %c0_90 = arith.constant 0 : index
    %157 = vector.load %arg4[%c2_89, %c0_90] : memref<7x128xf32, #tpu.memory_space<vmem>>, vector<1x32xf32>
    %158 = vector.shape_cast %157 : vector<1x32xf32> to vector<1x1x32xf32>
    %159 = vector.broadcast %158 : vector<1x1x32xf32> to vector<8x8x32xf32>
    %c0_91 = arith.constant 0 : index
    %c0_92 = arith.constant 0 : index
    %c0_93 = arith.constant 0 : index
    %160 = vector.load %arg6[%c0_91, %c0_92, %c0_93] : memref<10x10x128xf32, #tpu.memory_space<vmem>>, vector<10x8x32xf32>
    %161 = vector.extract_strided_slice %160 {offsets = [0, 0, 0], sizes = [8, 8, 32], strides = [1, 1, 1]} : vector<10x8x32xf32> to vector<8x8x32xf32>
    %c2_94 = arith.constant 2 : index
    %c0_95 = arith.constant 0 : index
    %c0_96 = arith.constant 0 : index
    %162 = vector.load %arg2[%c2_94, %c0_95, %c0_96] : memref<6x9x128xf32, #tpu.memory_space<vmem>>, vector<1x1x32xf32>
    %163 = vector.shape_cast %162 : vector<1x1x32xf32> to vector<1x32xf32>
    %164 = vector.shape_cast %163 : vector<1x32xf32> to vector<1x1x32xf32>
    %165 = vector.broadcast %164 : vector<1x1x32xf32> to vector<8x8x32xf32>
    %166 = arith.mulf %161, %165 : vector<8x8x32xf32>
    %167 = arith.addf %159, %166 : vector<8x8x32xf32>
    %168 = vector.extract_strided_slice %160 {offsets = [1, 0, 0], sizes = [8, 8, 32], strides = [1, 1, 1]} : vector<10x8x32xf32> to vector<8x8x32xf32>
    %c2_97 = arith.constant 2 : index
    %c3_98 = arith.constant 3 : index
    %c0_99 = arith.constant 0 : index
    %169 = vector.load %arg2[%c2_97, %c3_98, %c0_99] : memref<6x9x128xf32, #tpu.memory_space<vmem>>, vector<1x1x32xf32>
    %170 = vector.shape_cast %169 : vector<1x1x32xf32> to vector<1x32xf32>
    %171 = vector.shape_cast %170 : vector<1x32xf32> to vector<1x1x32xf32>
    %172 = vector.broadcast %171 : vector<1x1x32xf32> to vector<8x8x32xf32>
    %173 = arith.mulf %168, %172 : vector<8x8x32xf32>
    %174 = arith.addf %167, %173 : vector<8x8x32xf32>
    %175 = vector.extract_strided_slice %160 {offsets = [2, 0, 0], sizes = [8, 8, 32], strides = [1, 1, 1]} : vector<10x8x32xf32> to vector<8x8x32xf32>
    %c2_100 = arith.constant 2 : index
    %c6_101 = arith.constant 6 : index
    %c0_102 = arith.constant 0 : index
    %176 = vector.load %arg2[%c2_100, %c6_101, %c0_102] : memref<6x9x128xf32, #tpu.memory_space<vmem>>, vector<1x1x32xf32>
    %177 = vector.shape_cast %176 : vector<1x1x32xf32> to vector<1x32xf32>
    %178 = vector.shape_cast %177 : vector<1x32xf32> to vector<1x1x32xf32>
    %179 = vector.broadcast %178 : vector<1x1x32xf32> to vector<8x8x32xf32>
    %180 = arith.mulf %175, %179 : vector<8x8x32xf32>
    %181 = arith.addf %174, %180 : vector<8x8x32xf32>
    %c0_103 = arith.constant 0 : index
    %c1_104 = arith.constant 1 : index
    %c0_105 = arith.constant 0 : index
    %182 = vector.load %arg6[%c0_103, %c1_104, %c0_105] : memref<10x10x128xf32, #tpu.memory_space<vmem>>, vector<10x8x32xf32>
    %183 = vector.extract_strided_slice %182 {offsets = [0, 0, 0], sizes = [8, 8, 32], strides = [1, 1, 1]} : vector<10x8x32xf32> to vector<8x8x32xf32>
    %c2_106 = arith.constant 2 : index
    %c1_107 = arith.constant 1 : index
    %c0_108 = arith.constant 0 : index
    %184 = vector.load %arg2[%c2_106, %c1_107, %c0_108] : memref<6x9x128xf32, #tpu.memory_space<vmem>>, vector<1x1x32xf32>
    %185 = vector.shape_cast %184 : vector<1x1x32xf32> to vector<1x32xf32>
    %186 = vector.shape_cast %185 : vector<1x32xf32> to vector<1x1x32xf32>
    %187 = vector.broadcast %186 : vector<1x1x32xf32> to vector<8x8x32xf32>
    %188 = arith.mulf %183, %187 : vector<8x8x32xf32>
    %189 = arith.addf %181, %188 : vector<8x8x32xf32>
    %190 = vector.extract_strided_slice %182 {offsets = [1, 0, 0], sizes = [8, 8, 32], strides = [1, 1, 1]} : vector<10x8x32xf32> to vector<8x8x32xf32>
    %c2_109 = arith.constant 2 : index
    %c4_110 = arith.constant 4 : index
    %c0_111 = arith.constant 0 : index
    %191 = vector.load %arg2[%c2_109, %c4_110, %c0_111] : memref<6x9x128xf32, #tpu.memory_space<vmem>>, vector<1x1x32xf32>
    %192 = vector.shape_cast %191 : vector<1x1x32xf32> to vector<1x32xf32>
    %193 = vector.shape_cast %192 : vector<1x32xf32> to vector<1x1x32xf32>
    %194 = vector.broadcast %193 : vector<1x1x32xf32> to vector<8x8x32xf32>
    %195 = arith.mulf %190, %194 : vector<8x8x32xf32>
    %196 = arith.addf %189, %195 : vector<8x8x32xf32>
    %197 = vector.extract_strided_slice %182 {offsets = [2, 0, 0], sizes = [8, 8, 32], strides = [1, 1, 1]} : vector<10x8x32xf32> to vector<8x8x32xf32>
    %c2_112 = arith.constant 2 : index
    %c7_113 = arith.constant 7 : index
    %c0_114 = arith.constant 0 : index
    %198 = vector.load %arg2[%c2_112, %c7_113, %c0_114] : memref<6x9x128xf32, #tpu.memory_space<vmem>>, vector<1x1x32xf32>
    %199 = vector.shape_cast %198 : vector<1x1x32xf32> to vector<1x32xf32>
    %200 = vector.shape_cast %199 : vector<1x32xf32> to vector<1x1x32xf32>
    %201 = vector.broadcast %200 : vector<1x1x32xf32> to vector<8x8x32xf32>
    %202 = arith.mulf %197, %201 : vector<8x8x32xf32>
    %203 = arith.addf %196, %202 : vector<8x8x32xf32>
    %c0_115 = arith.constant 0 : index
    %c2_116 = arith.constant 2 : index
    %c0_117 = arith.constant 0 : index
    %204 = vector.load %arg6[%c0_115, %c2_116, %c0_117] : memref<10x10x128xf32, #tpu.memory_space<vmem>>, vector<10x8x32xf32>
    %205 = vector.extract_strided_slice %204 {offsets = [0, 0, 0], sizes = [8, 8, 32], strides = [1, 1, 1]} : vector<10x8x32xf32> to vector<8x8x32xf32>
    %c2_118 = arith.constant 2 : index
    %c2_119 = arith.constant 2 : index
    %c0_120 = arith.constant 0 : index
    %206 = vector.load %arg2[%c2_118, %c2_119, %c0_120] : memref<6x9x128xf32, #tpu.memory_space<vmem>>, vector<1x1x32xf32>
    %207 = vector.shape_cast %206 : vector<1x1x32xf32> to vector<1x32xf32>
    %208 = vector.shape_cast %207 : vector<1x32xf32> to vector<1x1x32xf32>
    %209 = vector.broadcast %208 : vector<1x1x32xf32> to vector<8x8x32xf32>
    %210 = arith.mulf %205, %209 : vector<8x8x32xf32>
    %211 = arith.addf %203, %210 : vector<8x8x32xf32>
    %212 = vector.extract_strided_slice %204 {offsets = [1, 0, 0], sizes = [8, 8, 32], strides = [1, 1, 1]} : vector<10x8x32xf32> to vector<8x8x32xf32>
    %c2_121 = arith.constant 2 : index
    %c5_122 = arith.constant 5 : index
    %c0_123 = arith.constant 0 : index
    %213 = vector.load %arg2[%c2_121, %c5_122, %c0_123] : memref<6x9x128xf32, #tpu.memory_space<vmem>>, vector<1x1x32xf32>
    %214 = vector.shape_cast %213 : vector<1x1x32xf32> to vector<1x32xf32>
    %215 = vector.shape_cast %214 : vector<1x32xf32> to vector<1x1x32xf32>
    %216 = vector.broadcast %215 : vector<1x1x32xf32> to vector<8x8x32xf32>
    %217 = arith.mulf %212, %216 : vector<8x8x32xf32>
    %218 = arith.addf %211, %217 : vector<8x8x32xf32>
    %219 = vector.extract_strided_slice %204 {offsets = [2, 0, 0], sizes = [8, 8, 32], strides = [1, 1, 1]} : vector<10x8x32xf32> to vector<8x8x32xf32>
    %c2_124 = arith.constant 2 : index
    %c8_125 = arith.constant 8 : index
    %c0_126 = arith.constant 0 : index
    %220 = vector.load %arg2[%c2_124, %c8_125, %c0_126] : memref<6x9x128xf32, #tpu.memory_space<vmem>>, vector<1x1x32xf32>
    %221 = vector.shape_cast %220 : vector<1x1x32xf32> to vector<1x32xf32>
    %222 = vector.shape_cast %221 : vector<1x32xf32> to vector<1x1x32xf32>
    %223 = vector.broadcast %222 : vector<1x1x32xf32> to vector<8x8x32xf32>
    %224 = arith.mulf %219, %223 : vector<8x8x32xf32>
    %225 = arith.addf %218, %224 : vector<8x8x32xf32>
    %226 = vector.extract_strided_slice %225 {offsets = [0, 0, 0], sizes = [8, 8, 16], strides = [1, 1, 1]} : vector<8x8x32xf32> to vector<8x8x16xf32>
    %227 = vector.extract_strided_slice %225 {offsets = [0, 0, 16], sizes = [8, 8, 16], strides = [1, 1, 1]} : vector<8x8x32xf32> to vector<8x8x16xf32>
    %228 = arith.addf %226, %227 : vector<8x8x16xf32>
    %cst_127 = arith.constant 0.000000e+00 : f32
    %229 = vector.broadcast %cst_127 : f32 to vector<8x8x16xf32>
    %230 = arith.maximumf %228, %229 : vector<8x8x16xf32>
    %c1_128 = arith.constant 1 : index
    %c1_129 = arith.constant 1 : index
    %c0_130 = arith.constant 0 : index
    %231 = vector.load %arg7[%c1_128, %c1_129, %c0_130] : memref<10x10x128xf32, #tpu.memory_space<vmem>>, vector<8x8x16xf32>
    tpu.vector_store %arg7[%c1_128, %c1_129, %c0_130], %230 {strides = array<i32>} : memref<10x10x128xf32, #tpu.memory_space<vmem>>, vector<8x8x16xf32>,
    %c3_131 = arith.constant 3 : index
    %c0_132 = arith.constant 0 : index
    %232 = vector.load %arg4[%c3_131, %c0_132] : memref<7x128xf32, #tpu.memory_space<vmem>>, vector<1x16xf32>
    %233 = vector.shape_cast %232 : vector<1x16xf32> to vector<1x1x16xf32>
    %234 = vector.broadcast %233 : vector<1x1x16xf32> to vector<8x8x16xf32>
    %c0_133 = arith.constant 0 : index
    %c0_134 = arith.constant 0 : index
    %c0_135 = arith.constant 0 : index
    %235 = vector.load %arg7[%c0_133, %c0_134, %c0_135] : memref<10x10x128xf32, #tpu.memory_space<vmem>>, vector<10x8x16xf32>
    %236 = vector.extract_strided_slice %235 {offsets = [0, 0, 0], sizes = [8, 8, 16], strides = [1, 1, 1]} : vector<10x8x16xf32> to vector<8x8x16xf32>
    %c3_136 = arith.constant 3 : index
    %c0_137 = arith.constant 0 : index
    %c0_138 = arith.constant 0 : index
    %237 = vector.load %arg2[%c3_136, %c0_137, %c0_138] : memref<6x9x128xf32, #tpu.memory_space<vmem>>, vector<1x1x16xf32>
    %238 = vector.shape_cast %237 : vector<1x1x16xf32> to vector<1x16xf32>
    %239 = vector.shape_cast %238 : vector<1x16xf32> to vector<1x1x16xf32>
    %240 = vector.broadcast %239 : vector<1x1x16xf32> to vector<8x8x16xf32>
    %241 = arith.mulf %236, %240 : vector<8x8x16xf32>
    %242 = arith.addf %234, %241 : vector<8x8x16xf32>
    %243 = vector.extract_strided_slice %235 {offsets = [1, 0, 0], sizes = [8, 8, 16], strides = [1, 1, 1]} : vector<10x8x16xf32> to vector<8x8x16xf32>
    %c3_139 = arith.constant 3 : index
    %c3_140 = arith.constant 3 : index
    %c0_141 = arith.constant 0 : index
    %244 = vector.load %arg2[%c3_139, %c3_140, %c0_141] : memref<6x9x128xf32, #tpu.memory_space<vmem>>, vector<1x1x16xf32>
    %245 = vector.shape_cast %244 : vector<1x1x16xf32> to vector<1x16xf32>
    %246 = vector.shape_cast %245 : vector<1x16xf32> to vector<1x1x16xf32>
    %247 = vector.broadcast %246 : vector<1x1x16xf32> to vector<8x8x16xf32>
    %248 = arith.mulf %243, %247 : vector<8x8x16xf32>
    %249 = arith.addf %242, %248 : vector<8x8x16xf32>
    %250 = vector.extract_strided_slice %235 {offsets = [2, 0, 0], sizes = [8, 8, 16], strides = [1, 1, 1]} : vector<10x8x16xf32> to vector<8x8x16xf32>
    %c3_142 = arith.constant 3 : index
    %c6_143 = arith.constant 6 : index
    %c0_144 = arith.constant 0 : index
    %251 = vector.load %arg2[%c3_142, %c6_143, %c0_144] : memref<6x9x128xf32, #tpu.memory_space<vmem>>, vector<1x1x16xf32>
    %252 = vector.shape_cast %251 : vector<1x1x16xf32> to vector<1x16xf32>
    %253 = vector.shape_cast %252 : vector<1x16xf32> to vector<1x1x16xf32>
    %254 = vector.broadcast %253 : vector<1x1x16xf32> to vector<8x8x16xf32>
    %255 = arith.mulf %250, %254 : vector<8x8x16xf32>
    %256 = arith.addf %249, %255 : vector<8x8x16xf32>
    %c0_145 = arith.constant 0 : index
    %c1_146 = arith.constant 1 : index
    %c0_147 = arith.constant 0 : index
    %257 = vector.load %arg7[%c0_145, %c1_146, %c0_147] : memref<10x10x128xf32, #tpu.memory_space<vmem>>, vector<10x8x16xf32>
    %258 = vector.extract_strided_slice %257 {offsets = [0, 0, 0], sizes = [8, 8, 16], strides = [1, 1, 1]} : vector<10x8x16xf32> to vector<8x8x16xf32>
    %c3_148 = arith.constant 3 : index
    %c1_149 = arith.constant 1 : index
    %c0_150 = arith.constant 0 : index
    %259 = vector.load %arg2[%c3_148, %c1_149, %c0_150] : memref<6x9x128xf32, #tpu.memory_space<vmem>>, vector<1x1x16xf32>
    %260 = vector.shape_cast %259 : vector<1x1x16xf32> to vector<1x16xf32>
    %261 = vector.shape_cast %260 : vector<1x16xf32> to vector<1x1x16xf32>
    %262 = vector.broadcast %261 : vector<1x1x16xf32> to vector<8x8x16xf32>
    %263 = arith.mulf %258, %262 : vector<8x8x16xf32>
    %264 = arith.addf %256, %263 : vector<8x8x16xf32>
    %265 = vector.extract_strided_slice %257 {offsets = [1, 0, 0], sizes = [8, 8, 16], strides = [1, 1, 1]} : vector<10x8x16xf32> to vector<8x8x16xf32>
    %c3_151 = arith.constant 3 : index
    %c4_152 = arith.constant 4 : index
    %c0_153 = arith.constant 0 : index
    %266 = vector.load %arg2[%c3_151, %c4_152, %c0_153] : memref<6x9x128xf32, #tpu.memory_space<vmem>>, vector<1x1x16xf32>
    %267 = vector.shape_cast %266 : vector<1x1x16xf32> to vector<1x16xf32>
    %268 = vector.shape_cast %267 : vector<1x16xf32> to vector<1x1x16xf32>
    %269 = vector.broadcast %268 : vector<1x1x16xf32> to vector<8x8x16xf32>
    %270 = arith.mulf %265, %269 : vector<8x8x16xf32>
    %271 = arith.addf %264, %270 : vector<8x8x16xf32>
    %272 = vector.extract_strided_slice %257 {offsets = [2, 0, 0], sizes = [8, 8, 16], strides = [1, 1, 1]} : vector<10x8x16xf32> to vector<8x8x16xf32>
    %c3_154 = arith.constant 3 : index
    %c7_155 = arith.constant 7 : index
    %c0_156 = arith.constant 0 : index
    %273 = vector.load %arg2[%c3_154, %c7_155, %c0_156] : memref<6x9x128xf32, #tpu.memory_space<vmem>>, vector<1x1x16xf32>
    %274 = vector.shape_cast %273 : vector<1x1x16xf32> to vector<1x16xf32>
    %275 = vector.shape_cast %274 : vector<1x16xf32> to vector<1x1x16xf32>
    %276 = vector.broadcast %275 : vector<1x1x16xf32> to vector<8x8x16xf32>
    %277 = arith.mulf %272, %276 : vector<8x8x16xf32>
    %278 = arith.addf %271, %277 : vector<8x8x16xf32>
    %c0_157 = arith.constant 0 : index
    %c2_158 = arith.constant 2 : index
    %c0_159 = arith.constant 0 : index
    %279 = vector.load %arg7[%c0_157, %c2_158, %c0_159] : memref<10x10x128xf32, #tpu.memory_space<vmem>>, vector<10x8x16xf32>
    %280 = vector.extract_strided_slice %279 {offsets = [0, 0, 0], sizes = [8, 8, 16], strides = [1, 1, 1]} : vector<10x8x16xf32> to vector<8x8x16xf32>
    %c3_160 = arith.constant 3 : index
    %c2_161 = arith.constant 2 : index
    %c0_162 = arith.constant 0 : index
    %281 = vector.load %arg2[%c3_160, %c2_161, %c0_162] : memref<6x9x128xf32, #tpu.memory_space<vmem>>, vector<1x1x16xf32>
    %282 = vector.shape_cast %281 : vector<1x1x16xf32> to vector<1x16xf32>
    %283 = vector.shape_cast %282 : vector<1x16xf32> to vector<1x1x16xf32>
    %284 = vector.broadcast %283 : vector<1x1x16xf32> to vector<8x8x16xf32>
    %285 = arith.mulf %280, %284 : vector<8x8x16xf32>
    %286 = arith.addf %278, %285 : vector<8x8x16xf32>
    %287 = vector.extract_strided_slice %279 {offsets = [1, 0, 0], sizes = [8, 8, 16], strides = [1, 1, 1]} : vector<10x8x16xf32> to vector<8x8x16xf32>
    %c3_163 = arith.constant 3 : index
    %c5_164 = arith.constant 5 : index
    %c0_165 = arith.constant 0 : index
    %288 = vector.load %arg2[%c3_163, %c5_164, %c0_165] : memref<6x9x128xf32, #tpu.memory_space<vmem>>, vector<1x1x16xf32>
    %289 = vector.shape_cast %288 : vector<1x1x16xf32> to vector<1x16xf32>
    %290 = vector.shape_cast %289 : vector<1x16xf32> to vector<1x1x16xf32>
    %291 = vector.broadcast %290 : vector<1x1x16xf32> to vector<8x8x16xf32>
    %292 = arith.mulf %287, %291 : vector<8x8x16xf32>
    %293 = arith.addf %286, %292 : vector<8x8x16xf32>
    %294 = vector.extract_strided_slice %279 {offsets = [2, 0, 0], sizes = [8, 8, 16], strides = [1, 1, 1]} : vector<10x8x16xf32> to vector<8x8x16xf32>
    %c3_166 = arith.constant 3 : index
    %c8_167 = arith.constant 8 : index
    %c0_168 = arith.constant 0 : index
    %295 = vector.load %arg2[%c3_166, %c8_167, %c0_168] : memref<6x9x128xf32, #tpu.memory_space<vmem>>, vector<1x1x16xf32>
    %296 = vector.shape_cast %295 : vector<1x1x16xf32> to vector<1x16xf32>
    %297 = vector.shape_cast %296 : vector<1x16xf32> to vector<1x1x16xf32>
    %298 = vector.broadcast %297 : vector<1x1x16xf32> to vector<8x8x16xf32>
    %299 = arith.mulf %294, %298 : vector<8x8x16xf32>
    %300 = arith.addf %293, %299 : vector<8x8x16xf32>
    %301 = vector.extract_strided_slice %300 {offsets = [0, 0, 0], sizes = [8, 8, 8], strides = [1, 1, 1]} : vector<8x8x16xf32> to vector<8x8x8xf32>
    %302 = vector.extract_strided_slice %300 {offsets = [0, 0, 8], sizes = [8, 8, 8], strides = [1, 1, 1]} : vector<8x8x16xf32> to vector<8x8x8xf32>
    %303 = arith.addf %301, %302 : vector<8x8x8xf32>
    %cst_169 = arith.constant 0.000000e+00 : f32
    %304 = vector.broadcast %cst_169 : f32 to vector<8x8x8xf32>
    %305 = arith.maximumf %303, %304 : vector<8x8x8xf32>
    %c1_170 = arith.constant 1 : index
    %c1_171 = arith.constant 1 : index
    %c0_172 = arith.constant 0 : index
    %306 = vector.load %arg6[%c1_170, %c1_171, %c0_172] : memref<10x10x128xf32, #tpu.memory_space<vmem>>, vector<8x8x8xf32>
    tpu.vector_store %arg6[%c1_170, %c1_171, %c0_172], %305 {strides = array<i32>} : memref<10x10x128xf32, #tpu.memory_space<vmem>>, vector<8x8x8xf32>,
    %c4_173 = arith.constant 4 : index
    %c0_174 = arith.constant 0 : index
    %307 = vector.load %arg4[%c4_173, %c0_174] : memref<7x128xf32, #tpu.memory_space<vmem>>, vector<1x8xf32>
    %308 = vector.shape_cast %307 : vector<1x8xf32> to vector<1x1x8xf32>
    %309 = vector.broadcast %308 : vector<1x1x8xf32> to vector<8x8x8xf32>
    %c0_175 = arith.constant 0 : index
    %c0_176 = arith.constant 0 : index
    %c0_177 = arith.constant 0 : index
    %310 = vector.load %arg6[%c0_175, %c0_176, %c0_177] : memref<10x10x128xf32, #tpu.memory_space<vmem>>, vector<10x8x8xf32>
    %311 = vector.extract_strided_slice %310 {offsets = [0, 0, 0], sizes = [8, 8, 8], strides = [1, 1, 1]} : vector<10x8x8xf32> to vector<8x8x8xf32>
    %c4_178 = arith.constant 4 : index
    %c0_179 = arith.constant 0 : index
    %c0_180 = arith.constant 0 : index
    %312 = vector.load %arg2[%c4_178, %c0_179, %c0_180] : memref<6x9x128xf32, #tpu.memory_space<vmem>>, vector<1x1x8xf32>
    %313 = vector.shape_cast %312 : vector<1x1x8xf32> to vector<1x8xf32>
    %314 = vector.shape_cast %313 : vector<1x8xf32> to vector<1x1x8xf32>
    %315 = vector.broadcast %314 : vector<1x1x8xf32> to vector<8x8x8xf32>
    %316 = arith.mulf %311, %315 : vector<8x8x8xf32>
    %317 = arith.addf %309, %316 : vector<8x8x8xf32>
    %318 = vector.extract_strided_slice %310 {offsets = [1, 0, 0], sizes = [8, 8, 8], strides = [1, 1, 1]} : vector<10x8x8xf32> to vector<8x8x8xf32>
    %c4_181 = arith.constant 4 : index
    %c3_182 = arith.constant 3 : index
    %c0_183 = arith.constant 0 : index
    %319 = vector.load %arg2[%c4_181, %c3_182, %c0_183] : memref<6x9x128xf32, #tpu.memory_space<vmem>>, vector<1x1x8xf32>
    %320 = vector.shape_cast %319 : vector<1x1x8xf32> to vector<1x8xf32>
    %321 = vector.shape_cast %320 : vector<1x8xf32> to vector<1x1x8xf32>
    %322 = vector.broadcast %321 : vector<1x1x8xf32> to vector<8x8x8xf32>
    %323 = arith.mulf %318, %322 : vector<8x8x8xf32>
    %324 = arith.addf %317, %323 : vector<8x8x8xf32>
    %325 = vector.extract_strided_slice %310 {offsets = [2, 0, 0], sizes = [8, 8, 8], strides = [1, 1, 1]} : vector<10x8x8xf32> to vector<8x8x8xf32>
    %c4_184 = arith.constant 4 : index
    %c6_185 = arith.constant 6 : index
    %c0_186 = arith.constant 0 : index
    %326 = vector.load %arg2[%c4_184, %c6_185, %c0_186] : memref<6x9x128xf32, #tpu.memory_space<vmem>>, vector<1x1x8xf32>
    %327 = vector.shape_cast %326 : vector<1x1x8xf32> to vector<1x8xf32>
    %328 = vector.shape_cast %327 : vector<1x8xf32> to vector<1x1x8xf32>
    %329 = vector.broadcast %328 : vector<1x1x8xf32> to vector<8x8x8xf32>
    %330 = arith.mulf %325, %329 : vector<8x8x8xf32>
    %331 = arith.addf %324, %330 : vector<8x8x8xf32>
    %c0_187 = arith.constant 0 : index
    %c1_188 = arith.constant 1 : index
    %c0_189 = arith.constant 0 : index
    %332 = vector.load %arg6[%c0_187, %c1_188, %c0_189] : memref<10x10x128xf32, #tpu.memory_space<vmem>>, vector<10x8x8xf32>
    %333 = vector.extract_strided_slice %332 {offsets = [0, 0, 0], sizes = [8, 8, 8], strides = [1, 1, 1]} : vector<10x8x8xf32> to vector<8x8x8xf32>
    %c4_190 = arith.constant 4 : index
    %c1_191 = arith.constant 1 : index
    %c0_192 = arith.constant 0 : index
    %334 = vector.load %arg2[%c4_190, %c1_191, %c0_192] : memref<6x9x128xf32, #tpu.memory_space<vmem>>, vector<1x1x8xf32>
    %335 = vector.shape_cast %334 : vector<1x1x8xf32> to vector<1x8xf32>
    %336 = vector.shape_cast %335 : vector<1x8xf32> to vector<1x1x8xf32>
    %337 = vector.broadcast %336 : vector<1x1x8xf32> to vector<8x8x8xf32>
    %338 = arith.mulf %333, %337 : vector<8x8x8xf32>
    %339 = arith.addf %331, %338 : vector<8x8x8xf32>
    %340 = vector.extract_strided_slice %332 {offsets = [1, 0, 0], sizes = [8, 8, 8], strides = [1, 1, 1]} : vector<10x8x8xf32> to vector<8x8x8xf32>
    %c4_193 = arith.constant 4 : index
    %c4_194 = arith.constant 4 : index
    %c0_195 = arith.constant 0 : index
    %341 = vector.load %arg2[%c4_193, %c4_194, %c0_195] : memref<6x9x128xf32, #tpu.memory_space<vmem>>, vector<1x1x8xf32>
    %342 = vector.shape_cast %341 : vector<1x1x8xf32> to vector<1x8xf32>
    %343 = vector.shape_cast %342 : vector<1x8xf32> to vector<1x1x8xf32>
    %344 = vector.broadcast %343 : vector<1x1x8xf32> to vector<8x8x8xf32>
    %345 = arith.mulf %340, %344 : vector<8x8x8xf32>
    %346 = arith.addf %339, %345 : vector<8x8x8xf32>
    %347 = vector.extract_strided_slice %332 {offsets = [2, 0, 0], sizes = [8, 8, 8], strides = [1, 1, 1]} : vector<10x8x8xf32> to vector<8x8x8xf32>
    %c4_196 = arith.constant 4 : index
    %c7_197 = arith.constant 7 : index
    %c0_198 = arith.constant 0 : index
    %348 = vector.load %arg2[%c4_196, %c7_197, %c0_198] : memref<6x9x128xf32, #tpu.memory_space<vmem>>, vector<1x1x8xf32>
    %349 = vector.shape_cast %348 : vector<1x1x8xf32> to vector<1x8xf32>
    %350 = vector.shape_cast %349 : vector<1x8xf32> to vector<1x1x8xf32>
    %351 = vector.broadcast %350 : vector<1x1x8xf32> to vector<8x8x8xf32>
    %352 = arith.mulf %347, %351 : vector<8x8x8xf32>
    %353 = arith.addf %346, %352 : vector<8x8x8xf32>
    %c0_199 = arith.constant 0 : index
    %c2_200 = arith.constant 2 : index
    %c0_201 = arith.constant 0 : index
    %354 = vector.load %arg6[%c0_199, %c2_200, %c0_201] : memref<10x10x128xf32, #tpu.memory_space<vmem>>, vector<10x8x8xf32>
    %355 = vector.extract_strided_slice %354 {offsets = [0, 0, 0], sizes = [8, 8, 8], strides = [1, 1, 1]} : vector<10x8x8xf32> to vector<8x8x8xf32>
    %c4_202 = arith.constant 4 : index
    %c2_203 = arith.constant 2 : index
    %c0_204 = arith.constant 0 : index
    %356 = vector.load %arg2[%c4_202, %c2_203, %c0_204] : memref<6x9x128xf32, #tpu.memory_space<vmem>>, vector<1x1x8xf32>
    %357 = vector.shape_cast %356 : vector<1x1x8xf32> to vector<1x8xf32>
    %358 = vector.shape_cast %357 : vector<1x8xf32> to vector<1x1x8xf32>
    %359 = vector.broadcast %358 : vector<1x1x8xf32> to vector<8x8x8xf32>
    %360 = arith.mulf %355, %359 : vector<8x8x8xf32>
    %361 = arith.addf %353, %360 : vector<8x8x8xf32>
    %362 = vector.extract_strided_slice %354 {offsets = [1, 0, 0], sizes = [8, 8, 8], strides = [1, 1, 1]} : vector<10x8x8xf32> to vector<8x8x8xf32>
    %c4_205 = arith.constant 4 : index
    %c5_206 = arith.constant 5 : index
    %c0_207 = arith.constant 0 : index
    %363 = vector.load %arg2[%c4_205, %c5_206, %c0_207] : memref<6x9x128xf32, #tpu.memory_space<vmem>>, vector<1x1x8xf32>
    %364 = vector.shape_cast %363 : vector<1x1x8xf32> to vector<1x8xf32>
    %365 = vector.shape_cast %364 : vector<1x8xf32> to vector<1x1x8xf32>
    %366 = vector.broadcast %365 : vector<1x1x8xf32> to vector<8x8x8xf32>
    %367 = arith.mulf %362, %366 : vector<8x8x8xf32>
    %368 = arith.addf %361, %367 : vector<8x8x8xf32>
    %369 = vector.extract_strided_slice %354 {offsets = [2, 0, 0], sizes = [8, 8, 8], strides = [1, 1, 1]} : vector<10x8x8xf32> to vector<8x8x8xf32>
    %c4_208 = arith.constant 4 : index
    %c8_209 = arith.constant 8 : index
    %c0_210 = arith.constant 0 : index
    %370 = vector.load %arg2[%c4_208, %c8_209, %c0_210] : memref<6x9x128xf32, #tpu.memory_space<vmem>>, vector<1x1x8xf32>
    %371 = vector.shape_cast %370 : vector<1x1x8xf32> to vector<1x8xf32>
    %372 = vector.shape_cast %371 : vector<1x8xf32> to vector<1x1x8xf32>
    %373 = vector.broadcast %372 : vector<1x1x8xf32> to vector<8x8x8xf32>
    %374 = arith.mulf %369, %373 : vector<8x8x8xf32>
    %375 = arith.addf %368, %374 : vector<8x8x8xf32>
    %376 = vector.extract_strided_slice %375 {offsets = [0, 0, 0], sizes = [8, 8, 4], strides = [1, 1, 1]} : vector<8x8x8xf32> to vector<8x8x4xf32>
    %377 = vector.extract_strided_slice %375 {offsets = [0, 0, 4], sizes = [8, 8, 4], strides = [1, 1, 1]} : vector<8x8x8xf32> to vector<8x8x4xf32>
    %378 = arith.addf %376, %377 : vector<8x8x4xf32>
    %cst_211 = arith.constant 0.000000e+00 : f32
    %379 = vector.broadcast %cst_211 : f32 to vector<8x8x4xf32>
    %380 = arith.maximumf %378, %379 : vector<8x8x4xf32>
    %c1_212 = arith.constant 1 : index
    %c1_213 = arith.constant 1 : index
    %c0_214 = arith.constant 0 : index
    %381 = vector.load %arg7[%c1_212, %c1_213, %c0_214] : memref<10x10x128xf32, #tpu.memory_space<vmem>>, vector<8x8x4xf32>
    tpu.vector_store %arg7[%c1_212, %c1_213, %c0_214], %380 {strides = array<i32>} : memref<10x10x128xf32, #tpu.memory_space<vmem>>, vector<8x8x4xf32>,
    %c5_215 = arith.constant 5 : index
    %c0_216 = arith.constant 0 : index
    %382 = vector.load %arg4[%c5_215, %c0_216] : memref<7x128xf32, #tpu.memory_space<vmem>>, vector<1x4xf32>
    %383 = vector.shape_cast %382 : vector<1x4xf32> to vector<1x1x4xf32>
    %384 = vector.broadcast %383 : vector<1x1x4xf32> to vector<8x8x4xf32>
    %c0_217 = arith.constant 0 : index
    %c0_218 = arith.constant 0 : index
    %c0_219 = arith.constant 0 : index
    %385 = vector.load %arg7[%c0_217, %c0_218, %c0_219] : memref<10x10x128xf32, #tpu.memory_space<vmem>>, vector<10x8x4xf32>
    %386 = vector.extract_strided_slice %385 {offsets = [0, 0, 0], sizes = [8, 8, 4], strides = [1, 1, 1]} : vector<10x8x4xf32> to vector<8x8x4xf32>
    %c5_220 = arith.constant 5 : index
    %c0_221 = arith.constant 0 : index
    %c0_222 = arith.constant 0 : index
    %387 = vector.load %arg2[%c5_220, %c0_221, %c0_222] : memref<6x9x128xf32, #tpu.memory_space<vmem>>, vector<1x1x4xf32>
    %388 = vector.shape_cast %387 : vector<1x1x4xf32> to vector<1x4xf32>
    %389 = vector.shape_cast %388 : vector<1x4xf32> to vector<1x1x4xf32>
    %390 = vector.broadcast %389 : vector<1x1x4xf32> to vector<8x8x4xf32>
    %391 = arith.mulf %386, %390 : vector<8x8x4xf32>
    %392 = arith.addf %384, %391 : vector<8x8x4xf32>
    %393 = vector.extract_strided_slice %385 {offsets = [1, 0, 0], sizes = [8, 8, 4], strides = [1, 1, 1]} : vector<10x8x4xf32> to vector<8x8x4xf32>
    %c5_223 = arith.constant 5 : index
    %c3_224 = arith.constant 3 : index
    %c0_225 = arith.constant 0 : index
    %394 = vector.load %arg2[%c5_223, %c3_224, %c0_225] : memref<6x9x128xf32, #tpu.memory_space<vmem>>, vector<1x1x4xf32>
    %395 = vector.shape_cast %394 : vector<1x1x4xf32> to vector<1x4xf32>
    %396 = vector.shape_cast %395 : vector<1x4xf32> to vector<1x1x4xf32>
    %397 = vector.broadcast %396 : vector<1x1x4xf32> to vector<8x8x4xf32>
    %398 = arith.mulf %393, %397 : vector<8x8x4xf32>
    %399 = arith.addf %392, %398 : vector<8x8x4xf32>
    %400 = vector.extract_strided_slice %385 {offsets = [2, 0, 0], sizes = [8, 8, 4], strides = [1, 1, 1]} : vector<10x8x4xf32> to vector<8x8x4xf32>
    %c5_226 = arith.constant 5 : index
    %c6_227 = arith.constant 6 : index
    %c0_228 = arith.constant 0 : index
    %401 = vector.load %arg2[%c5_226, %c6_227, %c0_228] : memref<6x9x128xf32, #tpu.memory_space<vmem>>, vector<1x1x4xf32>
    %402 = vector.shape_cast %401 : vector<1x1x4xf32> to vector<1x4xf32>
    %403 = vector.shape_cast %402 : vector<1x4xf32> to vector<1x1x4xf32>
    %404 = vector.broadcast %403 : vector<1x1x4xf32> to vector<8x8x4xf32>
    %405 = arith.mulf %400, %404 : vector<8x8x4xf32>
    %406 = arith.addf %399, %405 : vector<8x8x4xf32>
    %c0_229 = arith.constant 0 : index
    %c1_230 = arith.constant 1 : index
    %c0_231 = arith.constant 0 : index
    %407 = vector.load %arg7[%c0_229, %c1_230, %c0_231] : memref<10x10x128xf32, #tpu.memory_space<vmem>>, vector<10x8x4xf32>
    %408 = vector.extract_strided_slice %407 {offsets = [0, 0, 0], sizes = [8, 8, 4], strides = [1, 1, 1]} : vector<10x8x4xf32> to vector<8x8x4xf32>
    %c5_232 = arith.constant 5 : index
    %c1_233 = arith.constant 1 : index
    %c0_234 = arith.constant 0 : index
    %409 = vector.load %arg2[%c5_232, %c1_233, %c0_234] : memref<6x9x128xf32, #tpu.memory_space<vmem>>, vector<1x1x4xf32>
    %410 = vector.shape_cast %409 : vector<1x1x4xf32> to vector<1x4xf32>
    %411 = vector.shape_cast %410 : vector<1x4xf32> to vector<1x1x4xf32>
    %412 = vector.broadcast %411 : vector<1x1x4xf32> to vector<8x8x4xf32>
    %413 = arith.mulf %408, %412 : vector<8x8x4xf32>
    %414 = arith.addf %406, %413 : vector<8x8x4xf32>
    %415 = vector.extract_strided_slice %407 {offsets = [1, 0, 0], sizes = [8, 8, 4], strides = [1, 1, 1]} : vector<10x8x4xf32> to vector<8x8x4xf32>
    %c5_235 = arith.constant 5 : index
    %c4_236 = arith.constant 4 : index
    %c0_237 = arith.constant 0 : index
    %416 = vector.load %arg2[%c5_235, %c4_236, %c0_237] : memref<6x9x128xf32, #tpu.memory_space<vmem>>, vector<1x1x4xf32>
    %417 = vector.shape_cast %416 : vector<1x1x4xf32> to vector<1x4xf32>
    %418 = vector.shape_cast %417 : vector<1x4xf32> to vector<1x1x4xf32>
    %419 = vector.broadcast %418 : vector<1x1x4xf32> to vector<8x8x4xf32>
    %420 = arith.mulf %415, %419 : vector<8x8x4xf32>
    %421 = arith.addf %414, %420 : vector<8x8x4xf32>
    %422 = vector.extract_strided_slice %407 {offsets = [2, 0, 0], sizes = [8, 8, 4], strides = [1, 1, 1]} : vector<10x8x4xf32> to vector<8x8x4xf32>
    %c5_238 = arith.constant 5 : index
    %c7_239 = arith.constant 7 : index
    %c0_240 = arith.constant 0 : index
    %423 = vector.load %arg2[%c5_238, %c7_239, %c0_240] : memref<6x9x128xf32, #tpu.memory_space<vmem>>, vector<1x1x4xf32>
    %424 = vector.shape_cast %423 : vector<1x1x4xf32> to vector<1x4xf32>
    %425 = vector.shape_cast %424 : vector<1x4xf32> to vector<1x1x4xf32>
    %426 = vector.broadcast %425 : vector<1x1x4xf32> to vector<8x8x4xf32>
    %427 = arith.mulf %422, %426 : vector<8x8x4xf32>
    %428 = arith.addf %421, %427 : vector<8x8x4xf32>
    %c0_241 = arith.constant 0 : index
    %c2_242 = arith.constant 2 : index
    %c0_243 = arith.constant 0 : index
    %429 = vector.load %arg7[%c0_241, %c2_242, %c0_243] : memref<10x10x128xf32, #tpu.memory_space<vmem>>, vector<10x8x4xf32>
    %430 = vector.extract_strided_slice %429 {offsets = [0, 0, 0], sizes = [8, 8, 4], strides = [1, 1, 1]} : vector<10x8x4xf32> to vector<8x8x4xf32>
    %c5_244 = arith.constant 5 : index
    %c2_245 = arith.constant 2 : index
    %c0_246 = arith.constant 0 : index
    %431 = vector.load %arg2[%c5_244, %c2_245, %c0_246] : memref<6x9x128xf32, #tpu.memory_space<vmem>>, vector<1x1x4xf32>
    %432 = vector.shape_cast %431 : vector<1x1x4xf32> to vector<1x4xf32>
    %433 = vector.shape_cast %432 : vector<1x4xf32> to vector<1x1x4xf32>
    %434 = vector.broadcast %433 : vector<1x1x4xf32> to vector<8x8x4xf32>
    %435 = arith.mulf %430, %434 : vector<8x8x4xf32>
    %436 = arith.addf %428, %435 : vector<8x8x4xf32>
    %437 = vector.extract_strided_slice %429 {offsets = [1, 0, 0], sizes = [8, 8, 4], strides = [1, 1, 1]} : vector<10x8x4xf32> to vector<8x8x4xf32>
    %c5_247 = arith.constant 5 : index
    %c5_248 = arith.constant 5 : index
    %c0_249 = arith.constant 0 : index
    %438 = vector.load %arg2[%c5_247, %c5_248, %c0_249] : memref<6x9x128xf32, #tpu.memory_space<vmem>>, vector<1x1x4xf32>
    %439 = vector.shape_cast %438 : vector<1x1x4xf32> to vector<1x4xf32>
    %440 = vector.shape_cast %439 : vector<1x4xf32> to vector<1x1x4xf32>
    %441 = vector.broadcast %440 : vector<1x1x4xf32> to vector<8x8x4xf32>
    %442 = arith.mulf %437, %441 : vector<8x8x4xf32>
    %443 = arith.addf %436, %442 : vector<8x8x4xf32>
    %444 = vector.extract_strided_slice %429 {offsets = [2, 0, 0], sizes = [8, 8, 4], strides = [1, 1, 1]} : vector<10x8x4xf32> to vector<8x8x4xf32>
    %c5_250 = arith.constant 5 : index
    %c8_251 = arith.constant 8 : index
    %c0_252 = arith.constant 0 : index
    %445 = vector.load %arg2[%c5_250, %c8_251, %c0_252] : memref<6x9x128xf32, #tpu.memory_space<vmem>>, vector<1x1x4xf32>
    %446 = vector.shape_cast %445 : vector<1x1x4xf32> to vector<1x4xf32>
    %447 = vector.shape_cast %446 : vector<1x4xf32> to vector<1x1x4xf32>
    %448 = vector.broadcast %447 : vector<1x1x4xf32> to vector<8x8x4xf32>
    %449 = arith.mulf %444, %448 : vector<8x8x4xf32>
    %450 = arith.addf %443, %449 : vector<8x8x4xf32>
    %451 = vector.extract_strided_slice %450 {offsets = [0, 0, 0], sizes = [8, 8, 2], strides = [1, 1, 1]} : vector<8x8x4xf32> to vector<8x8x2xf32>
    %452 = vector.extract_strided_slice %450 {offsets = [0, 0, 2], sizes = [8, 8, 2], strides = [1, 1, 1]} : vector<8x8x4xf32> to vector<8x8x2xf32>
    %453 = arith.addf %451, %452 : vector<8x8x2xf32>
    %cst_253 = arith.constant 0.000000e+00 : f32
    %454 = vector.broadcast %cst_253 : f32 to vector<8x8x2xf32>
    %455 = arith.maximumf %453, %454 : vector<8x8x2xf32>
    %c6_254 = arith.constant 6 : index
    %c0_255 = arith.constant 0 : index
    %456 = vector.load %arg4[%c6_254, %c0_255] : memref<7x128xf32, #tpu.memory_space<vmem>>, vector<1x128xf32>
    %457 = vector.shape_cast %456 : vector<1x128xf32> to vector<1x1x128xf32>
    %458 = vector.broadcast %457 : vector<1x1x128xf32> to vector<8x8x128xf32>
    %459 = vector.extract_strided_slice %455 {offsets = [0, 0, 0], sizes = [8, 8, 1], strides = [1, 1, 1]} : vector<8x8x2xf32> to vector<8x8x1xf32>
    %c0_256 = arith.constant 0 : index
    %c0_257 = arith.constant 0 : index
    %460 = vector.load %arg3[%c0_256, %c0_257] : memref<2x128xf32, #tpu.memory_space<vmem>>, vector<1x128xf32>
    %461 = vector.shape_cast %460 : vector<1x128xf32> to vector<1x1x128xf32>
    %462 = vector.broadcast %459 : vector<8x8x1xf32> to vector<8x8x128xf32>
    %463 = vector.broadcast %461 : vector<1x1x128xf32> to vector<8x8x128xf32>
    %464 = arith.mulf %462, %463 : vector<8x8x128xf32>
    %465 = arith.addf %458, %464 : vector<8x8x128xf32>
    %466 = vector.extract_strided_slice %455 {offsets = [0, 0, 1], sizes = [8, 8, 1], strides = [1, 1, 1]} : vector<8x8x2xf32> to vector<8x8x1xf32>
    %c1_258 = arith.constant 1 : index
    %c0_259 = arith.constant 0 : index
    %467 = vector.load %arg3[%c1_258, %c0_259] : memref<2x128xf32, #tpu.memory_space<vmem>>, vector<1x128xf32>
    %468 = vector.shape_cast %467 : vector<1x128xf32> to vector<1x1x128xf32>
    %469 = vector.broadcast %466 : vector<8x8x1xf32> to vector<8x8x128xf32>
    %470 = vector.broadcast %468 : vector<1x1x128xf32> to vector<8x8x128xf32>
    %471 = arith.mulf %469, %470 : vector<8x8x128xf32>
    %472 = arith.addf %465, %471 : vector<8x8x128xf32>
    %cst_260 = arith.constant 0.000000e+00 : f32
    %473 = vector.broadcast %cst_260 : f32 to vector<8x8x128xf32>
    %474 = arith.maximumf %472, %473 : vector<8x8x128xf32>
    %c0_261 = arith.constant 0 : index
    %c0_262 = arith.constant 0 : index
    %c0_263 = arith.constant 0 : index
    %c0_264 = arith.constant 0 : index
    %475 = vector.load %arg5[%c0_261, %c0_262, %c0_263, %c0_264] : memref<1x8x8x128xf32, #tpu.memory_space<vmem>>, vector<1x8x8x128xf32>
    %476 = vector.shape_cast %475 : vector<1x8x8x128xf32> to vector<8x8x128xf32>
    %477 = vector.shape_cast %474 : vector<8x8x128xf32> to vector<1x8x8x128xf32>
    tpu.vector_store %arg5[%c0_261, %c0_262, %c0_263, %c0_264], %477 {strides = array<i32>} : memref<1x8x8x128xf32, #tpu.memory_space<vmem>>, vector<1x8x8x128xf32>,
    return
  }
  func.func @transform_0(%arg0: i32) -> (i32, i32, i32, i32) {
    %c0_i32 = arith.constant 0 : i32
    %c0_i32_0 = arith.constant 0 : i32
    %c0_i32_1 = arith.constant 0 : i32
    %c0_i32_2 = arith.constant 0 : i32
    return %arg0, %c0_i32, %c0_i32_0, %c0_i32_1 : i32, i32, i32, i32
  }
  func.func @transform_1(%arg0: i32) -> (i32, i32, i32) {
    %c0_i32 = arith.constant 0 : i32
    %c0_i32_0 = arith.constant 0 : i32
    %c0_i32_1 = arith.constant 0 : i32
    %c0_i32_2 = arith.constant 0 : i32
    return %c0_i32, %c0_i32_0, %c0_i32_1 : i32, i32, i32
  }
  func.func @transform_2(%arg0: i32) -> (i32, i32) {
    %c0_i32 = arith.constant 0 : i32
    %c0_i32_0 = arith.constant 0 : i32
    %c0_i32_1 = arith.constant 0 : i32
    return %c0_i32, %c0_i32_0 : i32, i32
  }
  func.func @transform_3(%arg0: i32) -> (i32, i32) {
    %c0_i32 = arith.constant 0 : i32
    %c0_i32_0 = arith.constant 0 : i32
    %c0_i32_1 = arith.constant 0 : i32
    return %c0_i32, %c0_i32_0 : i32, i32
  }
  func.func @transform_4(%arg0: i32) -> (i32, i32, i32, i32) {
    %c0_i32 = arith.constant 0 : i32
    %c0_i32_0 = arith.constant 0 : i32
    %c0_i32_1 = arith.constant 0 : i32
    %c0_i32_2 = arith.constant 0 : i32
    return %arg0, %c0_i32, %c0_i32_0, %c0_i32_1 : i32, i32, i32, i32
  }
}

</mosaic_0001>

<llo_original>
// kernel: neat_block_forward.1
$region0: #{neat_block_forward.1}
  #allocation0 [shape = 'u32[]', space=smem, size = 0x4, offset = 0x4, fixed_abs, tag = 'smem constant byte address 0x4 - core index']
  #allocation1 [shape = 'u32[144,128]{1,0:T(1,128)}', space=vmem, size = 0x12000, scoped, tag = 'internal scratch']
  #allocation2 [shape = 'f32[10,10,128]{2,1,0:T(8,128)}', space=vmem, size = 0x14000, scoped, tag = 'scratch operand']
  #allocation3 [shape = 'f32[10,10,128]{2,1,0:T(8,128)}', space=vmem, size = 0x14000, scoped, tag = 'scratch operand']
  %s0 = inlined_call_operand.vmem [shape: f32[2,8,8,128], index: 0, kind: input, shape index: {}]
  %s1 = inlined_call_operand.vmem [shape: f32[6,9,128], index: 1, kind: input, shape index: {}]
  %s2 = inlined_call_operand.vmem [shape: f32[2,128], index: 2, kind: input, shape index: {}]
  %s3 = inlined_call_operand.vmem [shape: f32[7,128], index: 3, kind: input, shape index: {}]
  %s4 = inlined_call_operand.hbm [shape: f32[2,8,8,128], index: 4, kind: output, shape index: {}]
  %s5 = sld [smem:[#allocation0]]
  $region49: #{neat_block_forward.1} parent=0
    _
  %s7 = ssub.s32 1, %s5
  %s8 = scalar_select 0, %s7, %s5
  $region1: #{neat_block_forward.1} parent=0
    #allocation4 [shape = 'u8[65536]{0}', space=vmem, size = 0x10000, scoped, tag = 'output window, operand 0']
    #allocation5 [shape = 's32[2]{0}', space=sflag, size = 0x8, scoped, tag = 'scoped memory for neat_block_forward.1']
    %9 = vsyncpa [#allocation5], 0
    %s10 = scalar_lea.sflag [#allocation5], 1
    %11 = vsyncpa %s10, 0
    loop: start=0, step=1, limit=4
    $region2: #{neat_block_forward.1} parent=1 // loop_pre_header
      _
    $region3: #{neat_block_forward.1} parent=1 // loop_header
      %s13 = sphi 0, %s17
      %p14 = scmp.ge.s32.totalorder %s13, 4
      %s23 = sphi 0, %s25
      %s26 = sphi 0, %s23
      %s27 = sphi 0, %s26
      %s43 = sphi 0, %s27
      %s47 = sphi 0, %s47
      %s49 = sphi 0, %s47
      %s50 = sphi 0, %s49
      %s64 = sphi 0, %s50
      %s68 = sphi 0, %s68
      %s70 = sphi 0, %s68
      %s71 = sphi 0, %s70
      %s85 = sphi 0, %s71
      %s89 = sphi 0, %s89
      %s91 = sphi 0, %s89
      %s92 = sphi 0, %s91
      %s106 = sphi 0, %s92
      %s112 = sphi 0, %s114
      %s115 = sphi 0, %s112
      %s116 = sphi 0, %s115
      %s132 = sphi 0, %s116
    $region4: #{neat_block_forward.1} parent=1 // loop_header_branch
      %16 = sbr.rel (%p14) target = $region8
    $region5: #{neat_block_forward.1} parent=1 // loop_body
      %s18 = ssub.s32 %s13, 1
      %s19 = ssub.s32 %s13, 2
      %s20 = sadd.s32 %s13, 1
      %s21 = ssub.s32 %s13, %s20
      %p22 = scmp.eq.s32.totalorder %s21, 0
      %s24 = sadd.s32 %s23, 1
      %s25 = scalar_select %p22, %s23, %s24
      %p28 = pneg %p22
      %p29 = scmp.eq.s32.totalorder %s13, 1
      %p30 = por %p28, %p29
      %p31 = scmp.ne.s32.totalorder %s23, %s26
      %p32 = scmp.eq.s32.totalorder %s13, 0
      %p33 = por %p31, %p32
      %p34 = scmp.ne.s32.totalorder %s23, %s26
      %p35 = scmp.eq.s32.totalorder %s18, 1
      %p36 = por %p34, %p35
      %p37 = scmp.ne.s32.totalorder %s26, %s27
      %p38 = scmp.eq.s32.totalorder %s18, 0
      %p39 = por %p37, %p38
      %p40 = scmp.ne.s32.totalorder %s26, %s27
      %p41 = scmp.eq.s32.totalorder %s19, 1
      %p42 = por %p40, %p41
      %p44 = scmp.ne.s32.totalorder %s27, %s43
      %p45 = scmp.eq.s32.totalorder %s19, 0
      %p46 = por %p44, %p45
      %s48 = sadd.s32 %s47, 1
      %p51 = scmp.eq.s32.totalorder %s13, 1
      %p52 = scmp.ne.s32.totalorder %s47, %s49
      %p53 = scmp.eq.s32.totalorder %s13, 0
      %p54 = por %p52, %p53
      %p55 = scmp.ne.s32.totalorder %s47, %s49
      %p56 = scmp.eq.s32.totalorder %s18, 1
      %p57 = por %p55, %p56
      %p58 = scmp.ne.s32.totalorder %s49, %s50
      %p59 = scmp.eq.s32.totalorder %s18, 0
      %p60 = por %p58, %p59
      %p61 = scmp.ne.s32.totalorder %s49, %s50
      %p62 = scmp.eq.s32.totalorder %s19, 1
      %p63 = por %p61, %p62
      %p65 = scmp.ne.s32.totalorder %s50, %s64
      %p66 = scmp.eq.s32.totalorder %s19, 0
      %p67 = por %p65, %p66
      %s69 = sadd.s32 %s68, 1
      %p72 = scmp.eq.s32.totalorder %s13, 1
      %p73 = scmp.ne.s32.totalorder %s68, %s70
      %p74 = scmp.eq.s32.totalorder %s13, 0
      %p75 = por %p73, %p74
      %p76 = scmp.ne.s32.totalorder %s68, %s70
      %p77 = scmp.eq.s32.totalorder %s18, 1
      %p78 = por %p76, %p77
      %p79 = scmp.ne.s32.totalorder %s70, %s71
      %p80 = scmp.eq.s32.totalorder %s18, 0
      %p81 = por %p79, %p80
      %p82 = scmp.ne.s32.totalorder %s70, %s71
      %p83 = scmp.eq.s32.totalorder %s19, 1
      %p84 = por %p82, %p83
      %p86 = scmp.ne.s32.totalorder %s71, %s85
      %p87 = scmp.eq.s32.totalorder %s19, 0
      %p88 = por %p86, %p87
      %s90 = sadd.s32 %s89, 1
      %p93 = scmp.eq.s32.totalorder %s13, 1
      %p94 = scmp.ne.s32.totalorder %s89, %s91
      %p95 = scmp.eq.s32.totalorder %s13, 0
      %p96 = por %p94, %p95
      %p97 = scmp.ne.s32.totalorder %s89, %s91
      %p98 = scmp.eq.s32.totalorder %s18, 1
      %p99 = por %p97, %p98
      %p100 = scmp.ne.s32.totalorder %s91, %s92
      %p101 = scmp.eq.s32.totalorder %s18, 0
      %p102 = por %p100, %p101
      %p103 = scmp.ne.s32.totalorder %s91, %s92
      %p104 = scmp.eq.s32.totalorder %s19, 1
      %p105 = por %p103, %p104
      %p107 = scmp.ne.s32.totalorder %s92, %s106
      %p108 = scmp.eq.s32.totalorder %s19, 0
      %p109 = por %p107, %p108
      %s110 = ssub.s32 %s13, %s20
      %p111 = scmp.eq.s32.totalorder %s110, 0
      %s113 = sadd.s32 %s112, 1
      %s114 = scalar_select %p111, %s112, %s113
      %p117 = pneg %p111
      %p118 = scmp.eq.s32.totalorder %s13, 1
      %p119 = por %p117, %p118
      %p120 = scmp.ne.s32.totalorder %s112, %s115
      %p121 = scmp.eq.s32.totalorder %s13, 0
      %p122 = por %p120, %p121
      %p123 = scmp.ne.s32.totalorder %s112, %s115
      %p124 = scmp.eq.s32.totalorder %s18, 1
      %p125 = por %p123, %p124
      %p126 = scmp.ne.s32.totalorder %s115, %s116
      %p127 = scmp.eq.s32.totalorder %s18, 0
      %p128 = por %p126, %p127
      %p129 = scmp.ne.s32.totalorder %s115, %s116
      %p130 = scmp.eq.s32.totalorder %s19, 1
      %p131 = por %p129, %p130
      %p133 = scmp.ne.s32.totalorder %s116, %s132
      %p134 = scmp.eq.s32.totalorder %s19, 0
      %p135 = por %p133, %p134
      %p136 = scmp.le.s32.totalorder 1, %s13
      %p137 = scmp.lt.s32.totalorder %s13, 3
      %p138 = pnand %p136, %p137
      %p139 = pneg %p138
      // Predicated region
      $region9: #{neat_block_forward.1} parent=5 // pred_check
        _
      $region10: #{neat_block_forward.1} parent=5 // pred_check_branch
        %141 = sbr.rel (%p138) target = $region12
      $region11: #{neat_block_forward.1} parent=5 // pred_region
        %s142 = ssub.s32 %s13, 1
        // Predicated region
        $region13: #{neat_block_forward.1} parent=11 // pred_check
          %p143 = pneg %p60
        $region14: #{neat_block_forward.1} parent=11 // pred_check_branch
          %145 = sbr.rel (%p143) target = $region16
        $region15: #{neat_block_forward.1} parent=11 // pred_region
          _
        $region16: #{neat_block_forward.1} parent=11 // pred_fallthru
          _
        // Predicated region
        $region17: #{neat_block_forward.1} parent=11 // pred_check
          %p146 = pneg %p81
        $region18: #{neat_block_forward.1} parent=11 // pred_check_branch
          %148 = sbr.rel (%p146) target = $region20
        $region19: #{neat_block_forward.1} parent=11 // pred_region
          _
        $region20: #{neat_block_forward.1} parent=11 // pred_fallthru
          _
        // Predicated region
        $region21: #{neat_block_forward.1} parent=11 // pred_check
          %p149 = pneg %p102
        $region22: #{neat_block_forward.1} parent=11 // pred_check_branch
          %151 = sbr.rel (%p149) target = $region24
        $region23: #{neat_block_forward.1} parent=11 // pred_region
          _
        $region24: #{neat_block_forward.1} parent=11 // pred_fallthru
          _
      $region12: #{neat_block_forward.1} parent=5 // pred_fallthru
        _
      %p152 = scmp.lt.s32.totalorder %s13, 2
      // Predicated region
      $region25: #{neat_block_forward.1} parent=5 // pred_check
        %p153 = pneg %p152
      $region26: #{neat_block_forward.1} parent=5 // pred_check_branch
        %155 = sbr.rel (%p153) target = $region28
      $region27: #{neat_block_forward.1} parent=5 // pred_region
        // Predicated region
        $region29: #{neat_block_forward.1} parent=27 // pred_check
          %p156 = pneg %p33
        $region30: #{neat_block_forward.1} parent=27 // pred_check_branch
          %158 = sbr.rel (%p156) target = $region32
        $region31: #{neat_block_forward.1} parent=27 // pred_region
          %p159 = scmp.lt.s32.totalorder %s13, 1
          %s160 = scalar_select %p159, %s13, 1
          %s161 = smul.addr %s160, 8
          %s162 = smul.addr %s161, 8
          %s163 = scalar_lea.vmem %s0, %s162
        $region32: #{neat_block_forward.1} parent=27 // pred_fallthru
          _
      $region28: #{neat_block_forward.1} parent=5 // pred_fallthru
        _
      %p164 = scmp.le.s32.totalorder 1, %s13
      %p165 = scmp.lt.s32.totalorder %s13, 3
      %p166 = pnand %p164, %p165
      %p167 = pneg %p166
      // Predicated region
      $region33: #{neat_block_forward.1} parent=5 // pred_check
        _
      $region34: #{neat_block_forward.1} parent=5 // pred_check_branch
        %169 = sbr.rel (%p166) target = $region36
      $region35: #{neat_block_forward.1} parent=5 // pred_region
        %s170 = ssub.s32 %s13, 1
        %p171 = scmp.lt.s32.totalorder %s18, 1
        %s172 = scalar_select %p171, %s18, 1
        %s173 = smul.addr %s172, 8
        %s174 = smul.addr %s173, 8
        %s175 = scalar_lea.vmem %s0, %s174
        %p176 = pneg %p39
        %p177 = pneg %p36
        %p178 = pneg %p60
        %p179 = pneg %p57
        %p180 = pneg %p81
        %p181 = pneg %p78
        %p182 = pneg %p102
        %p183 = pneg %p99
        %p184 = pneg %p128
        %p185 = pneg %p125
        %s186 = sand.u32 %s115, 1
        %s187 = scalar_lea.sflag [#allocation5], %s186
        %s188 = sand.u32 %s115, 1
        %s189 = smul.addr %s188, 64
        %s190 = scalar_lea.vmem [#allocation4], %s189
        %p191 = scmp.lt.s32.totalorder %s18, 1
        %s192 = scalar_select %p191, %s18, 1
        %s193 = smul.addr %s192, 8
        %s194 = smul.addr %s193, 8
        %s195 = scalar_lea.vmem %s0, %s194
        %196 = vst [vmem:[#allocation2] sm:$0xff] 0.0
        %197 = vst [vmem:[#allocation2 + $0x8] sm:$0x3] 0.0
        %198 = vst [vmem:[#allocation2 + $0x10] sm:$0xff] 0.0
        %199 = vst [vmem:[#allocation2 + $0x18] sm:$0x3] 0.0
        %200 = vst [vmem:[#allocation2 + $0x20] sm:$0xff] 0.0
        %201 = vst [vmem:[#allocation2 + $0x28] sm:$0x3] 0.0
        %202 = vst [vmem:[#allocation2 + $0x30] sm:$0xff] 0.0
        %203 = vst [vmem:[#allocation2 + $0x38] sm:$0x3] 0.0
        %204 = vst [vmem:[#allocation2 + $0x40] sm:$0xff] 0.0
        %205 = vst [vmem:[#allocation2 + $0x48] sm:$0x3] 0.0
        %206 = vst [vmem:[#allocation2 + $0x50] sm:$0xff] 0.0
        %207 = vst [vmem:[#allocation2 + $0x58] sm:$0x3] 0.0
        %208 = vst [vmem:[#allocation2 + $0x60] sm:$0xff] 0.0
        %209 = vst [vmem:[#allocation2 + $0x68] sm:$0x3] 0.0
        %210 = vst [vmem:[#allocation2 + $0x70] sm:$0xff] 0.0
        %211 = vst [vmem:[#allocation2 + $0x78] sm:$0x3] 0.0
        %212 = vst [vmem:[#allocation2 + $0x80] sm:$0xff] 0.0
        %213 = vst [vmem:[#allocation2 + $0x88] sm:$0x3] 0.0
        %214 = vst [vmem:[#allocation2 + $0x90] sm:$0xff] 0.0
        %215 = vst [vmem:[#allocation2 + $0x98] sm:$0x3] 0.0
        %216 = vst [vmem:[#allocation3] sm:$0xff] 0.0
        %217 = vst [vmem:[#allocation3 + $0x8] sm:$0x3] 0.0
        %218 = vst [vmem:[#allocation3 + $0x10] sm:$0xff] 0.0
        %219 = vst [vmem:[#allocation3 + $0x18] sm:$0x3] 0.0
        %220 = vst [vmem:[#allocation3 + $0x20] sm:$0xff] 0.0
        %221 = vst [vmem:[#allocation3 + $0x28] sm:$0x3] 0.0
        %222 = vst [vmem:[#allocation3 + $0x30] sm:$0xff] 0.0
        %223 = vst [vmem:[#allocation3 + $0x38] sm:$0x3] 0.0
        %224 = vst [vmem:[#allocation3 + $0x40] sm:$0xff] 0.0
        %225 = vst [vmem:[#allocation3 + $0x48] sm:$0x3] 0.0
        %226 = vst [vmem:[#allocation3 + $0x50] sm:$0xff] 0.0
        %227 = vst [vmem:[#allocation3 + $0x58] sm:$0x3] 0.0
        %228 = vst [vmem:[#allocation3 + $0x60] sm:$0xff] 0.0
        %229 = vst [vmem:[#allocation3 + $0x68] sm:$0x3] 0.0
        %230 = vst [vmem:[#allocation3 + $0x70] sm:$0xff] 0.0
        %231 = vst [vmem:[#allocation3 + $0x78] sm:$0x3] 0.0
        %232 = vst [vmem:[#allocation3 + $0x80] sm:$0xff] 0.0
        %233 = vst [vmem:[#allocation3 + $0x88] sm:$0x3] 0.0
        %234 = vst [vmem:[#allocation3 + $0x90] sm:$0xff] 0.0
        %235 = vst [vmem:[#allocation3 + $0x98] sm:$0x3] 0.0
        %v236 = vld [vmem:[%s195] sm:$0xff]
        %v237 = vld [vmem:[%s195 + $0x8] sm:$0xff]
        %v238 = vld [vmem:[%s195 + $0x10] sm:$0xff]
        %v239 = vld [vmem:[%s195 + $0x18] sm:$0xff]
        %v240 = vld [vmem:[%s195 + $0x20] sm:$0xff]
        %v241 = vld [vmem:[%s195 + $0x28] sm:$0xff]
        %v242 = vld [vmem:[%s195 + $0x30] sm:$0xff]
        %v243 = vld [vmem:[%s195 + $0x38] sm:$0xff]
        %s244 = scalar_lea.vmem [#allocation2], 16
        %245 = vst [vmem:[%s244 + $0x1] sm:$0xff] %v236
        %246 = vst [vmem:[%s244 + $0x11] sm:$0xff] %v237
        %247 = vst [vmem:[%s244 + $0x21] sm:$0xff] %v238
        %248 = vst [vmem:[%s244 + $0x31] sm:$0xff] %v239
        %249 = vst [vmem:[%s244 + $0x41] sm:$0xff] %v240
        %250 = vst [vmem:[%s244 + $0x51] sm:$0xff] %v241
        %251 = vst [vmem:[%s244 + $0x61] sm:$0xff] %v242
        %252 = vst [vmem:[%s244 + $0x71] sm:$0xff] %v243
        %v253 = vld [vmem:[%s3] sm:$0x1]
        %v254 = vlaneseq
        %v255 = vshrl.u32 %v254, 7
        %v256 = vsub.s32 0, %v255
        %v257 = vrot.slane %v253, %v256
        %v258 = vld [vmem:[#allocation2] sm:$0xff]
        %v259 = vld [vmem:[#allocation2 + $0x10] sm:$0xff]
        %v260 = vld [vmem:[#allocation2 + $0x20] sm:$0xff]
        %v261 = vld [vmem:[#allocation2 + $0x30] sm:$0xff]
        %v262 = vld [vmem:[#allocation2 + $0x40] sm:$0xff]
        %v263 = vld [vmem:[#allocation2 + $0x50] sm:$0xff]
        %v264 = vld [vmem:[#allocation2 + $0x60] sm:$0xff]
        %v265 = vld [vmem:[#allocation2 + $0x70] sm:$0xff]
        %v266 = vld [vmem:[#allocation2 + $0x80] sm:$0xff]
        %v267 = vld [vmem:[#allocation2 + $0x90] sm:$0xff]
        %v268 = vld [vmem:[%s1] sm:$0x1]
        %v269 = vlaneseq
        %v270 = vshrl.u32 %v269, 7
        %v271 = vsub.s32 0, %v270
        %v272 = vrot.slane %v268, %v271
        %v273 = vmul.f32 %v258, %v272
        %v274 = vmul.f32 %v259, %v272
        %v275 = vmul.f32 %v260, %v272
        %v276 = vmul.f32 %v261, %v272
        %v277 = vmul.f32 %v262, %v272
        %v278 = vmul.f32 %v263, %v272
        %v279 = vmul.f32 %v264, %v272
        %v280 = vmul.f32 %v265, %v272
        %v281 = vadd.f32 %v257, %v273
        %v282 = vadd.f32 %v257, %v274
        %v283 = vadd.f32 %v257, %v275
        %v284 = vadd.f32 %v257, %v276
        %v285 = vadd.f32 %v257, %v277
        %v286 = vadd.f32 %v257, %v278
        %v287 = vadd.f32 %v257, %v279
        %v288 = vadd.f32 %v257, %v280
        %v289 = vld [vmem:[%s1 + $0x3] sm:$0x1]
        %v290 = vlaneseq
        %v291 = vshrl.u32 %v290, 7
        %v292 = vsub.s32 0, %v291
        %v293 = vrot.slane %v289, %v292
        %v294 = vmul.f32 %v259, %v293
        %v295 = vmul.f32 %v260, %v293
        %v296 = vmul.f32 %v261, %v293
        %v297 = vmul.f32 %v262, %v293
        %v298 = vmul.f32 %v263, %v293
        %v299 = vmul.f32 %v264, %v293
        %v300 = vmul.f32 %v265, %v293
        %v301 = vmul.f32 %v266, %v293
        %v302 = vadd.f32 %v281, %v294
        %v303 = vadd.f32 %v282, %v295
        %v304 = vadd.f32 %v283, %v296
        %v305 = vadd.f32 %v284, %v297
        %v306 = vadd.f32 %v285, %v298
        %v307 = vadd.f32 %v286, %v299
        %v308 = vadd.f32 %v287, %v300
        %v309 = vadd.f32 %v288, %v301
        %v310 = vld [vmem:[%s1 + $0x6] sm:$0x1]
        %v311 = vlaneseq
        %v312 = vshrl.u32 %v311, 7
        %v313 = vsub.s32 0, %v312
        %v314 = vrot.slane %v310, %v313
        %v315 = vmul.f32 %v260, %v314
        %v316 = vmul.f32 %v261, %v314
        %v317 = vmul.f32 %v262, %v314
        %v318 = vmul.f32 %v263, %v314
        %v319 = vmul.f32 %v264, %v314
        %v320 = vmul.f32 %v265, %v314
        %v321 = vmul.f32 %v266, %v314
        %v322 = vmul.f32 %v267, %v314
        %v323 = vadd.f32 %v302, %v315
        %v324 = vadd.f32 %v303, %v316
        %v325 = vadd.f32 %v304, %v317
        %v326 = vadd.f32 %v305, %v318
        %v327 = vadd.f32 %v306, %v319
        %v328 = vadd.f32 %v307, %v320
        %v329 = vadd.f32 %v308, %v321
        %v330 = vadd.f32 %v309, %v322
        %v331 = vld [vmem:[#allocation2 + $0x1] sm:$0xff]
        %v332 = vld [vmem:[#allocation2 + $0x11] sm:$0xff]
        %v333 = vld [vmem:[#allocation2 + $0x21] sm:$0xff]
        %v334 = vld [vmem:[#allocation2 + $0x31] sm:$0xff]
        %v335 = vld [vmem:[#allocation2 + $0x41] sm:$0xff]
        %v336 = vld [vmem:[#allocation2 + $0x51] sm:$0xff]
        %v337 = vld [vmem:[#allocation2 + $0x61] sm:$0xff]
        %v338 = vld [vmem:[#allocation2 + $0x71] sm:$0xff]
        %v339 = vld [vmem:[#allocation2 + $0x81] sm:$0xff]
        %v340 = vld [vmem:[#allocation2 + $0x91] sm:$0xff]
        %v341 = vld [vmem:[%s1 + $0x1] sm:$0x1]
        %v342 = vlaneseq
        %v343 = vshrl.u32 %v342, 7
        %v344 = vsub.s32 0, %v343
        %v345 = vrot.slane %v341, %v344
        %v346 = vmul.f32 %v331, %v345
        %v347 = vmul.f32 %v332, %v345
        %v348 = vmul.f32 %v333, %v345
        %v349 = vmul.f32 %v334, %v345
        %v350 = vmul.f32 %v335, %v345
        %v351 = vmul.f32 %v336, %v345
        %v352 = vmul.f32 %v337, %v345
        %v353 = vmul.f32 %v338, %v345
        %v354 = vadd.f32 %v323, %v346
        %v355 = vadd.f32 %v324, %v347
        %v356 = vadd.f32 %v325, %v348
        %v357 = vadd.f32 %v326, %v349
        %v358 = vadd.f32 %v327, %v350
        %v359 = vadd.f32 %v328, %v351
        %v360 = vadd.f32 %v329, %v352
        %v361 = vadd.f32 %v330, %v353
        %v362 = vld [vmem:[%s1 + $0x4] sm:$0x1]
        %v363 = vlaneseq
        %v364 = vshrl.u32 %v363, 7
        %v365 = vsub.s32 0, %v364
        %v366 = vrot.slane %v362, %v365
        %v367 = vmul.f32 %v332, %v366
        %v368 = vmul.f32 %v333, %v366
        %v369 = vmul.f32 %v334, %v366
        %v370 = vmul.f32 %v335, %v366
        %v371 = vmul.f32 %v336, %v366
        %v372 = vmul.f32 %v337, %v366
        %v373 = vmul.f32 %v338, %v366
        %v374 = vmul.f32 %v339, %v366
        %v375 = vadd.f32 %v354, %v367
        %v376 = vadd.f32 %v355, %v368
        %v377 = vadd.f32 %v356, %v369
        %v378 = vadd.f32 %v357, %v370
        %v379 = vadd.f32 %v358, %v371
        %v380 = vadd.f32 %v359, %v372
        %v381 = vadd.f32 %v360, %v373
        %v382 = vadd.f32 %v361, %v374
        %v383 = vld [vmem:[%s1 + $0x7] sm:$0x1]
        %v384 = vlaneseq
        %v385 = vshrl.u32 %v384, 7
        %v386 = vsub.s32 0, %v385
        %v387 = vrot.slane %v383, %v386
        %v388 = vmul.f32 %v333, %v387
        %v389 = vmul.f32 %v334, %v387
        %v390 = vmul.f32 %v335, %v387
        %v391 = vmul.f32 %v336, %v387
        %v392 = vmul.f32 %v337, %v387
        %v393 = vmul.f32 %v338, %v387
        %v394 = vmul.f32 %v339, %v387
        %v395 = vmul.f32 %v340, %v387
        %v396 = vadd.f32 %v375, %v388
        %v397 = vadd.f32 %v376, %v389
        %v398 = vadd.f32 %v377, %v390
        %v399 = vadd.f32 %v378, %v391
        %v400 = vadd.f32 %v379, %v392
        %v401 = vadd.f32 %v380, %v393
        %v402 = vadd.f32 %v381, %v394
        %v403 = vadd.f32 %v382, %v395
        %v404 = vld [vmem:[#allocation2 + $0x2] sm:$0xff]
        %v405 = vld [vmem:[#allocation2 + $0x12] sm:$0xff]
        %v406 = vld [vmem:[#allocation2 + $0x22] sm:$0xff]
        %v407 = vld [vmem:[#allocation2 + $0x32] sm:$0xff]
        %v408 = vld [vmem:[#allocation2 + $0x42] sm:$0xff]
        %v409 = vld [vmem:[#allocation2 + $0x52] sm:$0xff]
        %v410 = vld [vmem:[#allocation2 + $0x62] sm:$0xff]
        %v411 = vld [vmem:[#allocation2 + $0x72] sm:$0xff]
        %v412 = vld [vmem:[#allocation2 + $0x82] sm:$0xff]
        %v413 = vld [vmem:[#allocation2 + $0x92] sm:$0xff]
        %v414 = vld [vmem:[%s1 + $0x2] sm:$0x1]
        %v415 = vlaneseq
        %v416 = vshrl.u32 %v415, 7
        %v417 = vsub.s32 0, %v416
        %v418 = vrot.slane %v414, %v417
        %v419 = vmul.f32 %v404, %v418
        %v420 = vmul.f32 %v405, %v418
        %v421 = vmul.f32 %v406, %v418
        %v422 = vmul.f32 %v407, %v418
        %v423 = vmul.f32 %v408, %v418
        %v424 = vmul.f32 %v409, %v418
        %v425 = vmul.f32 %v410, %v418
        %v426 = vmul.f32 %v411, %v418
        %v427 = vadd.f32 %v396, %v419
        %v428 = vadd.f32 %v397, %v420
        %v429 = vadd.f32 %v398, %v421
        %v430 = vadd.f32 %v399, %v422
        %v431 = vadd.f32 %v400, %v423
        %v432 = vadd.f32 %v401, %v424
        %v433 = vadd.f32 %v402, %v425
        %v434 = vadd.f32 %v403, %v426
        %v435 = vld [vmem:[%s1 + $0x5] sm:$0x1]
        %v436 = vlaneseq
        %v437 = vshrl.u32 %v436, 7
        %v438 = vsub.s32 0, %v437
        %v439 = vrot.slane %v435, %v438
        %v440 = vmul.f32 %v405, %v439
        %v441 = vmul.f32 %v406, %v439
        %v442 = vmul.f32 %v407, %v439
        %v443 = vmul.f32 %v408, %v439
        %v444 = vmul.f32 %v409, %v439
        %v445 = vmul.f32 %v410, %v439
        %v446 = vmul.f32 %v411, %v439
        %v447 = vmul.f32 %v412, %v439
        %v448 = vadd.f32 %v427, %v440
        %v449 = vadd.f32 %v428, %v441
        %v450 = vadd.f32 %v429, %v442
        %v451 = vadd.f32 %v430, %v443
        %v452 = vadd.f32 %v431, %v444
        %v453 = vadd.f32 %v432, %v445
        %v454 = vadd.f32 %v433, %v446
        %v455 = vadd.f32 %v434, %v447
        %v456 = vld [vmem:[%s1 + $0x8] sm:$0x1]
        %v457 = vlaneseq
        %v458 = vshrl.u32 %v457, 7
        %v459 = vsub.s32 0, %v458
        %v460 = vrot.slane %v456, %v459
        %v461 = vmul.f32 %v406, %v460
        %v462 = vmul.f32 %v407, %v460
        %v463 = vmul.f32 %v408, %v460
        %v464 = vmul.f32 %v409, %v460
        %v465 = vmul.f32 %v410, %v460
        %v466 = vmul.f32 %v411, %v460
        %v467 = vmul.f32 %v412, %v460
        %v468 = vmul.f32 %v413, %v460
        %v469 = vadd.f32 %v448, %v461
        %v470 = vadd.f32 %v449, %v462
        %v471 = vadd.f32 %v450, %v463
        %v472 = vadd.f32 %v451, %v464
        %v473 = vadd.f32 %v452, %v465
        %v474 = vadd.f32 %v453, %v466
        %v475 = vadd.f32 %v454, %v467
        %v476 = vadd.f32 %v455, %v468
        %485 = vrot.lane.b32.xlu0 %v469, 64
        %v486 = vpop.permute.xlu0 %485
        %487 = vrot.lane.b32.xlu0 %v470, 64
        %v488 = vpop.permute.xlu0 %487
        %489 = vrot.lane.b32.xlu0 %v471, 64
        %v490 = vpop.permute.xlu0 %489
        %491 = vrot.lane.b32.xlu0 %v472, 64
        %v492 = vpop.permute.xlu0 %491
        %493 = vrot.lane.b32.xlu0 %v473, 64
        %v494 = vpop.permute.xlu0 %493
        %495 = vrot.lane.b32.xlu0 %v474, 64
        %v496 = vpop.permute.xlu0 %495
        %497 = vrot.lane.b32.xlu0 %v475, 64
        %v498 = vpop.permute.xlu0 %497
        %499 = vrot.lane.b32.xlu0 %v476, 64
        %v500 = vpop.permute.xlu0 %499
        %v509 = vadd.f32 %v469, %v486
        %v510 = vadd.f32 %v470, %v488
        %v511 = vadd.f32 %v471, %v490
        %v512 = vadd.f32 %v472, %v492
        %v513 = vadd.f32 %v473, %v494
        %v514 = vadd.f32 %v474, %v496
        %v515 = vadd.f32 %v475, %v498
        %v516 = vadd.f32 %v476, %v500
        %v517 = vmax.f32 %v509, 0.0
        %v518 = vmax.f32 %v510, 0.0
        %v519 = vmax.f32 %v511, 0.0
        %v520 = vmax.f32 %v512, 0.0
        %v521 = vmax.f32 %v513, 0.0
        %v522 = vmax.f32 %v514, 0.0
        %v523 = vmax.f32 %v515, 0.0
        %v524 = vmax.f32 %v516, 0.0
        %s525 = scalar_lea.vmem [#allocation3], 16
        %vm526 = vcmask 523264
        %527 = vst.msk [vmem:[%s525 + $0x1] sm:$0xff] %vm526, %v517
        %528 = vst.msk [vmem:[%s525 + $0x11] sm:$0xff] %vm526, %v518
        %529 = vst.msk [vmem:[%s525 + $0x21] sm:$0xff] %vm526, %v519
        %530 = vst.msk [vmem:[%s525 + $0x31] sm:$0xff] %vm526, %v520
        %531 = vst.msk [vmem:[%s525 + $0x41] sm:$0xff] %vm526, %v521
        %532 = vst.msk [vmem:[%s525 + $0x51] sm:$0xff] %vm526, %v522
        %533 = vst.msk [vmem:[%s525 + $0x61] sm:$0xff] %vm526, %v523
        %534 = vst.msk [vmem:[%s525 + $0x71] sm:$0xff] %vm526, %v524
        %v535 = vld [vmem:[%s3 + $0x1] sm:$0x1]
        %v536 = vlaneseq
        %v537 = vshrl.u32 %v536, 7
        %v538 = vsub.s32 0, %v537
        %v539 = vrot.slane %v535, %v538
        %v540 = vld [vmem:[#allocation3] sm:$0xff]
        %v541 = vld [vmem:[#allocation3 + $0x10] sm:$0xff]
        %v542 = vld [vmem:[#allocation3 + $0x20] sm:$0xff]
        %v543 = vld [vmem:[#allocation3 + $0x30] sm:$0xff]
        %v544 = vld [vmem:[#allocation3 + $0x40] sm:$0xff]
        %v545 = vld [vmem:[#allocation3 + $0x50] sm:$0xff]
        %v546 = vld [vmem:[#allocation3 + $0x60] sm:$0xff]
        %v547 = vld [vmem:[#allocation3 + $0x70] sm:$0xff]
        %v548 = vld [vmem:[#allocation3 + $0x80] sm:$0xff]
        %v549 = vld [vmem:[#allocation3 + $0x90] sm:$0xff]
        %s550 = scalar_lea.vmem %s1, 16
        %v551 = vld [vmem:[%s550] sm:$0x1]
        %v552 = vlaneseq
        %v553 = vshrl.u32 %v552, 7
        %v554 = vsub.s32 0, %v553
        %v555 = vrot.slane %v551, %v554
        %v556 = vmul.f32 %v540, %v555
        %v557 = vmul.f32 %v541, %v555
        %v558 = vmul.f32 %v542, %v555
        %v559 = vmul.f32 %v543, %v555
        %v560 = vmul.f32 %v544, %v555
        %v561 = vmul.f32 %v545, %v555
        %v562 = vmul.f32 %v546, %v555
        %v563 = vmul.f32 %v547, %v555
        %v564 = vadd.f32 %v539, %v556
        %v565 = vadd.f32 %v539, %v557
        %v566 = vadd.f32 %v539, %v558
        %v567 = vadd.f32 %v539, %v559
        %v568 = vadd.f32 %v539, %v560
        %v569 = vadd.f32 %v539, %v561
        %v570 = vadd.f32 %v539, %v562
        %v571 = vadd.f32 %v539, %v563
        %v572 = vld [vmem:[%s550 + $0x3] sm:$0x1]
        %v573 = vlaneseq
        %v574 = vshrl.u32 %v573, 7
        %v575 = vsub.s32 0, %v574
        %v576 = vrot.slane %v572, %v575
        %v577 = vmul.f32 %v541, %v576
        %v578 = vmul.f32 %v542, %v576
        %v579 = vmul.f32 %v543, %v576
        %v580 = vmul.f32 %v544, %v576
        %v581 = vmul.f32 %v545, %v576
        %v582 = vmul.f32 %v546, %v576
        %v583 = vmul.f32 %v547, %v576
        %v584 = vmul.f32 %v548, %v576
        %v585 = vadd.f32 %v564, %v577
        %v586 = vadd.f32 %v565, %v578
        %v587 = vadd.f32 %v566, %v579
        %v588 = vadd.f32 %v567, %v580
        %v589 = vadd.f32 %v568, %v581
        %v590 = vadd.f32 %v569, %v582
        %v591 = vadd.f32 %v570, %v583
        %v592 = vadd.f32 %v571, %v584
        %v593 = vld [vmem:[%s550 + $0x6] sm:$0x1]
        %v594 = vlaneseq
        %v595 = vshrl.u32 %v594, 7
        %v596 = vsub.s32 0, %v595
        %v597 = vrot.slane %v593, %v596
        %v598 = vmul.f32 %v542, %v597
        %v599 = vmul.f32 %v543, %v597
        %v600 = vmul.f32 %v544, %v597
        %v601 = vmul.f32 %v545, %v597
        %v602 = vmul.f32 %v546, %v597
        %v603 = vmul.f32 %v547, %v597
        %v604 = vmul.f32 %v548, %v597
        %v605 = vmul.f32 %v549, %v597
        %v606 = vadd.f32 %v585, %v598
        %v607 = vadd.f32 %v586, %v599
        %v608 = vadd.f32 %v587, %v600
        %v609 = vadd.f32 %v588, %v601
        %v610 = vadd.f32 %v589, %v602
        %v611 = vadd.f32 %v590, %v603
        %v612 = vadd.f32 %v591, %v604
        %v613 = vadd.f32 %v592, %v605
        %v614 = vld [vmem:[#allocation3 + $0x1] sm:$0xff]
        %v615 = vld [vmem:[#allocation3 + $0x11] sm:$0xff]
        %v616 = vld [vmem:[#allocation3 + $0x21] sm:$0xff]
        %v617 = vld [vmem:[#allocation3 + $0x31] sm:$0xff]
        %v618 = vld [vmem:[#allocation3 + $0x41] sm:$0xff]
        %v619 = vld [vmem:[#allocation3 + $0x51] sm:$0xff]
        %v620 = vld [vmem:[#allocation3 + $0x61] sm:$0xff]
        %v621 = vld [vmem:[#allocation3 + $0x71] sm:$0xff]
        %v622 = vld [vmem:[#allocation3 + $0x81] sm:$0xff]
        %v623 = vld [vmem:[#allocation3 + $0x91] sm:$0xff]
        %v624 = vld [vmem:[%s550 + $0x1] sm:$0x1]
        %v625 = vlaneseq
        %v626 = vshrl.u32 %v625, 7
        %v627 = vsub.s32 0, %v626
        %v628 = vrot.slane %v624, %v627
        %v629 = vmul.f32 %v614, %v628
        %v630 = vmul.f32 %v615, %v628
        %v631 = vmul.f32 %v616, %v628
        %v632 = vmul.f32 %v617, %v628
        %v633 = vmul.f32 %v618, %v628
        %v634 = vmul.f32 %v619, %v628
        %v635 = vmul.f32 %v620, %v628
        %v636 = vmul.f32 %v621, %v628
        %v637 = vadd.f32 %v606, %v629
        %v638 = vadd.f32 %v607, %v630
        %v639 = vadd.f32 %v608, %v631
        %v640 = vadd.f32 %v609, %v632
        %v641 = vadd.f32 %v610, %v633
        %v642 = vadd.f32 %v611, %v634
        %v643 = vadd.f32 %v612, %v635
        %v644 = vadd.f32 %v613, %v636
        %v645 = vld [vmem:[%s550 + $0x4] sm:$0x1]
        %v646 = vlaneseq
        %v647 = vshrl.u32 %v646, 7
        %v648 = vsub.s32 0, %v647
        %v649 = vrot.slane %v645, %v648
        %v650 = vmul.f32 %v615, %v649
        %v651 = vmul.f32 %v616, %v649
        %v652 = vmul.f32 %v617, %v649
        %v653 = vmul.f32 %v618, %v649
        %v654 = vmul.f32 %v619, %v649
        %v655 = vmul.f32 %v620, %v649
        %v656 = vmul.f32 %v621, %v649
        %v657 = vmul.f32 %v622, %v649
        %v658 = vadd.f32 %v637, %v650
        %v659 = vadd.f32 %v638, %v651
        %v660 = vadd.f32 %v639, %v652
        %v661 = vadd.f32 %v640, %v653
        %v662 = vadd.f32 %v641, %v654
        %v663 = vadd.f32 %v642, %v655
        %v664 = vadd.f32 %v643, %v656
        %v665 = vadd.f32 %v644, %v657
        %v666 = vld [vmem:[%s550 + $0x7] sm:$0x1]
        %v667 = vlaneseq
        %v668 = vshrl.u32 %v667, 7
        %v669 = vsub.s32 0, %v668
        %v670 = vrot.slane %v666, %v669
        %v671 = vmul.f32 %v616, %v670
        %v672 = vmul.f32 %v617, %v670
        %v673 = vmul.f32 %v618, %v670
        %v674 = vmul.f32 %v619, %v670
        %v675 = vmul.f32 %v620, %v670
        %v676 = vmul.f32 %v621, %v670
        %v677 = vmul.f32 %v622, %v670
        %v678 = vmul.f32 %v623, %v670
        %v679 = vadd.f32 %v658, %v671
        %v680 = vadd.f32 %v659, %v672
        %v681 = vadd.f32 %v660, %v673
        %v682 = vadd.f32 %v661, %v674
        %v683 = vadd.f32 %v662, %v675
        %v684 = vadd.f32 %v663, %v676
        %v685 = vadd.f32 %v664, %v677
        %v686 = vadd.f32 %v665, %v678
        %v687 = vld [vmem:[#allocation3 + $0x2] sm:$0xff]
        %v688 = vld [vmem:[#allocation3 + $0x12] sm:$0xff]
        %v689 = vld [vmem:[#allocation3 + $0x22] sm:$0xff]
        %v690 = vld [vmem:[#allocation3 + $0x32] sm:$0xff]
        %v691 = vld [vmem:[#allocation3 + $0x42] sm:$0xff]
        %v692 = vld [vmem:[#allocation3 + $0x52] sm:$0xff]
        %v693 = vld [vmem:[#allocation3 + $0x62] sm:$0xff]
        %v694 = vld [vmem:[#allocation3 + $0x72] sm:$0xff]
        %v695 = vld [vmem:[#allocation3 + $0x82] sm:$0xff]
        %v696 = vld [vmem:[#allocation3 + $0x92] sm:$0xff]
        %v697 = vld [vmem:[%s550 + $0x2] sm:$0x1]
        %v698 = vlaneseq
        %v699 = vshrl.u32 %v698, 7
        %v700 = vsub.s32 0, %v699
        %v701 = vrot.slane %v697, %v700
        %v702 = vmul.f32 %v687, %v701
        %v703 = vmul.f32 %v688, %v701
        %v704 = vmul.f32 %v689, %v701
        %v705 = vmul.f32 %v690, %v701
        %v706 = vmul.f32 %v691, %v701
        %v707 = vmul.f32 %v692, %v701
        %v708 = vmul.f32 %v693, %v701
        %v709 = vmul.f32 %v694, %v701
        %v710 = vadd.f32 %v679, %v702
        %v711 = vadd.f32 %v680, %v703
        %v712 = vadd.f32 %v681, %v704
        %v713 = vadd.f32 %v682, %v705
        %v714 = vadd.f32 %v683, %v706
        %v715 = vadd.f32 %v684, %v707
        %v716 = vadd.f32 %v685, %v708
        %v717 = vadd.f32 %v686, %v709
        %v718 = vld [vmem:[%s550 + $0x5] sm:$0x1]
        %v719 = vlaneseq
        %v720 = vshrl.u32 %v719, 7
        %v721 = vsub.s32 0, %v720
        %v722 = vrot.slane %v718, %v721
        %v723 = vmul.f32 %v688, %v722
        %v724 = vmul.f32 %v689, %v722
        %v725 = vmul.f32 %v690, %v722
        %v726 = vmul.f32 %v691, %v722
        %v727 = vmul.f32 %v692, %v722
        %v728 = vmul.f32 %v693, %v722
        %v729 = vmul.f32 %v694, %v722
        %v730 = vmul.f32 %v695, %v722
        %v731 = vadd.f32 %v710, %v723
        %v732 = vadd.f32 %v711, %v724
        %v733 = vadd.f32 %v712, %v725
        %v734 = vadd.f32 %v713, %v726
        %v735 = vadd.f32 %v714, %v727
        %v736 = vadd.f32 %v715, %v728
        %v737 = vadd.f32 %v716, %v729
        %v738 = vadd.f32 %v717, %v730
        %v739 = vld [vmem:[%s550 + $0x8] sm:$0x1]
        %v740 = vlaneseq
        %v741 = vshrl.u32 %v740, 7
        %v742 = vsub.s32 0, %v741
        %v743 = vrot.slane %v739, %v742
        %v744 = vmul.f32 %v689, %v743
        %v745 = vmul.f32 %v690, %v743
        %v746 = vmul.f32 %v691, %v743
        %v747 = vmul.f32 %v692, %v743
        %v748 = vmul.f32 %v693, %v743
        %v749 = vmul.f32 %v694, %v743
        %v750 = vmul.f32 %v695, %v743
        %v751 = vmul.f32 %v696, %v743
        %v752 = vadd.f32 %v731, %v744
        %v753 = vadd.f32 %v732, %v745
        %v754 = vadd.f32 %v733, %v746
        %v755 = vadd.f32 %v734, %v747
        %v756 = vadd.f32 %v735, %v748
        %v757 = vadd.f32 %v736, %v749
        %v758 = vadd.f32 %v737, %v750
        %v759 = vadd.f32 %v738, %v751
        %768 = vrot.lane.b32.xlu0 %v752, 96
        %v769 = vpop.permute.xlu0 %768
        %770 = vrot.lane.b32.xlu0 %v753, 96
        %v771 = vpop.permute.xlu0 %770
        %772 = vrot.lane.b32.xlu0 %v754, 96
        %v773 = vpop.permute.xlu0 %772
        %774 = vrot.lane.b32.xlu0 %v755, 96
        %v775 = vpop.permute.xlu0 %774
        %776 = vrot.lane.b32.xlu0 %v756, 96
        %v777 = vpop.permute.xlu0 %776
        %778 = vrot.lane.b32.xlu0 %v757, 96
        %v779 = vpop.permute.xlu0 %778
        %780 = vrot.lane.b32.xlu0 %v758, 96
        %v781 = vpop.permute.xlu0 %780
        %782 = vrot.lane.b32.xlu0 %v759, 96
        %v783 = vpop.permute.xlu0 %782
        %v792 = vadd.f32 %v752, %v769
        %v793 = vadd.f32 %v753, %v771
        %v794 = vadd.f32 %v754, %v773
        %v795 = vadd.f32 %v755, %v775
        %v796 = vadd.f32 %v756, %v777
        %v797 = vadd.f32 %v757, %v779
        %v798 = vadd.f32 %v758, %v781
        %v799 = vadd.f32 %v759, %v783
        %v800 = vmax.f32 %v792, 0.0
        %v801 = vmax.f32 %v793, 0.0
        %v802 = vmax.f32 %v794, 0.0
        %v803 = vmax.f32 %v795, 0.0
        %v804 = vmax.f32 %v796, 0.0
        %v805 = vmax.f32 %v797, 0.0
        %v806 = vmax.f32 %v798, 0.0
        %v807 = vmax.f32 %v799, 0.0
        %vm808 = vcmask 261120
        %809 = vst.msk [vmem:[%s244 + $0x1] sm:$0xff] %vm808, %v800
        %810 = vst.msk [vmem:[%s244 + $0x11] sm:$0xff] %vm808, %v801
        %811 = vst.msk [vmem:[%s244 + $0x21] sm:$0xff] %vm808, %v802
        %812 = vst.msk [vmem:[%s244 + $0x31] sm:$0xff] %vm808, %v803
        %813 = vst.msk [vmem:[%s244 + $0x41] sm:$0xff] %vm808, %v804
        %814 = vst.msk [vmem:[%s244 + $0x51] sm:$0xff] %vm808, %v805
        %815 = vst.msk [vmem:[%s244 + $0x61] sm:$0xff] %vm808, %v806
        %816 = vst.msk [vmem:[%s244 + $0x71] sm:$0xff] %vm808, %v807
        %v817 = vld [vmem:[%s3 + $0x2] sm:$0x1]
        %v818 = vlaneseq
        %v819 = vshrl.u32 %v818, 7
        %v820 = vsub.s32 0, %v819
        %v821 = vrot.slane %v817, %v820
        %v822 = vld [vmem:[#allocation2] sm:$0xff]
        %v823 = vld [vmem:[#allocation2 + $0x10] sm:$0xff]
        %v824 = vld [vmem:[#allocation2 + $0x20] sm:$0xff]
        %v825 = vld [vmem:[#allocation2 + $0x30] sm:$0xff]
        %v826 = vld [vmem:[#allocation2 + $0x40] sm:$0xff]
        %v827 = vld [vmem:[#allocation2 + $0x50] sm:$0xff]
        %v828 = vld [vmem:[#allocation2 + $0x60] sm:$0xff]
        %v829 = vld [vmem:[#allocation2 + $0x70] sm:$0xff]
        %v830 = vld [vmem:[#allocation2 + $0x80] sm:$0xff]
        %v831 = vld [vmem:[#allocation2 + $0x90] sm:$0xff]
        %s832 = scalar_lea.vmem %s1, 32
        %v833 = vld [vmem:[%s832] sm:$0x1]
        %v834 = vlaneseq
        %v835 = vshrl.u32 %v834, 7
        %v836 = vsub.s32 0, %v835
        %v837 = vrot.slane %v833, %v836
        %v838 = vmul.f32 %v822, %v837
        %v839 = vmul.f32 %v823, %v837
        %v840 = vmul.f32 %v824, %v837
        %v841 = vmul.f32 %v825, %v837
        %v842 = vmul.f32 %v826, %v837
        %v843 = vmul.f32 %v827, %v837
        %v844 = vmul.f32 %v828, %v837
        %v845 = vmul.f32 %v829, %v837
        %v846 = vadd.f32 %v821, %v838
        %v847 = vadd.f32 %v821, %v839
        %v848 = vadd.f32 %v821, %v840
        %v849 = vadd.f32 %v821, %v841
        %v850 = vadd.f32 %v821, %v842
        %v851 = vadd.f32 %v821, %v843
        %v852 = vadd.f32 %v821, %v844
        %v853 = vadd.f32 %v821, %v845
        %v854 = vld [vmem:[%s832 + $0x3] sm:$0x1]
        %v855 = vlaneseq
        %v856 = vshrl.u32 %v855, 7
        %v857 = vsub.s32 0, %v856
        %v858 = vrot.slane %v854, %v857
        %v859 = vmul.f32 %v823, %v858
        %v860 = vmul.f32 %v824, %v858
        %v861 = vmul.f32 %v825, %v858
        %v862 = vmul.f32 %v826, %v858
        %v863 = vmul.f32 %v827, %v858
        %v864 = vmul.f32 %v828, %v858
        %v865 = vmul.f32 %v829, %v858
        %v866 = vmul.f32 %v830, %v858
        %v867 = vadd.f32 %v846, %v859
        %v868 = vadd.f32 %v847, %v860
        %v869 = vadd.f32 %v848, %v861
        %v870 = vadd.f32 %v849, %v862
        %v871 = vadd.f32 %v850, %v863
        %v872 = vadd.f32 %v851, %v864
        %v873 = vadd.f32 %v852, %v865
        %v874 = vadd.f32 %v853, %v866
        %v875 = vld [vmem:[%s832 + $0x6] sm:$0x1]
        %v876 = vlaneseq
        %v877 = vshrl.u32 %v876, 7
        %v878 = vsub.s32 0, %v877
        %v879 = vrot.slane %v875, %v878
        %v880 = vmul.f32 %v824, %v879
        %v881 = vmul.f32 %v825, %v879
        %v882 = vmul.f32 %v826, %v879
        %v883 = vmul.f32 %v827, %v879
        %v884 = vmul.f32 %v828, %v879
        %v885 = vmul.f32 %v829, %v879
        %v886 = vmul.f32 %v830, %v879
        %v887 = vmul.f32 %v831, %v879
        %v888 = vadd.f32 %v867, %v880
        %v889 = vadd.f32 %v868, %v881
        %v890 = vadd.f32 %v869, %v882
        %v891 = vadd.f32 %v870, %v883
        %v892 = vadd.f32 %v871, %v884
        %v893 = vadd.f32 %v872, %v885
        %v894 = vadd.f32 %v873, %v886
        %v895 = vadd.f32 %v874, %v887
        %v896 = vld [vmem:[#allocation2 + $0x1] sm:$0xff]
        %v897 = vld [vmem:[#allocation2 + $0x11] sm:$0xff]
        %v898 = vld [vmem:[#allocation2 + $0x21] sm:$0xff]
        %v899 = vld [vmem:[#allocation2 + $0x31] sm:$0xff]
        %v900 = vld [vmem:[#allocation2 + $0x41] sm:$0xff]
        %v901 = vld [vmem:[#allocation2 + $0x51] sm:$0xff]
        %v902 = vld [vmem:[#allocation2 + $0x61] sm:$0xff]
        %v903 = vld [vmem:[#allocation2 + $0x71] sm:$0xff]
        %v904 = vld [vmem:[#allocation2 + $0x81] sm:$0xff]
        %v905 = vld [vmem:[#allocation2 + $0x91] sm:$0xff]
        %v906 = vld [vmem:[%s832 + $0x1] sm:$0x1]
        %v907 = vlaneseq
        %v908 = vshrl.u32 %v907, 7
        %v909 = vsub.s32 0, %v908
        %v910 = vrot.slane %v906, %v909
        %v911 = vmul.f32 %v896, %v910
        %v912 = vmul.f32 %v897, %v910
        %v913 = vmul.f32 %v898, %v910
        %v914 = vmul.f32 %v899, %v910
        %v915 = vmul.f32 %v900, %v910
        %v916 = vmul.f32 %v901, %v910
        %v917 = vmul.f32 %v902, %v910
        %v918 = vmul.f32 %v903, %v910
        %v919 = vadd.f32 %v888, %v911
        %v920 = vadd.f32 %v889, %v912
        %v921 = vadd.f32 %v890, %v913
        %v922 = vadd.f32 %v891, %v914
        %v923 = vadd.f32 %v892, %v915
        %v924 = vadd.f32 %v893, %v916
        %v925 = vadd.f32 %v894, %v917
        %v926 = vadd.f32 %v895, %v918
        %v927 = vld [vmem:[%s832 + $0x4] sm:$0x1]
        %v928 = vlaneseq
        %v929 = vshrl.u32 %v928, 7
        %v930 = vsub.s32 0, %v929
        %v931 = vrot.slane %v927, %v930
        %v932 = vmul.f32 %v897, %v931
        %v933 = vmul.f32 %v898, %v931
        %v934 = vmul.f32 %v899, %v931
        %v935 = vmul.f32 %v900, %v931
        %v936 = vmul.f32 %v901, %v931
        %v937 = vmul.f32 %v902, %v931
        %v938 = vmul.f32 %v903, %v931
        %v939 = vmul.f32 %v904, %v931
        %v940 = vadd.f32 %v919, %v932
        %v941 = vadd.f32 %v920, %v933
        %v942 = vadd.f32 %v921, %v934
        %v943 = vadd.f32 %v922, %v935
        %v944 = vadd.f32 %v923, %v936
        %v945 = vadd.f32 %v924, %v937
        %v946 = vadd.f32 %v925, %v938
        %v947 = vadd.f32 %v926, %v939
        %v948 = vld [vmem:[%s832 + $0x7] sm:$0x1]
        %v949 = vlaneseq
        %v950 = vshrl.u32 %v949, 7
        %v951 = vsub.s32 0, %v950
        %v952 = vrot.slane %v948, %v951
        %v953 = vmul.f32 %v898, %v952
        %v954 = vmul.f32 %v899, %v952
        %v955 = vmul.f32 %v900, %v952
        %v956 = vmul.f32 %v901, %v952
        %v957 = vmul.f32 %v902, %v952
        %v958 = vmul.f32 %v903, %v952
        %v959 = vmul.f32 %v904, %v952
        %v960 = vmul.f32 %v905, %v952
        %v961 = vadd.f32 %v940, %v953
        %v962 = vadd.f32 %v941, %v954
        %v963 = vadd.f32 %v942, %v955
        %v964 = vadd.f32 %v943, %v956
        %v965 = vadd.f32 %v944, %v957
        %v966 = vadd.f32 %v945, %v958
        %v967 = vadd.f32 %v946, %v959
        %v968 = vadd.f32 %v947, %v960
        %v969 = vld [vmem:[#allocation2 + $0x2] sm:$0xff]
        %v970 = vld [vmem:[#allocation2 + $0x12] sm:$0xff]
        %v971 = vld [vmem:[#allocation2 + $0x22] sm:$0xff]
        %v972 = vld [vmem:[#allocation2 + $0x32] sm:$0xff]
        %v973 = vld [vmem:[#allocation2 + $0x42] sm:$0xff]
        %v974 = vld [vmem:[#allocation2 + $0x52] sm:$0xff]
        %v975 = vld [vmem:[#allocation2 + $0x62] sm:$0xff]
        %v976 = vld [vmem:[#allocation2 + $0x72] sm:$0xff]
        %v977 = vld [vmem:[#allocation2 + $0x82] sm:$0xff]
        %v978 = vld [vmem:[#allocation2 + $0x92] sm:$0xff]
        %v979 = vld [vmem:[%s832 + $0x2] sm:$0x1]
        %v980 = vlaneseq
        %v981 = vshrl.u32 %v980, 7
        %v982 = vsub.s32 0, %v981
        %v983 = vrot.slane %v979, %v982
        %v984 = vmul.f32 %v969, %v983
        %v985 = vmul.f32 %v970, %v983
        %v986 = vmul.f32 %v971, %v983
        %v987 = vmul.f32 %v972, %v983
        %v988 = vmul.f32 %v973, %v983
        %v989 = vmul.f32 %v974, %v983
        %v990 = vmul.f32 %v975, %v983
        %v991 = vmul.f32 %v976, %v983
        %v992 = vadd.f32 %v961, %v984
        %v993 = vadd.f32 %v962, %v985
        %v994 = vadd.f32 %v963, %v986
        %v995 = vadd.f32 %v964, %v987
        %v996 = vadd.f32 %v965, %v988
        %v997 = vadd.f32 %v966, %v989
        %v998 = vadd.f32 %v967, %v990
        %v999 = vadd.f32 %v968, %v991
        %v1000 = vld [vmem:[%s832 + $0x5] sm:$0x1]
        %v1001 = vlaneseq
        %v1002 = vshrl.u32 %v1001, 7
        %v1003 = vsub.s32 0, %v1002
        %v1004 = vrot.slane %v1000, %v1003
        %v1005 = vmul.f32 %v970, %v1004
        %v1006 = vmul.f32 %v971, %v1004
        %v1007 = vmul.f32 %v972, %v1004
        %v1008 = vmul.f32 %v973, %v1004
        %v1009 = vmul.f32 %v974, %v1004
        %v1010 = vmul.f32 %v975, %v1004
        %v1011 = vmul.f32 %v976, %v1004
        %v1012 = vmul.f32 %v977, %v1004
        %v1013 = vadd.f32 %v992, %v1005
        %v1014 = vadd.f32 %v993, %v1006
        %v1015 = vadd.f32 %v994, %v1007
        %v1016 = vadd.f32 %v995, %v1008
        %v1017 = vadd.f32 %v996, %v1009
        %v1018 = vadd.f32 %v997, %v1010
        %v1019 = vadd.f32 %v998, %v1011
        %v1020 = vadd.f32 %v999, %v1012
        %v1021 = vld [vmem:[%s832 + $0x8] sm:$0x1]
        %v1022 = vlaneseq
        %v1023 = vshrl.u32 %v1022, 7
        %v1024 = vsub.s32 0, %v1023
        %v1025 = vrot.slane %v1021, %v1024
        %v1026 = vmul.f32 %v971, %v1025
        %v1027 = vmul.f32 %v972, %v1025
        %v1028 = vmul.f32 %v973, %v1025
        %v1029 = vmul.f32 %v974, %v1025
        %v1030 = vmul.f32 %v975, %v1025
        %v1031 = vmul.f32 %v976, %v1025
        %v1032 = vmul.f32 %v977, %v1025
        %v1033 = vmul.f32 %v978, %v1025
        %v1034 = vadd.f32 %v1013, %v1026
        %v1035 = vadd.f32 %v1014, %v1027
        %v1036 = vadd.f32 %v1015, %v1028
        %v1037 = vadd.f32 %v1016, %v1029
        %v1038 = vadd.f32 %v1017, %v1030
        %v1039 = vadd.f32 %v1018, %v1031
        %v1040 = vadd.f32 %v1019, %v1032
        %v1041 = vadd.f32 %v1020, %v1033
        %1050 = vrot.lane.b32.xlu0 %v1034, 112
        %v1051 = vpop.permute.xlu0 %1050
        %1052 = vrot.lane.b32.xlu0 %v1035, 112
        %v1053 = vpop.permute.xlu0 %1052
        %1054 = vrot.lane.b32.xlu0 %v1036, 112
        %v1055 = vpop.permute.xlu0 %1054
        %1056 = vrot.lane.b32.xlu0 %v1037, 112
        %v1057 = vpop.permute.xlu0 %1056
        %1058 = vrot.lane.b32.xlu0 %v1038, 112
        %v1059 = vpop.permute.xlu0 %1058
        %1060 = vrot.lane.b32.xlu0 %v1039, 112
        %v1061 = vpop.permute.xlu0 %1060
        %1062 = vrot.lane.b32.xlu0 %v1040, 112
        %v1063 = vpop.permute.xlu0 %1062
        %1064 = vrot.lane.b32.xlu0 %v1041, 112
        %v1065 = vpop.permute.xlu0 %1064
        %v1074 = vadd.f32 %v1034, %v1051
        %v1075 = vadd.f32 %v1035, %v1053
        %v1076 = vadd.f32 %v1036, %v1055
        %v1077 = vadd.f32 %v1037, %v1057
        %v1078 = vadd.f32 %v1038, %v1059
        %v1079 = vadd.f32 %v1039, %v1061
        %v1080 = vadd.f32 %v1040, %v1063
        %v1081 = vadd.f32 %v1041, %v1065
        %v1082 = vmax.f32 %v1074, 0.0
        %v1083 = vmax.f32 %v1075, 0.0
        %v1084 = vmax.f32 %v1076, 0.0
        %v1085 = vmax.f32 %v1077, 0.0
        %v1086 = vmax.f32 %v1078, 0.0
        %v1087 = vmax.f32 %v1079, 0.0
        %v1088 = vmax.f32 %v1080, 0.0
        %v1089 = vmax.f32 %v1081, 0.0
        %vm1090 = vcmask 130048
        %1091 = vst.msk [vmem:[%s525 + $0x1] sm:$0xff] %vm1090, %v1082
        %1092 = vst.msk [vmem:[%s525 + $0x11] sm:$0xff] %vm1090, %v1083
        %1093 = vst.msk [vmem:[%s525 + $0x21] sm:$0xff] %vm1090, %v1084
        %1094 = vst.msk [vmem:[%s525 + $0x31] sm:$0xff] %vm1090, %v1085
        %1095 = vst.msk [vmem:[%s525 + $0x41] sm:$0xff] %vm1090, %v1086
        %1096 = vst.msk [vmem:[%s525 + $0x51] sm:$0xff] %vm1090, %v1087
        %1097 = vst.msk [vmem:[%s525 + $0x61] sm:$0xff] %vm1090, %v1088
        %1098 = vst.msk [vmem:[%s525 + $0x71] sm:$0xff] %vm1090, %v1089
        %v1099 = vld [vmem:[%s3 + $0x3] sm:$0x1]
        %v1100 = vlaneseq
        %v1101 = vshrl.u32 %v1100, 7
        %v1102 = vsub.s32 0, %v1101
        %v1103 = vrot.slane %v1099, %v1102
        %v1104 = vld [vmem:[#allocation3] sm:$0xff]
        %v1105 = vld [vmem:[#allocation3 + $0x10] sm:$0xff]
        %v1106 = vld [vmem:[#allocation3 + $0x20] sm:$0xff]
        %v1107 = vld [vmem:[#allocation3 + $0x30] sm:$0xff]
        %v1108 = vld [vmem:[#allocation3 + $0x40] sm:$0xff]
        %v1109 = vld [vmem:[#allocation3 + $0x50] sm:$0xff]
        %v1110 = vld [vmem:[#allocation3 + $0x60] sm:$0xff]
        %v1111 = vld [vmem:[#allocation3 + $0x70] sm:$0xff]
        %v1112 = vld [vmem:[#allocation3 + $0x80] sm:$0xff]
        %v1113 = vld [vmem:[#allocation3 + $0x90] sm:$0xff]
        %s1114 = scalar_lea.vmem %s1, 48
        %v1115 = vld [vmem:[%s1114] sm:$0x1]
        %v1116 = vlaneseq
        %v1117 = vshrl.u32 %v1116, 7
        %v1118 = vsub.s32 0, %v1117
        %v1119 = vrot.slane %v1115, %v1118
        %v1120 = vmul.f32 %v1104, %v1119
        %v1121 = vmul.f32 %v1105, %v1119
        %v1122 = vmul.f32 %v1106, %v1119
        %v1123 = vmul.f32 %v1107, %v1119
        %v1124 = vmul.f32 %v1108, %v1119
        %v1125 = vmul.f32 %v1109, %v1119
        %v1126 = vmul.f32 %v1110, %v1119
        %v1127 = vmul.f32 %v1111, %v1119
        %v1128 = vadd.f32 %v1103, %v1120
        %v1129 = vadd.f32 %v1103, %v1121
        %v1130 = vadd.f32 %v1103, %v1122
        %v1131 = vadd.f32 %v1103, %v1123
        %v1132 = vadd.f32 %v1103, %v1124
        %v1133 = vadd.f32 %v1103, %v1125
        %v1134 = vadd.f32 %v1103, %v1126
        %v1135 = vadd.f32 %v1103, %v1127
        %v1136 = vld [vmem:[%s1114 + $0x3] sm:$0x1]
        %v1137 = vlaneseq
        %v1138 = vshrl.u32 %v1137, 7
        %v1139 = vsub.s32 0, %v1138
        %v1140 = vrot.slane %v1136, %v1139
        %v1141 = vmul.f32 %v1105, %v1140
        %v1142 = vmul.f32 %v1106, %v1140
        %v1143 = vmul.f32 %v1107, %v1140
        %v1144 = vmul.f32 %v1108, %v1140
        %v1145 = vmul.f32 %v1109, %v1140
        %v1146 = vmul.f32 %v1110, %v1140
        %v1147 = vmul.f32 %v1111, %v1140
        %v1148 = vmul.f32 %v1112, %v1140
        %v1149 = vadd.f32 %v1128, %v1141
        %v1150 = vadd.f32 %v1129, %v1142
        %v1151 = vadd.f32 %v1130, %v1143
        %v1152 = vadd.f32 %v1131, %v1144
        %v1153 = vadd.f32 %v1132, %v1145
        %v1154 = vadd.f32 %v1133, %v1146
        %v1155 = vadd.f32 %v1134, %v1147
        %v1156 = vadd.f32 %v1135, %v1148
        %v1157 = vld [vmem:[%s1114 + $0x6] sm:$0x1]
        %v1158 = vlaneseq
        %v1159 = vshrl.u32 %v1158, 7
        %v1160 = vsub.s32 0, %v1159
        %v1161 = vrot.slane %v1157, %v1160
        %v1162 = vmul.f32 %v1106, %v1161
        %v1163 = vmul.f32 %v1107, %v1161
        %v1164 = vmul.f32 %v1108, %v1161
        %v1165 = vmul.f32 %v1109, %v1161
        %v1166 = vmul.f32 %v1110, %v1161
        %v1167 = vmul.f32 %v1111, %v1161
        %v1168 = vmul.f32 %v1112, %v1161
        %v1169 = vmul.f32 %v1113, %v1161
        %v1170 = vadd.f32 %v1149, %v1162
        %v1171 = vadd.f32 %v1150, %v1163
        %v1172 = vadd.f32 %v1151, %v1164
        %v1173 = vadd.f32 %v1152, %v1165
        %v1174 = vadd.f32 %v1153, %v1166
        %v1175 = vadd.f32 %v1154, %v1167
        %v1176 = vadd.f32 %v1155, %v1168
        %v1177 = vadd.f32 %v1156, %v1169
        %v1178 = vld [vmem:[#allocation3 + $0x1] sm:$0xff]
        %v1179 = vld [vmem:[#allocation3 + $0x11] sm:$0xff]
        %v1180 = vld [vmem:[#allocation3 + $0x21] sm:$0xff]
        %v1181 = vld [vmem:[#allocation3 + $0x31] sm:$0xff]
        %v1182 = vld [vmem:[#allocation3 + $0x41] sm:$0xff]
        %v1183 = vld [vmem:[#allocation3 + $0x51] sm:$0xff]
        %v1184 = vld [vmem:[#allocation3 + $0x61] sm:$0xff]
        %v1185 = vld [vmem:[#allocation3 + $0x71] sm:$0xff]
        %v1186 = vld [vmem:[#allocation3 + $0x81] sm:$0xff]
        %v1187 = vld [vmem:[#allocation3 + $0x91] sm:$0xff]
        %v1188 = vld [vmem:[%s1114 + $0x1] sm:$0x1]
        %v1189 = vlaneseq
        %v1190 = vshrl.u32 %v1189, 7
        %v1191 = vsub.s32 0, %v1190
        %v1192 = vrot.slane %v1188, %v1191
        %v1193 = vmul.f32 %v1178, %v1192
        %v1194 = vmul.f32 %v1179, %v1192
        %v1195 = vmul.f32 %v1180, %v1192
        %v1196 = vmul.f32 %v1181, %v1192
        %v1197 = vmul.f32 %v1182, %v1192
        %v1198 = vmul.f32 %v1183, %v1192
        %v1199 = vmul.f32 %v1184, %v1192
        %v1200 = vmul.f32 %v1185, %v1192
        %v1201 = vadd.f32 %v1170, %v1193
        %v1202 = vadd.f32 %v1171, %v1194
        %v1203 = vadd.f32 %v1172, %v1195
        %v1204 = vadd.f32 %v1173, %v1196
        %v1205 = vadd.f32 %v1174, %v1197
        %v1206 = vadd.f32 %v1175, %v1198
        %v1207 = vadd.f32 %v1176, %v1199
        %v1208 = vadd.f32 %v1177, %v1200
        %v1209 = vld [vmem:[%s1114 + $0x4] sm:$0x1]
        %v1210 = vlaneseq
        %v1211 = vshrl.u32 %v1210, 7
        %v1212 = vsub.s32 0, %v1211
        %v1213 = vrot.slane %v1209, %v1212
        %v1214 = vmul.f32 %v1179, %v1213
        %v1215 = vmul.f32 %v1180, %v1213
        %v1216 = vmul.f32 %v1181, %v1213
        %v1217 = vmul.f32 %v1182, %v1213
        %v1218 = vmul.f32 %v1183, %v1213
        %v1219 = vmul.f32 %v1184, %v1213
        %v1220 = vmul.f32 %v1185, %v1213
        %v1221 = vmul.f32 %v1186, %v1213
        %v1222 = vadd.f32 %v1201, %v1214
        %v1223 = vadd.f32 %v1202, %v1215
        %v1224 = vadd.f32 %v1203, %v1216
        %v1225 = vadd.f32 %v1204, %v1217
        %v1226 = vadd.f32 %v1205, %v1218
        %v1227 = vadd.f32 %v1206, %v1219
        %v1228 = vadd.f32 %v1207, %v1220
        %v1229 = vadd.f32 %v1208, %v1221
        %v1230 = vld [vmem:[%s1114 + $0x7] sm:$0x1]
        %v1231 = vlaneseq
        %v1232 = vshrl.u32 %v1231, 7
        %v1233 = vsub.s32 0, %v1232
        %v1234 = vrot.slane %v1230, %v1233
        %v1235 = vmul.f32 %v1180, %v1234
        %v1236 = vmul.f32 %v1181, %v1234
        %v1237 = vmul.f32 %v1182, %v1234
        %v1238 = vmul.f32 %v1183, %v1234
        %v1239 = vmul.f32 %v1184, %v1234
        %v1240 = vmul.f32 %v1185, %v1234
        %v1241 = vmul.f32 %v1186, %v1234
        %v1242 = vmul.f32 %v1187, %v1234
        %v1243 = vadd.f32 %v1222, %v1235
        %v1244 = vadd.f32 %v1223, %v1236
        %v1245 = vadd.f32 %v1224, %v1237
        %v1246 = vadd.f32 %v1225, %v1238
        %v1247 = vadd.f32 %v1226, %v1239
        %v1248 = vadd.f32 %v1227, %v1240
        %v1249 = vadd.f32 %v1228, %v1241
        %v1250 = vadd.f32 %v1229, %v1242
        %v1251 = vld [vmem:[#allocation3 + $0x2] sm:$0xff]
        %v1252 = vld [vmem:[#allocation3 + $0x12] sm:$0xff]
        %v1253 = vld [vmem:[#allocation3 + $0x22] sm:$0xff]
        %v1254 = vld [vmem:[#allocation3 + $0x32] sm:$0xff]
        %v1255 = vld [vmem:[#allocation3 + $0x42] sm:$0xff]
        %v1256 = vld [vmem:[#allocation3 + $0x52] sm:$0xff]
        %v1257 = vld [vmem:[#allocation3 + $0x62] sm:$0xff]
        %v1258 = vld [vmem:[#allocation3 + $0x72] sm:$0xff]
        %v1259 = vld [vmem:[#allocation3 + $0x82] sm:$0xff]
        %v1260 = vld [vmem:[#allocation3 + $0x92] sm:$0xff]
        %v1261 = vld [vmem:[%s1114 + $0x2] sm:$0x1]
        %v1262 = vlaneseq
        %v1263 = vshrl.u32 %v1262, 7
        %v1264 = vsub.s32 0, %v1263
        %v1265 = vrot.slane %v1261, %v1264
        %v1266 = vmul.f32 %v1251, %v1265
        %v1267 = vmul.f32 %v1252, %v1265
        %v1268 = vmul.f32 %v1253, %v1265
        %v1269 = vmul.f32 %v1254, %v1265
        %v1270 = vmul.f32 %v1255, %v1265
        %v1271 = vmul.f32 %v1256, %v1265
        %v1272 = vmul.f32 %v1257, %v1265
        %v1273 = vmul.f32 %v1258, %v1265
        %v1274 = vadd.f32 %v1243, %v1266
        %v1275 = vadd.f32 %v1244, %v1267
        %v1276 = vadd.f32 %v1245, %v1268
        %v1277 = vadd.f32 %v1246, %v1269
        %v1278 = vadd.f32 %v1247, %v1270
        %v1279 = vadd.f32 %v1248, %v1271
        %v1280 = vadd.f32 %v1249, %v1272
        %v1281 = vadd.f32 %v1250, %v1273
        %v1282 = vld [vmem:[%s1114 + $0x5] sm:$0x1]
        %v1283 = vlaneseq
        %v1284 = vshrl.u32 %v1283, 7
        %v1285 = vsub.s32 0, %v1284
        %v1286 = vrot.slane %v1282, %v1285
        %v1287 = vmul.f32 %v1252, %v1286
        %v1288 = vmul.f32 %v1253, %v1286
        %v1289 = vmul.f32 %v1254, %v1286
        %v1290 = vmul.f32 %v1255, %v1286
        %v1291 = vmul.f32 %v1256, %v1286
        %v1292 = vmul.f32 %v1257, %v1286
        %v1293 = vmul.f32 %v1258, %v1286
        %v1294 = vmul.f32 %v1259, %v1286
        %v1295 = vadd.f32 %v1274, %v1287
        %v1296 = vadd.f32 %v1275, %v1288
        %v1297 = vadd.f32 %v1276, %v1289
        %v1298 = vadd.f32 %v1277, %v1290
        %v1299 = vadd.f32 %v1278, %v1291
        %v1300 = vadd.f32 %v1279, %v1292
        %v1301 = vadd.f32 %v1280, %v1293
        %v1302 = vadd.f32 %v1281, %v1294
        %v1303 = vld [vmem:[%s1114 + $0x8] sm:$0x1]
        %v1304 = vlaneseq
        %v1305 = vshrl.u32 %v1304, 7
        %v1306 = vsub.s32 0, %v1305
        %v1307 = vrot.slane %v1303, %v1306
        %v1308 = vmul.f32 %v1253, %v1307
        %v1309 = vmul.f32 %v1254, %v1307
        %v1310 = vmul.f32 %v1255, %v1307
        %v1311 = vmul.f32 %v1256, %v1307
        %v1312 = vmul.f32 %v1257, %v1307
        %v1313 = vmul.f32 %v1258, %v1307
        %v1314 = vmul.f32 %v1259, %v1307
        %v1315 = vmul.f32 %v1260, %v1307
        %v1316 = vadd.f32 %v1295, %v1308
        %v1317 = vadd.f32 %v1296, %v1309
        %v1318 = vadd.f32 %v1297, %v1310
        %v1319 = vadd.f32 %v1298, %v1311
        %v1320 = vadd.f32 %v1299, %v1312
        %v1321 = vadd.f32 %v1300, %v1313
        %v1322 = vadd.f32 %v1301, %v1314
        %v1323 = vadd.f32 %v1302, %v1315
        %1332 = vrot.lane.b32.xlu0 %v1316, 120
        %v1333 = vpop.permute.xlu0 %1332
        %1334 = vrot.lane.b32.xlu0 %v1317, 120
        %v1335 = vpop.permute.xlu0 %1334
        %1336 = vrot.lane.b32.xlu0 %v1318, 120
        %v1337 = vpop.permute.xlu0 %1336
        %1338 = vrot.lane.b32.xlu0 %v1319, 120
        %v1339 = vpop.permute.xlu0 %1338
        %1340 = vrot.lane.b32.xlu0 %v1320, 120
        %v1341 = vpop.permute.xlu0 %1340
        %1342 = vrot.lane.b32.xlu0 %v1321, 120
        %v1343 = vpop.permute.xlu0 %1342
        %1344 = vrot.lane.b32.xlu0 %v1322, 120
        %v1345 = vpop.permute.xlu0 %1344
        %1346 = vrot.lane.b32.xlu0 %v1323, 120
        %v1347 = vpop.permute.xlu0 %1346
        %v1356 = vadd.f32 %v1316, %v1333
        %v1357 = vadd.f32 %v1317, %v1335
        %v1358 = vadd.f32 %v1318, %v1337
        %v1359 = vadd.f32 %v1319, %v1339
        %v1360 = vadd.f32 %v1320, %v1341
        %v1361 = vadd.f32 %v1321, %v1343
        %v1362 = vadd.f32 %v1322, %v1345
        %v1363 = vadd.f32 %v1323, %v1347
        %v1364 = vmax.f32 %v1356, 0.0
        %v1365 = vmax.f32 %v1357, 0.0
        %v1366 = vmax.f32 %v1358, 0.0
        %v1367 = vmax.f32 %v1359, 0.0
        %v1368 = vmax.f32 %v1360, 0.0
        %v1369 = vmax.f32 %v1361, 0.0
        %v1370 = vmax.f32 %v1362, 0.0
        %v1371 = vmax.f32 %v1363, 0.0
        %vm1372 = vcmask 64512
        %1373 = vst.msk [vmem:[%s244 + $0x1] sm:$0xff] %vm1372, %v1364
        %1374 = vst.msk [vmem:[%s244 + $0x11] sm:$0xff] %vm1372, %v1365
        %1375 = vst.msk [vmem:[%s244 + $0x21] sm:$0xff] %vm1372, %v1366
        %1376 = vst.msk [vmem:[%s244 + $0x31] sm:$0xff] %vm1372, %v1367
        %1377 = vst.msk [vmem:[%s244 + $0x41] sm:$0xff] %vm1372, %v1368
        %1378 = vst.msk [vmem:[%s244 + $0x51] sm:$0xff] %vm1372, %v1369
        %1379 = vst.msk [vmem:[%s244 + $0x61] sm:$0xff] %vm1372, %v1370
        %1380 = vst.msk [vmem:[%s244 + $0x71] sm:$0xff] %vm1372, %v1371
        %v1381 = vld [vmem:[%s3 + $0x4] sm:$0x1]
        %v1382 = vlaneseq
        %v1383 = vshrl.u32 %v1382, 7
        %v1384 = vsub.s32 0, %v1383
        %v1385 = vrot.slane %v1381, %v1384
        %v1386 = vld [vmem:[#allocation2] sm:$0xff]
        %v1387 = vld [vmem:[#allocation2 + $0x10] sm:$0xff]
        %v1388 = vld [vmem:[#allocation2 + $0x20] sm:$0xff]
        %v1389 = vld [vmem:[#allocation2 + $0x30] sm:$0xff]
        %v1390 = vld [vmem:[#allocation2 + $0x40] sm:$0xff]
        %v1391 = vld [vmem:[#allocation2 + $0x50] sm:$0xff]
        %v1392 = vld [vmem:[#allocation2 + $0x60] sm:$0xff]
        %v1393 = vld [vmem:[#allocation2 + $0x70] sm:$0xff]
        %v1394 = vld [vmem:[#allocation2 + $0x80] sm:$0xff]
        %v1395 = vld [vmem:[#allocation2 + $0x90] sm:$0xff]
        %s1396 = scalar_lea.vmem %s1, 64
        %v1397 = vld [vmem:[%s1396] sm:$0x1]
        %v1398 = vlaneseq
        %v1399 = vshrl.u32 %v1398, 7
        %v1400 = vsub.s32 0, %v1399
        %v1401 = vrot.slane %v1397, %v1400
        %v1402 = vmul.f32 %v1386, %v1401
        %v1403 = vmul.f32 %v1387, %v1401
        %v1404 = vmul.f32 %v1388, %v1401
        %v1405 = vmul.f32 %v1389, %v1401
        %v1406 = vmul.f32 %v1390, %v1401
        %v1407 = vmul.f32 %v1391, %v1401
        %v1408 = vmul.f32 %v1392, %v1401
        %v1409 = vmul.f32 %v1393, %v1401
        %v1410 = vadd.f32 %v1385, %v1402
        %v1411 = vadd.f32 %v1385, %v1403
        %v1412 = vadd.f32 %v1385, %v1404
        %v1413 = vadd.f32 %v1385, %v1405
        %v1414 = vadd.f32 %v1385, %v1406
        %v1415 = vadd.f32 %v1385, %v1407
        %v1416 = vadd.f32 %v1385, %v1408
        %v1417 = vadd.f32 %v1385, %v1409
        %v1418 = vld [vmem:[%s1396 + $0x3] sm:$0x1]
        %v1419 = vlaneseq
        %v1420 = vshrl.u32 %v1419, 7
        %v1421 = vsub.s32 0, %v1420
        %v1422 = vrot.slane %v1418, %v1421
        %v1423 = vmul.f32 %v1387, %v1422
        %v1424 = vmul.f32 %v1388, %v1422
        %v1425 = vmul.f32 %v1389, %v1422
        %v1426 = vmul.f32 %v1390, %v1422
        %v1427 = vmul.f32 %v1391, %v1422
        %v1428 = vmul.f32 %v1392, %v1422
        %v1429 = vmul.f32 %v1393, %v1422
        %v1430 = vmul.f32 %v1394, %v1422
        %v1431 = vadd.f32 %v1410, %v1423
        %v1432 = vadd.f32 %v1411, %v1424
        %v1433 = vadd.f32 %v1412, %v1425
        %v1434 = vadd.f32 %v1413, %v1426
        %v1435 = vadd.f32 %v1414, %v1427
        %v1436 = vadd.f32 %v1415, %v1428
        %v1437 = vadd.f32 %v1416, %v1429
        %v1438 = vadd.f32 %v1417, %v1430
        %v1439 = vld [vmem:[%s1396 + $0x6] sm:$0x1]
        %v1440 = vlaneseq
        %v1441 = vshrl.u32 %v1440, 7
        %v1442 = vsub.s32 0, %v1441
        %v1443 = vrot.slane %v1439, %v1442
        %v1444 = vmul.f32 %v1388, %v1443
        %v1445 = vmul.f32 %v1389, %v1443
        %v1446 = vmul.f32 %v1390, %v1443
        %v1447 = vmul.f32 %v1391, %v1443
        %v1448 = vmul.f32 %v1392, %v1443
        %v1449 = vmul.f32 %v1393, %v1443
        %v1450 = vmul.f32 %v1394, %v1443
        %v1451 = vmul.f32 %v1395, %v1443
        %v1452 = vadd.f32 %v1431, %v1444
        %v1453 = vadd.f32 %v1432, %v1445
        %v1454 = vadd.f32 %v1433, %v1446
        %v1455 = vadd.f32 %v1434, %v1447
        %v1456 = vadd.f32 %v1435, %v1448
        %v1457 = vadd.f32 %v1436, %v1449
        %v1458 = vadd.f32 %v1437, %v1450
        %v1459 = vadd.f32 %v1438, %v1451
        %v1460 = vld [vmem:[#allocation2 + $0x1] sm:$0xff]
        %v1461 = vld [vmem:[#allocation2 + $0x11] sm:$0xff]
        %v1462 = vld [vmem:[#allocation2 + $0x21] sm:$0xff]
        %v1463 = vld [vmem:[#allocation2 + $0x31] sm:$0xff]
        %v1464 = vld [vmem:[#allocation2 + $0x41] sm:$0xff]
        %v1465 = vld [vmem:[#allocation2 + $0x51] sm:$0xff]
        %v1466 = vld [vmem:[#allocation2 + $0x61] sm:$0xff]
        %v1467 = vld [vmem:[#allocation2 + $0x71] sm:$0xff]
        %v1468 = vld [vmem:[#allocation2 + $0x81] sm:$0xff]
        %v1469 = vld [vmem:[#allocation2 + $0x91] sm:$0xff]
        %v1470 = vld [vmem:[%s1396 + $0x1] sm:$0x1]
        %v1471 = vlaneseq
        %v1472 = vshrl.u32 %v1471, 7
        %v1473 = vsub.s32 0, %v1472
        %v1474 = vrot.slane %v1470, %v1473
        %v1475 = vmul.f32 %v1460, %v1474
        %v1476 = vmul.f32 %v1461, %v1474
        %v1477 = vmul.f32 %v1462, %v1474
        %v1478 = vmul.f32 %v1463, %v1474
        %v1479 = vmul.f32 %v1464, %v1474
        %v1480 = vmul.f32 %v1465, %v1474
        %v1481 = vmul.f32 %v1466, %v1474
        %v1482 = vmul.f32 %v1467, %v1474
        %v1483 = vadd.f32 %v1452, %v1475
        %v1484 = vadd.f32 %v1453, %v1476
        %v1485 = vadd.f32 %v1454, %v1477
        %v1486 = vadd.f32 %v1455, %v1478
        %v1487 = vadd.f32 %v1456, %v1479
        %v1488 = vadd.f32 %v1457, %v1480
        %v1489 = vadd.f32 %v1458, %v1481
        %v1490 = vadd.f32 %v1459, %v1482
        %v1491 = vld [vmem:[%s1396 + $0x4] sm:$0x1]
        %v1492 = vlaneseq
        %v1493 = vshrl.u32 %v1492, 7
        %v1494 = vsub.s32 0, %v1493
        %v1495 = vrot.slane %v1491, %v1494
        %v1496 = vmul.f32 %v1461, %v1495
        %v1497 = vmul.f32 %v1462, %v1495
        %v1498 = vmul.f32 %v1463, %v1495
        %v1499 = vmul.f32 %v1464, %v1495
        %v1500 = vmul.f32 %v1465, %v1495
        %v1501 = vmul.f32 %v1466, %v1495
        %v1502 = vmul.f32 %v1467, %v1495
        %v1503 = vmul.f32 %v1468, %v1495
        %v1504 = vadd.f32 %v1483, %v1496
        %v1505 = vadd.f32 %v1484, %v1497
        %v1506 = vadd.f32 %v1485, %v1498
        %v1507 = vadd.f32 %v1486, %v1499
        %v1508 = vadd.f32 %v1487, %v1500
        %v1509 = vadd.f32 %v1488, %v1501
        %v1510 = vadd.f32 %v1489, %v1502
        %v1511 = vadd.f32 %v1490, %v1503
        %v1512 = vld [vmem:[%s1396 + $0x7] sm:$0x1]
        %v1513 = vlaneseq
        %v1514 = vshrl.u32 %v1513, 7
        %v1515 = vsub.s32 0, %v1514
        %v1516 = vrot.slane %v1512, %v1515
        %v1517 = vmul.f32 %v1462, %v1516
        %v1518 = vmul.f32 %v1463, %v1516
        %v1519 = vmul.f32 %v1464, %v1516
        %v1520 = vmul.f32 %v1465, %v1516
        %v1521 = vmul.f32 %v1466, %v1516
        %v1522 = vmul.f32 %v1467, %v1516
        %v1523 = vmul.f32 %v1468, %v1516
        %v1524 = vmul.f32 %v1469, %v1516
        %v1525 = vadd.f32 %v1504, %v1517
        %v1526 = vadd.f32 %v1505, %v1518
        %v1527 = vadd.f32 %v1506, %v1519
        %v1528 = vadd.f32 %v1507, %v1520
        %v1529 = vadd.f32 %v1508, %v1521
        %v1530 = vadd.f32 %v1509, %v1522
        %v1531 = vadd.f32 %v1510, %v1523
        %v1532 = vadd.f32 %v1511, %v1524
        %v1533 = vld [vmem:[#allocation2 + $0x2] sm:$0xff]
        %v1534 = vld [vmem:[#allocation2 + $0x12] sm:$0xff]
        %v1535 = vld [vmem:[#allocation2 + $0x22] sm:$0xff]
        %v1536 = vld [vmem:[#allocation2 + $0x32] sm:$0xff]
        %v1537 = vld [vmem:[#allocation2 + $0x42] sm:$0xff]
        %v1538 = vld [vmem:[#allocation2 + $0x52] sm:$0xff]
        %v1539 = vld [vmem:[#allocation2 + $0x62] sm:$0xff]
        %v1540 = vld [vmem:[#allocation2 + $0x72] sm:$0xff]
        %v1541 = vld [vmem:[#allocation2 + $0x82] sm:$0xff]
        %v1542 = vld [vmem:[#allocation2 + $0x92] sm:$0xff]
        %v1543 = vld [vmem:[%s1396 + $0x2] sm:$0x1]
        %v1544 = vlaneseq
        %v1545 = vshrl.u32 %v1544, 7
        %v1546 = vsub.s32 0, %v1545
        %v1547 = vrot.slane %v1543, %v1546
        %v1548 = vmul.f32 %v1533, %v1547
        %v1549 = vmul.f32 %v1534, %v1547
        %v1550 = vmul.f32 %v1535, %v1547
        %v1551 = vmul.f32 %v1536, %v1547
        %v1552 = vmul.f32 %v1537, %v1547
        %v1553 = vmul.f32 %v1538, %v1547
        %v1554 = vmul.f32 %v1539, %v1547
        %v1555 = vmul.f32 %v1540, %v1547
        %v1556 = vadd.f32 %v1525, %v1548
        %v1557 = vadd.f32 %v1526, %v1549
        %v1558 = vadd.f32 %v1527, %v1550
        %v1559 = vadd.f32 %v1528, %v1551
        %v1560 = vadd.f32 %v1529, %v1552
        %v1561 = vadd.f32 %v1530, %v1553
        %v1562 = vadd.f32 %v1531, %v1554
        %v1563 = vadd.f32 %v1532, %v1555
        %v1564 = vld [vmem:[%s1396 + $0x5] sm:$0x1]
        %v1565 = vlaneseq
        %v1566 = vshrl.u32 %v1565, 7
        %v1567 = vsub.s32 0, %v1566
        %v1568 = vrot.slane %v1564, %v1567
        %v1569 = vmul.f32 %v1534, %v1568
        %v1570 = vmul.f32 %v1535, %v1568
        %v1571 = vmul.f32 %v1536, %v1568
        %v1572 = vmul.f32 %v1537, %v1568
        %v1573 = vmul.f32 %v1538, %v1568
        %v1574 = vmul.f32 %v1539, %v1568
        %v1575 = vmul.f32 %v1540, %v1568
        %v1576 = vmul.f32 %v1541, %v1568
        %v1577 = vadd.f32 %v1556, %v1569
        %v1578 = vadd.f32 %v1557, %v1570
        %v1579 = vadd.f32 %v1558, %v1571
        %v1580 = vadd.f32 %v1559, %v1572
        %v1581 = vadd.f32 %v1560, %v1573
        %v1582 = vadd.f32 %v1561, %v1574
        %v1583 = vadd.f32 %v1562, %v1575
        %v1584 = vadd.f32 %v1563, %v1576
        %v1585 = vld [vmem:[%s1396 + $0x8] sm:$0x1]
        %v1586 = vlaneseq
        %v1587 = vshrl.u32 %v1586, 7
        %v1588 = vsub.s32 0, %v1587
        %v1589 = vrot.slane %v1585, %v1588
        %v1590 = vmul.f32 %v1535, %v1589
        %v1591 = vmul.f32 %v1536, %v1589
        %v1592 = vmul.f32 %v1537, %v1589
        %v1593 = vmul.f32 %v1538, %v1589
        %v1594 = vmul.f32 %v1539, %v1589
        %v1595 = vmul.f32 %v1540, %v1589
        %v1596 = vmul.f32 %v1541, %v1589
        %v1597 = vmul.f32 %v1542, %v1589
        %v1598 = vadd.f32 %v1577, %v1590
        %v1599 = vadd.f32 %v1578, %v1591
        %v1600 = vadd.f32 %v1579, %v1592
        %v1601 = vadd.f32 %v1580, %v1593
        %v1602 = vadd.f32 %v1581, %v1594
        %v1603 = vadd.f32 %v1582, %v1595
        %v1604 = vadd.f32 %v1583, %v1596
        %v1605 = vadd.f32 %v1584, %v1597
        %1614 = vrot.lane.b32.xlu0 %v1598, 124
        %v1615 = vpop.permute.xlu0 %1614
        %1616 = vrot.lane.b32.xlu0 %v1599, 124
        %v1617 = vpop.permute.xlu0 %1616
        %1618 = vrot.lane.b32.xlu0 %v1600, 124
        %v1619 = vpop.permute.xlu0 %1618
        %1620 = vrot.lane.b32.xlu0 %v1601, 124
        %v1621 = vpop.permute.xlu0 %1620
        %1622 = vrot.lane.b32.xlu0 %v1602, 124
        %v1623 = vpop.permute.xlu0 %1622
        %1624 = vrot.lane.b32.xlu0 %v1603, 124
        %v1625 = vpop.permute.xlu0 %1624
        %1626 = vrot.lane.b32.xlu0 %v1604, 124
        %v1627 = vpop.permute.xlu0 %1626
        %1628 = vrot.lane.b32.xlu0 %v1605, 124
        %v1629 = vpop.permute.xlu0 %1628
        %v1638 = vadd.f32 %v1598, %v1615
        %v1639 = vadd.f32 %v1599, %v1617
        %v1640 = vadd.f32 %v1600, %v1619
        %v1641 = vadd.f32 %v1601, %v1621
        %v1642 = vadd.f32 %v1602, %v1623
        %v1643 = vadd.f32 %v1603, %v1625
        %v1644 = vadd.f32 %v1604, %v1627
        %v1645 = vadd.f32 %v1605, %v1629
        %v1646 = vmax.f32 %v1638, 0.0
        %v1647 = vmax.f32 %v1639, 0.0
        %v1648 = vmax.f32 %v1640, 0.0
        %v1649 = vmax.f32 %v1641, 0.0
        %v1650 = vmax.f32 %v1642, 0.0
        %v1651 = vmax.f32 %v1643, 0.0
        %v1652 = vmax.f32 %v1644, 0.0
        %v1653 = vmax.f32 %v1645, 0.0
        %vm1654 = vcmask 31744
        %1655 = vst.msk [vmem:[%s525 + $0x1] sm:$0xff] %vm1654, %v1646
        %1656 = vst.msk [vmem:[%s525 + $0x11] sm:$0xff] %vm1654, %v1647
        %1657 = vst.msk [vmem:[%s525 + $0x21] sm:$0xff] %vm1654, %v1648
        %1658 = vst.msk [vmem:[%s525 + $0x31] sm:$0xff] %vm1654, %v1649
        %1659 = vst.msk [vmem:[%s525 + $0x41] sm:$0xff] %vm1654, %v1650
        %1660 = vst.msk [vmem:[%s525 + $0x51] sm:$0xff] %vm1654, %v1651
        %1661 = vst.msk [vmem:[%s525 + $0x61] sm:$0xff] %vm1654, %v1652
        %1662 = vst.msk [vmem:[%s525 + $0x71] sm:$0xff] %vm1654, %v1653
        %v1663 = vld [vmem:[%s3 + $0x5] sm:$0x1]
        %v1664 = vlaneseq
        %v1665 = vshrl.u32 %v1664, 7
        %v1666 = vsub.s32 0, %v1665
        %v1667 = vrot.slane %v1663, %v1666
        %v1668 = vld [vmem:[#allocation3] sm:$0xff]
        %v1669 = vld [vmem:[#allocation3 + $0x10] sm:$0xff]
        %v1670 = vld [vmem:[#allocation3 + $0x20] sm:$0xff]
        %v1671 = vld [vmem:[#allocation3 + $0x30] sm:$0xff]
        %v1672 = vld [vmem:[#allocation3 + $0x40] sm:$0xff]
        %v1673 = vld [vmem:[#allocation3 + $0x50] sm:$0xff]
        %v1674 = vld [vmem:[#allocation3 + $0x60] sm:$0xff]
        %v1675 = vld [vmem:[#allocation3 + $0x70] sm:$0xff]
        %v1676 = vld [vmem:[#allocation3 + $0x80] sm:$0xff]
        %v1677 = vld [vmem:[#allocation3 + $0x90] sm:$0xff]
        %s1678 = scalar_lea.vmem %s1, 80
        %v1679 = vld [vmem:[%s1678] sm:$0x1]
        %v1680 = vlaneseq
        %v1681 = vshrl.u32 %v1680, 7
        %v1682 = vsub.s32 0, %v1681
        %v1683 = vrot.slane %v1679, %v1682
        %v1684 = vmul.f32 %v1668, %v1683
        %v1685 = vmul.f32 %v1669, %v1683
        %v1686 = vmul.f32 %v1670, %v1683
        %v1687 = vmul.f32 %v1671, %v1683
        %v1688 = vmul.f32 %v1672, %v1683
        %v1689 = vmul.f32 %v1673, %v1683
        %v1690 = vmul.f32 %v1674, %v1683
        %v1691 = vmul.f32 %v1675, %v1683
        %v1692 = vadd.f32 %v1667, %v1684
        %v1693 = vadd.f32 %v1667, %v1685
        %v1694 = vadd.f32 %v1667, %v1686
        %v1695 = vadd.f32 %v1667, %v1687
        %v1696 = vadd.f32 %v1667, %v1688
        %v1697 = vadd.f32 %v1667, %v1689
        %v1698 = vadd.f32 %v1667, %v1690
        %v1699 = vadd.f32 %v1667, %v1691
        %v1700 = vld [vmem:[%s1678 + $0x3] sm:$0x1]
        %v1701 = vlaneseq
        %v1702 = vshrl.u32 %v1701, 7
        %v1703 = vsub.s32 0, %v1702
        %v1704 = vrot.slane %v1700, %v1703
        %v1705 = vmul.f32 %v1669, %v1704
        %v1706 = vmul.f32 %v1670, %v1704
        %v1707 = vmul.f32 %v1671, %v1704
        %v1708 = vmul.f32 %v1672, %v1704
        %v1709 = vmul.f32 %v1673, %v1704
        %v1710 = vmul.f32 %v1674, %v1704
        %v1711 = vmul.f32 %v1675, %v1704
        %v1712 = vmul.f32 %v1676, %v1704
        %v1713 = vadd.f32 %v1692, %v1705
        %v1714 = vadd.f32 %v1693, %v1706
        %v1715 = vadd.f32 %v1694, %v1707
        %v1716 = vadd.f32 %v1695, %v1708
        %v1717 = vadd.f32 %v1696, %v1709
        %v1718 = vadd.f32 %v1697, %v1710
        %v1719 = vadd.f32 %v1698, %v1711
        %v1720 = vadd.f32 %v1699, %v1712
        %v1721 = vld [vmem:[%s1678 + $0x6] sm:$0x1]
        %v1722 = vlaneseq
        %v1723 = vshrl.u32 %v1722, 7
        %v1724 = vsub.s32 0, %v1723
        %v1725 = vrot.slane %v1721, %v1724
        %v1726 = vmul.f32 %v1670, %v1725
        %v1727 = vmul.f32 %v1671, %v1725
        %v1728 = vmul.f32 %v1672, %v1725
        %v1729 = vmul.f32 %v1673, %v1725
        %v1730 = vmul.f32 %v1674, %v1725
        %v1731 = vmul.f32 %v1675, %v1725
        %v1732 = vmul.f32 %v1676, %v1725
        %v1733 = vmul.f32 %v1677, %v1725
        %v1734 = vadd.f32 %v1713, %v1726
        %v1735 = vadd.f32 %v1714, %v1727
        %v1736 = vadd.f32 %v1715, %v1728
        %v1737 = vadd.f32 %v1716, %v1729
        %v1738 = vadd.f32 %v1717, %v1730
        %v1739 = vadd.f32 %v1718, %v1731
        %v1740 = vadd.f32 %v1719, %v1732
        %v1741 = vadd.f32 %v1720, %v1733
        %v1742 = vld [vmem:[#allocation3 + $0x1] sm:$0xff]
        %v1743 = vld [vmem:[#allocation3 + $0x11] sm:$0xff]
        %v1744 = vld [vmem:[#allocation3 + $0x21] sm:$0xff]
        %v1745 = vld [vmem:[#allocation3 + $0x31] sm:$0xff]
        %v1746 = vld [vmem:[#allocation3 + $0x41] sm:$0xff]
        %v1747 = vld [vmem:[#allocation3 + $0x51] sm:$0xff]
        %v1748 = vld [vmem:[#allocation3 + $0x61] sm:$0xff]
        %v1749 = vld [vmem:[#allocation3 + $0x71] sm:$0xff]
        %v1750 = vld [vmem:[#allocation3 + $0x81] sm:$0xff]
        %v1751 = vld [vmem:[#allocation3 + $0x91] sm:$0xff]
        %v1752 = vld [vmem:[%s1678 + $0x1] sm:$0x1]
        %v1753 = vlaneseq
        %v1754 = vshrl.u32 %v1753, 7
        %v1755 = vsub.s32 0, %v1754
        %v1756 = vrot.slane %v1752, %v1755
        %v1757 = vmul.f32 %v1742, %v1756
        %v1758 = vmul.f32 %v1743, %v1756
        %v1759 = vmul.f32 %v1744, %v1756
        %v1760 = vmul.f32 %v1745, %v1756
        %v1761 = vmul.f32 %v1746, %v1756
        %v1762 = vmul.f32 %v1747, %v1756
        %v1763 = vmul.f32 %v1748, %v1756
        %v1764 = vmul.f32 %v1749, %v1756
        %v1765 = vadd.f32 %v1734, %v1757
        %v1766 = vadd.f32 %v1735, %v1758
        %v1767 = vadd.f32 %v1736, %v1759
        %v1768 = vadd.f32 %v1737, %v1760
        %v1769 = vadd.f32 %v1738, %v1761
        %v1770 = vadd.f32 %v1739, %v1762
        %v1771 = vadd.f32 %v1740, %v1763
        %v1772 = vadd.f32 %v1741, %v1764
        %v1773 = vld [vmem:[%s1678 + $0x4] sm:$0x1]
        %v1774 = vlaneseq
        %v1775 = vshrl.u32 %v1774, 7
        %v1776 = vsub.s32 0, %v1775
        %v1777 = vrot.slane %v1773, %v1776
        %v1778 = vmul.f32 %v1743, %v1777
        %v1779 = vmul.f32 %v1744, %v1777
        %v1780 = vmul.f32 %v1745, %v1777
        %v1781 = vmul.f32 %v1746, %v1777
        %v1782 = vmul.f32 %v1747, %v1777
        %v1783 = vmul.f32 %v1748, %v1777
        %v1784 = vmul.f32 %v1749, %v1777
        %v1785 = vmul.f32 %v1750, %v1777
        %v1786 = vadd.f32 %v1765, %v1778
        %v1787 = vadd.f32 %v1766, %v1779
        %v1788 = vadd.f32 %v1767, %v1780
        %v1789 = vadd.f32 %v1768, %v1781
        %v1790 = vadd.f32 %v1769, %v1782
        %v1791 = vadd.f32 %v1770, %v1783
        %v1792 = vadd.f32 %v1771, %v1784
        %v1793 = vadd.f32 %v1772, %v1785
        %v1794 = vld [vmem:[%s1678 + $0x7] sm:$0x1]
        %v1795 = vlaneseq
        %v1796 = vshrl.u32 %v1795, 7
        %v1797 = vsub.s32 0, %v1796
        %v1798 = vrot.slane %v1794, %v1797
        %v1799 = vmul.f32 %v1744, %v1798
        %v1800 = vmul.f32 %v1745, %v1798
        %v1801 = vmul.f32 %v1746, %v1798
        %v1802 = vmul.f32 %v1747, %v1798
        %v1803 = vmul.f32 %v1748, %v1798
        %v1804 = vmul.f32 %v1749, %v1798
        %v1805 = vmul.f32 %v1750, %v1798
        %v1806 = vmul.f32 %v1751, %v1798
        %v1807 = vadd.f32 %v1786, %v1799
        %v1808 = vadd.f32 %v1787, %v1800
        %v1809 = vadd.f32 %v1788, %v1801
        %v1810 = vadd.f32 %v1789, %v1802
        %v1811 = vadd.f32 %v1790, %v1803
        %v1812 = vadd.f32 %v1791, %v1804
        %v1813 = vadd.f32 %v1792, %v1805
        %v1814 = vadd.f32 %v1793, %v1806
        %v1815 = vld [vmem:[#allocation3 + $0x2] sm:$0xff]
        %v1816 = vld [vmem:[#allocation3 + $0x12] sm:$0xff]
        %v1817 = vld [vmem:[#allocation3 + $0x22] sm:$0xff]
        %v1818 = vld [vmem:[#allocation3 + $0x32] sm:$0xff]
        %v1819 = vld [vmem:[#allocation3 + $0x42] sm:$0xff]
        %v1820 = vld [vmem:[#allocation3 + $0x52] sm:$0xff]
        %v1821 = vld [vmem:[#allocation3 + $0x62] sm:$0xff]
        %v1822 = vld [vmem:[#allocation3 + $0x72] sm:$0xff]
        %v1823 = vld [vmem:[#allocation3 + $0x82] sm:$0xff]
        %v1824 = vld [vmem:[#allocation3 + $0x92] sm:$0xff]
        %v1825 = vld [vmem:[%s1678 + $0x2] sm:$0x1]
        %v1826 = vlaneseq
        %v1827 = vshrl.u32 %v1826, 7
        %v1828 = vsub.s32 0, %v1827
        %v1829 = vrot.slane %v1825, %v1828
        %v1830 = vmul.f32 %v1815, %v1829
        %v1831 = vmul.f32 %v1816, %v1829
        %v1832 = vmul.f32 %v1817, %v1829
        %v1833 = vmul.f32 %v1818, %v1829
        %v1834 = vmul.f32 %v1819, %v1829
        %v1835 = vmul.f32 %v1820, %v1829
        %v1836 = vmul.f32 %v1821, %v1829
        %v1837 = vmul.f32 %v1822, %v1829
        %v1838 = vadd.f32 %v1807, %v1830
        %v1839 = vadd.f32 %v1808, %v1831
        %v1840 = vadd.f32 %v1809, %v1832
        %v1841 = vadd.f32 %v1810, %v1833
        %v1842 = vadd.f32 %v1811, %v1834
        %v1843 = vadd.f32 %v1812, %v1835
        %v1844 = vadd.f32 %v1813, %v1836
        %v1845 = vadd.f32 %v1814, %v1837
        %v1846 = vld [vmem:[%s1678 + $0x5] sm:$0x1]
        %v1847 = vlaneseq
        %v1848 = vshrl.u32 %v1847, 7
        %v1849 = vsub.s32 0, %v1848
        %v1850 = vrot.slane %v1846, %v1849
        %v1851 = vmul.f32 %v1816, %v1850
        %v1852 = vmul.f32 %v1817, %v1850
        %v1853 = vmul.f32 %v1818, %v1850
        %v1854 = vmul.f32 %v1819, %v1850
        %v1855 = vmul.f32 %v1820, %v1850
        %v1856 = vmul.f32 %v1821, %v1850
        %v1857 = vmul.f32 %v1822, %v1850
        %v1858 = vmul.f32 %v1823, %v1850
        %v1859 = vadd.f32 %v1838, %v1851
        %v1860 = vadd.f32 %v1839, %v1852
        %v1861 = vadd.f32 %v1840, %v1853
        %v1862 = vadd.f32 %v1841, %v1854
        %v1863 = vadd.f32 %v1842, %v1855
        %v1864 = vadd.f32 %v1843, %v1856
        %v1865 = vadd.f32 %v1844, %v1857
        %v1866 = vadd.f32 %v1845, %v1858
        %v1867 = vld [vmem:[%s1678 + $0x8] sm:$0x1]
        %v1868 = vlaneseq
        %v1869 = vshrl.u32 %v1868, 7
        %v1870 = vsub.s32 0, %v1869
        %v1871 = vrot.slane %v1867, %v1870
        %v1872 = vmul.f32 %v1817, %v1871
        %v1873 = vmul.f32 %v1818, %v1871
        %v1874 = vmul.f32 %v1819, %v1871
        %v1875 = vmul.f32 %v1820, %v1871
        %v1876 = vmul.f32 %v1821, %v1871
        %v1877 = vmul.f32 %v1822, %v1871
        %v1878 = vmul.f32 %v1823, %v1871
        %v1879 = vmul.f32 %v1824, %v1871
        %v1880 = vadd.f32 %v1859, %v1872
        %v1881 = vadd.f32 %v1860, %v1873
        %v1882 = vadd.f32 %v1861, %v1874
        %v1883 = vadd.f32 %v1862, %v1875
        %v1884 = vadd.f32 %v1863, %v1876
        %v1885 = vadd.f32 %v1864, %v1877
        %v1886 = vadd.f32 %v1865, %v1878
        %v1887 = vadd.f32 %v1866, %v1879
        %1896 = vrot.lane.b32.xlu0 %v1880, 126
        %v1897 = vpop.permute.xlu0 %1896
        %1898 = vrot.lane.b32.xlu0 %v1881, 126
        %v1899 = vpop.permute.xlu0 %1898
        %1900 = vrot.lane.b32.xlu0 %v1882, 126
        %v1901 = vpop.permute.xlu0 %1900
        %1902 = vrot.lane.b32.xlu0 %v1883, 126
        %v1903 = vpop.permute.xlu0 %1902
        %1904 = vrot.lane.b32.xlu0 %v1884, 126
        %v1905 = vpop.permute.xlu0 %1904
        %1906 = vrot.lane.b32.xlu0 %v1885, 126
        %v1907 = vpop.permute.xlu0 %1906
        %1908 = vrot.lane.b32.xlu0 %v1886, 126
        %v1909 = vpop.permute.xlu0 %1908
        %1910 = vrot.lane.b32.xlu0 %v1887, 126
        %v1911 = vpop.permute.xlu0 %1910
        %v1920 = vadd.f32 %v1880, %v1897
        %v1921 = vadd.f32 %v1881, %v1899
        %v1922 = vadd.f32 %v1882, %v1901
        %v1923 = vadd.f32 %v1883, %v1903
        %v1924 = vadd.f32 %v1884, %v1905
        %v1925 = vadd.f32 %v1885, %v1907
        %v1926 = vadd.f32 %v1886, %v1909
        %v1927 = vadd.f32 %v1887, %v1911
        %v1928 = vmax.f32 %v1920, 0.0
        %v1929 = vmax.f32 %v1921, 0.0
        %v1930 = vmax.f32 %v1922, 0.0
        %v1931 = vmax.f32 %v1923, 0.0
        %v1932 = vmax.f32 %v1924, 0.0
        %v1933 = vmax.f32 %v1925, 0.0
        %v1934 = vmax.f32 %v1926, 0.0
        %v1935 = vmax.f32 %v1927, 0.0
        %v1936 = vld [vmem:[%s3 + $0x6] sm:$0x1]
        %v1937 = vlaneseq
        %v1938 = vshrl.u32 %v1937, 7
        %v1939 = vsub.s32 0, %v1938
        %v1940 = vrot.slane %v1936, %v1939
        %v1941 = vld [vmem:[%s2] sm:$0x1]
        %1943 = vset.pattern.permute.xlu0 0
        %1944 = vperm.xlu0 %1943, %v1928
        %v1945 = vpop.permute.xlu0 %1944
        %1948 = vset.pattern.permute.xlu0 0
        %1949 = vperm.xlu0 %1948, %v1929
        %v1950 = vpop.permute.xlu0 %1949
        %1953 = vset.pattern.permute.xlu0 0
        %1954 = vperm.xlu0 %1953, %v1930
        %v1955 = vpop.permute.xlu0 %1954
        %1958 = vset.pattern.permute.xlu0 0
        %1959 = vperm.xlu0 %1958, %v1931
        %v1960 = vpop.permute.xlu0 %1959
        %1963 = vset.pattern.permute.xlu0 0
        %1964 = vperm.xlu0 %1963, %v1932
        %v1965 = vpop.permute.xlu0 %1964
        %1968 = vset.pattern.permute.xlu0 0
        %1969 = vperm.xlu0 %1968, %v1933
        %v1970 = vpop.permute.xlu0 %1969
        %1973 = vset.pattern.permute.xlu0 0
        %1974 = vperm.xlu0 %1973, %v1934
        %v1975 = vpop.permute.xlu0 %1974
        %1978 = vset.pattern.permute.xlu0 0
        %1979 = vperm.xlu0 %1978, %v1935
        %v1980 = vpop.permute.xlu0 %1979
        %v1982 = vlaneseq
        %v1983 = vshrl.u32 %v1982, 7
        %v1984 = vsub.s32 0, %v1983
        %v1985 = vrot.slane %v1941, %v1984
        %v1986 = vmul.f32 %v1945, %v1985
        %v1987 = vmul.f32 %v1950, %v1985
        %v1988 = vmul.f32 %v1955, %v1985
        %v1989 = vmul.f32 %v1960, %v1985
        %v1990 = vmul.f32 %v1965, %v1985
        %v1991 = vmul.f32 %v1970, %v1985
        %v1992 = vmul.f32 %v1975, %v1985
        %v1993 = vmul.f32 %v1980, %v1985
        %v1994 = vadd.f32 %v1940, %v1986
        %v1995 = vadd.f32 %v1940, %v1987
        %v1996 = vadd.f32 %v1940, %v1988
        %v1997 = vadd.f32 %v1940, %v1989
        %v1998 = vadd.f32 %v1940, %v1990
        %v1999 = vadd.f32 %v1940, %v1991
        %v2000 = vadd.f32 %v1940, %v1992
        %v2001 = vadd.f32 %v1940, %v1993
        %v2002 = vld [vmem:[%s2 + $0x1] sm:$0x1]
        %2003 = vset.pattern.permute.xlu0 1
        %2004 = vperm.xlu0 %2003, %v1928
        %v2005 = vpop.permute.xlu0 %2004
        %2007 = vset.pattern.permute.xlu0 1
        %2008 = vperm.xlu0 %2007, %v1929
        %v2009 = vpop.permute.xlu0 %2008
        %2011 = vset.pattern.permute.xlu0 1
        %2012 = vperm.xlu0 %2011, %v1930
        %v2013 = vpop.permute.xlu0 %2012
        %2015 = vset.pattern.permute.xlu0 1
        %2016 = vperm.xlu0 %2015, %v1931
        %v2017 = vpop.permute.xlu0 %2016
        %2019 = vset.pattern.permute.xlu0 1
        %2020 = vperm.xlu0 %2019, %v1932
        %v2021 = vpop.permute.xlu0 %2020
        %2023 = vset.pattern.permute.xlu0 1
        %2024 = vperm.xlu0 %2023, %v1933
        %v2025 = vpop.permute.xlu0 %2024
        %2027 = vset.pattern.permute.xlu0 1
        %2028 = vperm.xlu0 %2027, %v1934
        %v2029 = vpop.permute.xlu0 %2028
        %2031 = vset.pattern.permute.xlu0 1
        %2032 = vperm.xlu0 %2031, %v1935
        %v2033 = vpop.permute.xlu0 %2032
        %v2035 = vlaneseq
        %v2036 = vshrl.u32 %v2035, 7
        %v2037 = vsub.s32 0, %v2036
        %v2038 = vrot.slane %v2002, %v2037
        %v2039 = vmul.f32 %v2005, %v2038
        %v2040 = vmul.f32 %v2009, %v2038
        %v2041 = vmul.f32 %v2013, %v2038
        %v2042 = vmul.f32 %v2017, %v2038
        %v2043 = vmul.f32 %v2021, %v2038
        %v2044 = vmul.f32 %v2025, %v2038
        %v2045 = vmul.f32 %v2029, %v2038
        %v2046 = vmul.f32 %v2033, %v2038
        %v2047 = vadd.f32 %v1994, %v2039
        %v2048 = vadd.f32 %v1995, %v2040
        %v2049 = vadd.f32 %v1996, %v2041
        %v2050 = vadd.f32 %v1997, %v2042
        %v2051 = vadd.f32 %v1998, %v2043
        %v2052 = vadd.f32 %v1999, %v2044
        %v2053 = vadd.f32 %v2000, %v2045
        %v2054 = vadd.f32 %v2001, %v2046
        %v2055 = vmax.f32 %v2047, 0.0
        %v2056 = vmax.f32 %v2048, 0.0
        %v2057 = vmax.f32 %v2049, 0.0
        %v2058 = vmax.f32 %v2050, 0.0
        %v2059 = vmax.f32 %v2051, 0.0
        %v2060 = vmax.f32 %v2052, 0.0
        %v2061 = vmax.f32 %v2053, 0.0
        %v2062 = vmax.f32 %v2054, 0.0
        %2063 = vst [vmem:[%s190] sm:$0xff] %v2055
        %2064 = vst [vmem:[%s190 + $0x8] sm:$0xff] %v2056
        %2065 = vst [vmem:[%s190 + $0x10] sm:$0xff] %v2057
        %2066 = vst [vmem:[%s190 + $0x18] sm:$0xff] %v2058
        %2067 = vst [vmem:[%s190 + $0x20] sm:$0xff] %v2059
        %2068 = vst [vmem:[%s190 + $0x28] sm:$0xff] %v2060
        %2069 = vst [vmem:[%s190 + $0x30] sm:$0xff] %v2061
        %2070 = vst [vmem:[%s190 + $0x38] sm:$0xff] %v2062
        %s2071 = sand.u32 %s115, 1
        %s2072 = scalar_lea.sflag [#allocation5], %s2071
        %s2073 = sand.u32 %s115, 1
        %s2074 = smul.addr %s2073, 64
        %s2075 = scalar_lea.vmem [#allocation4], %s2074
        // Predicated region
        $region37: #{neat_block_forward.1} parent=35 // pred_check
          %p2076 = pneg %p125
        $region38: #{neat_block_forward.1} parent=35 // pred_check_branch
          %2078 = sbr.rel (%p2076) target = $region40
        $region39: #{neat_block_forward.1} parent=35 // pred_region
          %s2080 = ssub.s32 1024, 1024
          %2081 = vsyncadd %s2072, %s2080
          %s2082 = smul.addr %s18, 8
          %s2083 = smul.addr %s2082, 128
          %s2084 = scalar_lea.hbm %s4, %s2083
          %s2085 = sshll.u32 %s2075, 4
          %s2086 = int_to_ptr.vmem [resolvable:$true] %s2085
          %2091 = dma.vmem_to_hbm [thread:$0]  %s2086, 1024, %s2084, %s2072, 128, 128, 8
        $region40: #{neat_block_forward.1} parent=35 // pred_fallthru
          _
      $region36: #{neat_block_forward.1} parent=5 // pred_fallthru
        _
      %p2092 = scmp.le.s32.totalorder 2, %s13
      // Predicated region
      $region41: #{neat_block_forward.1} parent=5 // pred_check
        %p2093 = pneg %p2092
      $region42: #{neat_block_forward.1} parent=5 // pred_check_branch
        %2095 = sbr.rel (%p2093) target = $region44
      $region43: #{neat_block_forward.1} parent=5 // pred_region
        %s2096 = ssub.s32 %s13, 2
        // Predicated region
        $region45: #{neat_block_forward.1} parent=43 // pred_check
          %p2097 = pneg %p131
        $region46: #{neat_block_forward.1} parent=43 // pred_check_branch
          %2099 = sbr.rel (%p2097) target = $region48
        $region47: #{neat_block_forward.1} parent=43 // pred_region
          %s2100 = sand.u32 %s116, 1
          %s2101 = scalar_lea.sflag [#allocation5], %s2100
          %s2102 = sand.u32 %s116, 1
          %s2103 = smul.addr %s2102, 64
          %s2104 = scalar_lea.vmem [#allocation4], %s2103
          %2105 = dma.done %s2101, 1024
        $region48: #{neat_block_forward.1} parent=43 // pred_fallthru
          _
      $region44: #{neat_block_forward.1} parent=5 // pred_fallthru
        _
    $region6: #{neat_block_forward.1} parent=1 // loop_footer
      %s17 = sadd.s32 1, %s13
    $region7: #{neat_block_forward.1} parent=1 // loop_footer_branch
      %12 = sbr.rel target = $region3
    $region8: #{neat_block_forward.1} parent=1 // loop_exit
      _
    %2106 = vsyncpa [#allocation5], 1
    %s2107 = scalar_lea.sflag [#allocation5], 1
    %2108 = vsyncpa %s2107, 1

</llo_original>
